<compile_context>
chip_gen: v5e
topology: v5e:2x2
jax: 0.10.0
libtpu: 0.0.40
codegen_flags: <defaults>
</compile_context>

<pallas_src>
import numpy as np
import jax
import jax.numpy as jnp
from jax import lax
from jax.experimental import pallas as pl
from jax.experimental.pallas import tpu as pltpu


# ----------------------------------------------------------------------------
# Host-side (trace-time) helpers that build the tiny banded matrices.
# ----------------------------------------------------------------------------
def _gather_mat(out_size, in_size, stride, pad, off):
    """G[o, i] = 1  iff  i == stride*o - pad + off  (and 0 <= i < in_size)."""
    G = np.zeros((out_size, in_size), dtype=np.float32)
    for o in range(out_size):
        i = stride * o - pad + off
        if 0 <= i < in_size:
            G[o, i] = 1.0
    return G


def _bicubic_matrix(in_size, out_size):
    """PyTorch F.interpolate(mode='bicubic', align_corners=False) as a dense
    (out_size, in_size) resize matrix (cubic kernel A=-0.75, clamped borders)."""
    A = -0.75

    def k1(t):  # |t| <= 1
        return ((A + 2.0) * t - (A + 3.0)) * t * t + 1.0

    def k2(t):  # 1 < |t| < 2
        return ((A * t - 5.0 * A) * t + 8.0 * A) * t - 4.0 * A

    scale = in_size / out_size
    R = np.zeros((out_size, in_size), dtype=np.float32)
    for o in range(out_size):
        src = (o + 0.5) * scale - 0.5
        i0 = int(np.floor(src))
        f = src - i0
        wts = [k2(f + 1.0), k1(f), k1(1.0 - f), k2(2.0 - f)]
        for tap, wgt in zip(range(-1, 3), wts):
            idx = min(max(i0 + tap, 0), in_size - 1)
            R[o, idx] += wgt
    return R


def _conv_mats(w, b, Hin, Win, stride, pad, N):
    """Conv2d (weight (Cout,Cin,k,k)) -> stacked RowSel / ColBand / bias-row."""
    w = w.astype(jnp.float32)
    b = b.astype(jnp.float32)
    Cout, Cin, k, _ = w.shape
    Hout = (Hin + 2 * pad - k) // stride + 1
    Wout = (Win + 2 * pad - k) // stride + 1
    eyeN = np.eye(N, dtype=np.float32)
    S = np.stack([np.kron(eyeN, _gather_mat(Hout, Hin, stride, pad, kh))
                  for kh in range(k)])                           # (k, N*Hout, N*Hin)
    M = jnp.stack([
        sum(jnp.kron(jnp.asarray(_gather_mat(Wout, Win, stride, pad, kw).T),
                     w[:, :, kh, kw].T)
            for kw in range(k))
        for kh in range(k)])                                     # (k, Win*Cin, Wout*Cout)
    brow = jnp.tile(b, Wout).reshape(1, Wout * Cout)
    return jnp.asarray(S), M, brow, Hout, Wout


def _deconv_mats(w, b, Hin, Win, stride, pad, N):
    """ConvTranspose2d (weight (Cin,Cout,k,k)) -> RowScatter / ColBand / bias-row."""
    w = w.astype(jnp.float32)
    b = b.astype(jnp.float32)
    Cin, Cout, k, _ = w.shape
    Hout = (Hin - 1) * stride - 2 * pad + k
    Wout = (Win - 1) * stride - 2 * pad + k
    eyeN = np.eye(N, dtype=np.float32)
    S = np.stack([np.kron(eyeN, _gather_mat(Hin, Hout, stride, pad, kh).T)
                  for kh in range(k)])                           # (k, N*Hout, N*Hin)
    M = jnp.stack([
        sum(jnp.kron(jnp.asarray(_gather_mat(Win, Wout, stride, pad, kw)),
                     w[:, :, kh, kw])
            for kw in range(k))
        for kh in range(k)])                                     # (k, Win*Cin, Wout*Cout)
    brow = jnp.tile(b, Wout).reshape(1, Wout * Cout)
    return jnp.asarray(S), M, brow, Hout, Wout


def _bicubic_mats(Hin, Win, Hout, Wout, C, N):
    RH = _bicubic_matrix(Hin, Hout)                              # (Hout, Hin)
    RW = _bicubic_matrix(Win, Wout)                              # (Wout, Win)
    S = np.kron(np.eye(N, dtype=np.float32), RH)[None]           # (1, N*Hout, N*Hin)
    M = np.kron(RW.T, np.eye(C, dtype=np.float32))[None]         # (1, Win*C, Wout*C)
    return jnp.asarray(S), jnp.asarray(M)


def _convo_mats(w, b, Wsp, C):
    """1x1 convO over concat(x6,x7,x8): fold the concat into 3 channel-mix blocks."""
    w = w.astype(jnp.float32)
    b = b.astype(jnp.float32)
    Cout = w.shape[0]
    eyeW = np.eye(Wsp, dtype=np.float32)
    A = jnp.stack([jnp.kron(jnp.asarray(eyeW), w[:, j * C:(j + 1) * C, 0, 0].T)
                   for j in range(3)])                           # (3, Wsp*C, Wsp*Cout)
    brow = jnp.tile(b, Wsp).reshape(1, Wsp * Cout)
    return A, brow


# ----------------------------------------------------------------------------
# The single fused Pallas kernel: whole forward pass, everything VMEM-resident.
# ----------------------------------------------------------------------------
def _relight_kernel(x_ref,
                    s0, m0, b0, s1, m1, b1, s2, m2, b2, s3, m3, b3,
                    sd1, md1, bd1, sd2, md2, bd2, sd3, md3, bd3,
                    sb4, mb4, sb5, mb5,
                    ao, bo,
                    sf, mf, bf,
                    out_ref):
    f32 = jnp.float32

    def layer(x, S_ref, M_ref, b_ref=None, relu=False, skip=None):
        # out = act( sum_kh (RowSel_kh @ x) @ ColBand_kh + bias ) [+ skip]
        acc = None
        for t in range(S_ref.shape[0]):
            sx = jnp.dot(S_ref[t], x, preferred_element_type=f32)
            part = jnp.dot(sx, M_ref[t], preferred_element_type=f32)
            acc = part if acc is None else acc + part
        if b_ref is not None:
            acc = acc + b_ref[...]
        if relu:
            acc = jnp.maximum(acc, 0.0)
        if skip is not None:
            acc = acc + skip
        return acc

    x = x_ref[...]
    x0 = layer(x, s0, m0, b0)                           # conv0        (no relu)
    x1 = layer(x0, s1, m1, b1, relu=True)               # conv1, s=2
    x2 = layer(x1, s2, m2, b2, relu=True)               # conv2, s=2
    x3 = layer(x2, s3, m3, b3, relu=True)               # conv3, s=2
    x4 = layer(x3, sd1, md1, bd1, relu=True, skip=x2)   # relu(deconv1) + x2
    x5 = layer(x4, sd2, md2, bd2, relu=True, skip=x1)   # relu(deconv2) + x1
    x6 = layer(x5, sd3, md3, bd3, relu=True, skip=x0)   # relu(deconv3) + x0
    x7 = layer(x4, sb4, mb4)                            # bicubic(x4) -> full res
    x8 = layer(x5, sb5, mb5)                            # bicubic(x5) -> full res
    # convO (1x1) on concat(x6, x7, x8): concat folded into three weight blocks
    xo = (jnp.dot(x6, ao[0], preferred_element_type=f32)
          + jnp.dot(x7, ao[1], preferred_element_type=f32)
          + jnp.dot(x8, ao[2], preferred_element_type=f32)
          + bo[...])
    y = layer(xo, sf, mf, bf)                           # convF        (no relu)
    out_ref[...] = y.astype(out_ref.dtype)


def relightnet_forward(x, p):
    """x: (N, 4, H, W) NCHW (odd H, W).  Returns (N, 1, H, W)."""
    N, Cin, H, W = x.shape
    C = p["conv0_w"].shape[0]

    s0, m0, b0, H0, W0 = _conv_mats(p["conv0_w"], p["conv0_b"], H, W, 1, 1, N)
    s1, m1, b1, H1, W1 = _conv_mats(p["conv1_w"], p["conv1_b"], H0, W0, 2, 1, N)
    s2, m2, b2, H2, W2 = _conv_mats(p["conv2_w"], p["conv2_b"], H1, W1, 2, 1, N)
    s3, m3, b3, H3, W3 = _conv_mats(p["conv3_w"], p["conv3_b"], H2, W2, 2, 1, N)
    sd1, md1, bd1, Hd1, Wd1 = _deconv_mats(p["deconv1_w"], p["deconv1_b"], H3, W3, 2, 1, N)
    sd2, md2, bd2, Hd2, Wd2 = _deconv_mats(p["deconv2_w"], p["deconv2_b"], Hd1, Wd1, 2, 1, N)
    sd3, md3, bd3, Hd3, Wd3 = _deconv_mats(p["deconv3_w"], p["deconv3_b"], Hd2, Wd2, 2, 1, N)
    if (Hd1, Wd1) != (H2, W2) or (Hd2, Wd2) != (H1, W1) or (Hd3, Wd3) != (H0, W0):
        raise ValueError("skip connections require odd input spatial sizes")
    sb4, mb4 = _bicubic_mats(Hd1, Wd1, Hd3, Wd3, C, N)
    sb5, mb5 = _bicubic_mats(Hd2, Wd2, Hd3, Wd3, C, N)
    ao, bo = _convo_mats(p["convO_w"], p["convO_b"], Wd3, C)
    sf, mf, bf, Hf, Wf = _conv_mats(p["convF_w"], p["convF_b"], Hd3, Wd3, 1, 1, N)

    # lane-dense slab layout: rows = (n, h), lanes = w*C + c
    x_slab = x.astype(jnp.float32).transpose(0, 2, 3, 1).reshape(N * H, W * Cin)

    args = [x_slab,
            s0, m0, b0, s1, m1, b1, s2, m2, b2, s3, m3, b3,
            sd1, md1, bd1, sd2, md2, bd2, sd3, md3, bd3,
            sb4, mb4, sb5, mb5,
            ao, bo,
            sf, mf, bf]

    def full_spec(a):
        nd = a.ndim
        return pl.BlockSpec(a.shape, lambda i, nd=nd: (0,) * nd)

    out = pl.pallas_call(
        _relight_kernel,
        out_shape=jax.ShapeDtypeStruct((N * Hf, Wf), jnp.float32),
        grid=(1,),
        in_specs=[full_spec(a) for a in args],
        out_specs=pl.BlockSpec((N * Hf, Wf), lambda i: (0, 0)),
        compiler_params=pltpu.CompilerParams(dimension_semantics=("arbitrary",)),
    )(*args)

    return out.reshape(N, Hf, Wf)[:, None, :, :]


# ----------------------------------------------------------------------------
# Pure-JAX/XLA reference (for the self-check in __main__ only).
# ----------------------------------------------------------------------------
def relightnet_reference(x, p):
    hp = lax.Precision.HIGHEST

    def conv(x, w, b, s, pad):
        y = lax.conv_general_dilated(
            x, w, window_strides=(s, s), padding=((pad, pad), (pad, pad)),
            dimension_numbers=("NCHW", "OIHW", "NCHW"), precision=hp)
        return y + b[None, :, None, None]

    def deconv(x, w, b, s, pad):
        k = w.shape[2]
        wf = jnp.flip(w, (2, 3)).transpose(1, 0, 2, 3)
        y = lax.conv_general_dilated(
            x, wf, window_strides=(1, 1),
            padding=((k - 1 - pad,) * 2, (k - 1 - pad,) * 2),
            lhs_dilation=(s, s),
            dimension_numbers=("NCHW", "OIHW", "NCHW"), precision=hp)
        return y + b[None, :, None, None]

    def bicubic(x, Ho, Wo):
        RH = jnp.asarray(_bicubic_matrix(x.shape[2], Ho))
        RW = jnp.asarray(_bicubic_matrix(x.shape[3], Wo))
        return jnp.einsum("oi,ncij,pj->ncop", RH, x, RW, precision=hp)

    x0 = conv(x, p["conv0_w"], p["conv0_b"], 1, 1)
    x1 = jax.nn.relu(conv(x0, p["conv1_w"], p["conv1_b"], 2, 1))
    x2 = jax.nn.relu(conv(x1, p["conv2_w"], p["conv2_b"], 2, 1))
    x3 = jax.nn.relu(conv(x2, p["conv3_w"], p["conv3_b"], 2, 1))
    x4 = jax.nn.relu(deconv(x3, p["deconv1_w"], p["deconv1_b"], 2, 1)) + x2
    x5 = jax.nn.relu(deconv(x4, p["deconv2_w"], p["deconv2_b"], 2, 1)) + x1
    x6 = jax.nn.relu(deconv(x5, p["deconv3_w"], p["deconv3_b"], 2, 1)) + x0
    Ho, Wo = x6.shape[2], x6.shape[3]
    x7 = bicubic(x4, Ho, Wo)
    x8 = bicubic(x5, Ho, Wo)
    xc = jnp.concatenate([x6, x7, x8], axis=1)
    xo = conv(xc, p["convO_w"], p["convO_b"], 1, 0)
    return conv(xo, p["convF_w"], p["convF_b"], 1, 1)


# ----------------------------------------------------------------------------
# Deterministic parameter init (PyTorch-like uniform bounds; synthetic weights)
# ----------------------------------------------------------------------------
def init_params(key, out_channels=16, k=3):
    C = out_channels

    def conv_init(key, cout, cin, kk):
        kw, kb = jax.random.split(key)
        bound = 1.0 / np.sqrt(cin * kk * kk)
        w = jax.random.uniform(kw, (cout, cin, kk, kk), jnp.float32, -bound, bound)
        b = jax.random.uniform(kb, (cout,), jnp.float32, -bound, bound)
        return w, b

    def deconv_init(key, cin, cout, kk):
        kw, kb = jax.random.split(key)
        bound = 1.0 / np.sqrt(cout * kk * kk)
        w = jax.random.uniform(kw, (cin, cout, kk, kk), jnp.float32, -bound, bound)
        b = jax.random.uniform(kb, (cout,), jnp.float32, -bound, bound)
        return w, b

    keys = jax.random.split(key, 9)
    p = {}
    p["conv0_w"], p["conv0_b"] = conv_init(keys[0], C, 4, k)
    p["conv1_w"], p["conv1_b"] = conv_init(keys[1], C, C, k)
    p["conv2_w"], p["conv2_b"] = conv_init(keys[2], C, C, k)
    p["conv3_w"], p["conv3_b"] = conv_init(keys[3], C, C, k)
    p["deconv1_w"], p["deconv1_b"] = deconv_init(keys[4], C, C, k)
    p["deconv2_w"], p["deconv2_b"] = deconv_init(keys[5], C, C, k)
    p["deconv3_w"], p["deconv3_b"] = deconv_init(keys[6], C, C, k)
    p["convO_w"], p["convO_b"] = conv_init(keys[7], C, 3 * C, 1)
    p["convF_w"], p["convF_b"] = conv_init(keys[8], 1, C, k)
    return p


if __name__ == "__main__":
    key = jax.random.PRNGKey(0)
    k_params, k_x = jax.random.split(key)

    out_channels = 16
    # The skip connections only line up for odd spatial sizes (stride-2 deconv
    # output is 2*H-1), so use a 9x9 input.
    N, Cin, H, W = 2, 4, 9, 9
    x = jax.random.normal(k_x, (N, Cin, H, W), jnp.float32)
    params = init_params(k_params, out_channels=out_channels)

    fwd = jax.jit(relightnet_forward)
    y = jax.block_until_ready(fwd(x, params))

    assert y.shape == (N, 1, H, W), y.shape
    assert bool(jnp.all(jnp.isfinite(y)))

    # Self-check the fused kernel against a pure-JAX/XLA reference.
    y_ref = jax.block_until_ready(relightnet_reference(x, params))
    np.testing.assert_allclose(np.asarray(y), np.asarray(y_ref), rtol=2e-2, atol=2e-3)

    print("KERNEL_OK")
</pallas_src>

<mosaic_0001>
module attributes {stable_mosaic.version = 11 : i64} {
  func.func @_relight_kernel(%arg0: i32, %arg1: memref<18x36xf32, #tpu.memory_space<vmem>>, %arg2: memref<3x18x18xf32, #tpu.memory_space<vmem>>, %arg3: memref<3x36x144xf32, #tpu.memory_space<vmem>>, %arg4: memref<1x144xf32, #tpu.memory_space<vmem>>, %arg5: memref<3x10x18xf32, #tpu.memory_space<vmem>>, %arg6: memref<3x144x80xf32, #tpu.memory_space<vmem>>, %arg7: memref<1x80xf32, #tpu.memory_space<vmem>>, %arg8: memref<3x6x10xf32, #tpu.memory_space<vmem>>, %arg9: memref<3x80x48xf32, #tpu.memory_space<vmem>>, %arg10: memref<1x48xf32, #tpu.memory_space<vmem>>, %arg11: memref<3x4x6xf32, #tpu.memory_space<vmem>>, %arg12: memref<3x48x32xf32, #tpu.memory_space<vmem>>, %arg13: memref<1x32xf32, #tpu.memory_space<vmem>>, %arg14: memref<3x6x4xf32, #tpu.memory_space<vmem>>, %arg15: memref<3x32x48xf32, #tpu.memory_space<vmem>>, %arg16: memref<1x48xf32, #tpu.memory_space<vmem>>, %arg17: memref<3x10x6xf32, #tpu.memory_space<vmem>>, %arg18: memref<3x48x80xf32, #tpu.memory_space<vmem>>, %arg19: memref<1x80xf32, #tpu.memory_space<vmem>>, %arg20: memref<3x18x10xf32, #tpu.memory_space<vmem>>, %arg21: memref<3x80x144xf32, #tpu.memory_space<vmem>>, %arg22: memref<1x144xf32, #tpu.memory_space<vmem>>, %arg23: memref<1x18x6xf32, #tpu.memory_space<vmem>>, %arg24: memref<1x48x144xf32, #tpu.memory_space<vmem>>, %arg25: memref<1x18x10xf32, #tpu.memory_space<vmem>>, %arg26: memref<1x80x144xf32, #tpu.memory_space<vmem>>, %arg27: memref<3x144x144xf32, #tpu.memory_space<vmem>>, %arg28: memref<1x144xf32, #tpu.memory_space<vmem>>, %arg29: memref<3x18x18xf32, #tpu.memory_space<vmem>>, %arg30: memref<3x144x9xf32, #tpu.memory_space<vmem>>, %arg31: memref<1x9xf32, #tpu.memory_space<vmem>>, %arg32: memref<18x9xf32, #tpu.memory_space<vmem>>) attributes {dimension_semantics = [#tpu.dimension_semantics<arbitrary>], iteration_bounds = array<i64: 1>, scalar_prefetch = 0 : i64, scratch_operands = 0 : i64, tpu.core_type = #tpu.core_type<tc>, window_params = [{pipeline_mode = #tpu.pipeline_mode<synchronous>, transform_indices = @transform_0, window_bounds = array<i64: 18, 36>}, {pipeline_mode = #tpu.pipeline_mode<synchronous>, transform_indices = @transform_1, window_bounds = array<i64: 3, 18, 18>}, {pipeline_mode = #tpu.pipeline_mode<synchronous>, transform_indices = @transform_2, window_bounds = array<i64: 3, 36, 144>}, {pipeline_mode = #tpu.pipeline_mode<synchronous>, transform_indices = @transform_3, window_bounds = array<i64: 1, 144>}, {pipeline_mode = #tpu.pipeline_mode<synchronous>, transform_indices = @transform_4, window_bounds = array<i64: 3, 10, 18>}, {pipeline_mode = #tpu.pipeline_mode<synchronous>, transform_indices = @transform_5, window_bounds = array<i64: 3, 144, 80>}, {pipeline_mode = #tpu.pipeline_mode<synchronous>, transform_indices = @transform_6, window_bounds = array<i64: 1, 80>}, {pipeline_mode = #tpu.pipeline_mode<synchronous>, transform_indices = @transform_7, window_bounds = array<i64: 3, 6, 10>}, {pipeline_mode = #tpu.pipeline_mode<synchronous>, transform_indices = @transform_8, window_bounds = array<i64: 3, 80, 48>}, {pipeline_mode = #tpu.pipeline_mode<synchronous>, transform_indices = @transform_9, window_bounds = array<i64: 1, 48>}, {pipeline_mode = #tpu.pipeline_mode<synchronous>, transform_indices = @transform_10, window_bounds = array<i64: 3, 4, 6>}, {pipeline_mode = #tpu.pipeline_mode<synchronous>, transform_indices = @transform_11, window_bounds = array<i64: 3, 48, 32>}, {pipeline_mode = #tpu.pipeline_mode<synchronous>, transform_indices = @transform_12, window_bounds = array<i64: 1, 32>}, {pipeline_mode = #tpu.pipeline_mode<synchronous>, transform_indices = @transform_13, window_bounds = array<i64: 3, 6, 4>}, {pipeline_mode = #tpu.pipeline_mode<synchronous>, transform_indices = @transform_14, window_bounds = array<i64: 3, 32, 48>}, {pipeline_mode = #tpu.pipeline_mode<synchronous>, transform_indices = @transform_15, window_bounds = array<i64: 1, 48>}, {pipeline_mode = #tpu.pipeline_mode<synchronous>, transform_indices = @transform_16, window_bounds = array<i64: 3, 10, 6>}, {pipeline_mode = #tpu.pipeline_mode<synchronous>, transform_indices = @transform_17, window_bounds = array<i64: 3, 48, 80>}, {pipeline_mode = #tpu.pipeline_mode<synchronous>, transform_indices = @transform_18, window_bounds = array<i64: 1, 80>}, {pipeline_mode = #tpu.pipeline_mode<synchronous>, transform_indices = @transform_19, window_bounds = array<i64: 3, 18, 10>}, {pipeline_mode = #tpu.pipeline_mode<synchronous>, transform_indices = @transform_20, window_bounds = array<i64: 3, 80, 144>}, {pipeline_mode = #tpu.pipeline_mode<synchronous>, transform_indices = @transform_21, window_bounds = array<i64: 1, 144>}, {pipeline_mode = #tpu.pipeline_mode<synchronous>, transform_indices = @transform_22, window_bounds = array<i64: 1, 18, 6>}, {pipeline_mode = #tpu.pipeline_mode<synchronous>, transform_indices = @transform_23, window_bounds = array<i64: 1, 48, 144>}, {pipeline_mode = #tpu.pipeline_mode<synchronous>, transform_indices = @transform_24, window_bounds = array<i64: 1, 18, 10>}, {pipeline_mode = #tpu.pipeline_mode<synchronous>, transform_indices = @transform_25, window_bounds = array<i64: 1, 80, 144>}, {pipeline_mode = #tpu.pipeline_mode<synchronous>, transform_indices = @transform_26, window_bounds = array<i64: 3, 144, 144>}, {pipeline_mode = #tpu.pipeline_mode<synchronous>, transform_indices = @transform_27, window_bounds = array<i64: 1, 144>}, {pipeline_mode = #tpu.pipeline_mode<synchronous>, transform_indices = @transform_28, window_bounds = array<i64: 3, 18, 18>}, {pipeline_mode = #tpu.pipeline_mode<synchronous>, transform_indices = @transform_29, window_bounds = array<i64: 3, 144, 9>}, {pipeline_mode = #tpu.pipeline_mode<synchronous>, transform_indices = @transform_30, window_bounds = array<i64: 1, 9>}, {pipeline_mode = #tpu.pipeline_mode<synchronous>, transform_indices = @transform_31, window_bounds = array<i64: 18, 9>}]} {
    %c0 = arith.constant 0 : index
    %c0_0 = arith.constant 0 : index
    %0 = vector.load %arg1[%c0, %c0_0] : memref<18x36xf32, #tpu.memory_space<vmem>>, vector<18x36xf32>
    %c0_1 = arith.constant 0 : index
    %c0_2 = arith.constant 0 : index
    %c0_3 = arith.constant 0 : index
    %1 = vector.load %arg2[%c0_1, %c0_2, %c0_3] : memref<3x18x18xf32, #tpu.memory_space<vmem>>, vector<1x18x18xf32>
    %2 = vector.shape_cast %1 : vector<1x18x18xf32> to vector<18x18xf32>
    %cst = arith.constant dense<0.000000e+00> : vector<18x36xf32>
    %3 = tpu.matmul %2, %0, %cst {dimension_numbers = #tpu.dot_dimension_numbers<[1], [0], [0], [1], [0, 0, 1, 1], [], []>} : vector<18x18xf32>, vector<18x36xf32>, vector<18x36xf32> -> vector<18x36xf32>
    %c0_4 = arith.constant 0 : index
    %c0_5 = arith.constant 0 : index
    %c0_6 = arith.constant 0 : index
    %4 = vector.load %arg3[%c0_4, %c0_5, %c0_6] : memref<3x36x144xf32, #tpu.memory_space<vmem>>, vector<1x36x144xf32>
    %5 = vector.shape_cast %4 : vector<1x36x144xf32> to vector<36x144xf32>
    %cst_7 = arith.constant dense<0.000000e+00> : vector<18x144xf32>
    %6 = tpu.matmul %3, %5, %cst_7 {dimension_numbers = #tpu.dot_dimension_numbers<[1], [0], [0], [1], [0, 0, 1, 1], [], []>} : vector<18x36xf32>, vector<36x144xf32>, vector<18x144xf32> -> vector<18x144xf32>
    %c1 = arith.constant 1 : index
    %c0_8 = arith.constant 0 : index
    %c0_9 = arith.constant 0 : index
    %7 = vector.load %arg2[%c1, %c0_8, %c0_9] : memref<3x18x18xf32, #tpu.memory_space<vmem>>, vector<1x18x18xf32>
    %8 = vector.shape_cast %7 : vector<1x18x18xf32> to vector<18x18xf32>
    %cst_10 = arith.constant dense<0.000000e+00> : vector<18x36xf32>
    %9 = tpu.matmul %8, %0, %cst_10 {dimension_numbers = #tpu.dot_dimension_numbers<[1], [0], [0], [1], [0, 0, 1, 1], [], []>} : vector<18x18xf32>, vector<18x36xf32>, vector<18x36xf32> -> vector<18x36xf32>
    %c1_11 = arith.constant 1 : index
    %c0_12 = arith.constant 0 : index
    %c0_13 = arith.constant 0 : index
    %10 = vector.load %arg3[%c1_11, %c0_12, %c0_13] : memref<3x36x144xf32, #tpu.memory_space<vmem>>, vector<1x36x144xf32>
    %11 = vector.shape_cast %10 : vector<1x36x144xf32> to vector<36x144xf32>
    %cst_14 = arith.constant dense<0.000000e+00> : vector<18x144xf32>
    %12 = tpu.matmul %9, %11, %cst_14 {dimension_numbers = #tpu.dot_dimension_numbers<[1], [0], [0], [1], [0, 0, 1, 1], [], []>} : vector<18x36xf32>, vector<36x144xf32>, vector<18x144xf32> -> vector<18x144xf32>
    %13 = arith.addf %6, %12 : vector<18x144xf32>
    %c2 = arith.constant 2 : index
    %c0_15 = arith.constant 0 : index
    %c0_16 = arith.constant 0 : index
    %14 = vector.load %arg2[%c2, %c0_15, %c0_16] : memref<3x18x18xf32, #tpu.memory_space<vmem>>, vector<1x18x18xf32>
    %15 = vector.shape_cast %14 : vector<1x18x18xf32> to vector<18x18xf32>
    %cst_17 = arith.constant dense<0.000000e+00> : vector<18x36xf32>
    %16 = tpu.matmul %15, %0, %cst_17 {dimension_numbers = #tpu.dot_dimension_numbers<[1], [0], [0], [1], [0, 0, 1, 1], [], []>} : vector<18x18xf32>, vector<18x36xf32>, vector<18x36xf32> -> vector<18x36xf32>
    %c2_18 = arith.constant 2 : index
    %c0_19 = arith.constant 0 : index
    %c0_20 = arith.constant 0 : index
    %17 = vector.load %arg3[%c2_18, %c0_19, %c0_20] : memref<3x36x144xf32, #tpu.memory_space<vmem>>, vector<1x36x144xf32>
    %18 = vector.shape_cast %17 : vector<1x36x144xf32> to vector<36x144xf32>
    %cst_21 = arith.constant dense<0.000000e+00> : vector<18x144xf32>
    %19 = tpu.matmul %16, %18, %cst_21 {dimension_numbers = #tpu.dot_dimension_numbers<[1], [0], [0], [1], [0, 0, 1, 1], [], []>} : vector<18x36xf32>, vector<36x144xf32>, vector<18x144xf32> -> vector<18x144xf32>
    %20 = arith.addf %13, %19 : vector<18x144xf32>
    %c0_22 = arith.constant 0 : index
    %c0_23 = arith.constant 0 : index
    %21 = vector.load %arg4[%c0_22, %c0_23] : memref<1x144xf32, #tpu.memory_space<vmem>>, vector<1x144xf32>
    %22 = vector.broadcast %21 : vector<1x144xf32> to vector<18x144xf32>
    %23 = arith.addf %20, %22 : vector<18x144xf32>
    %c0_24 = arith.constant 0 : index
    %c0_25 = arith.constant 0 : index
    %c0_26 = arith.constant 0 : index
    %24 = vector.load %arg5[%c0_24, %c0_25, %c0_26] : memref<3x10x18xf32, #tpu.memory_space<vmem>>, vector<1x10x18xf32>
    %25 = vector.shape_cast %24 : vector<1x10x18xf32> to vector<10x18xf32>
    %cst_27 = arith.constant dense<0.000000e+00> : vector<10x144xf32>
    %26 = tpu.matmul %25, %23, %cst_27 {dimension_numbers = #tpu.dot_dimension_numbers<[1], [0], [0], [1], [0, 0, 1, 1], [], []>} : vector<10x18xf32>, vector<18x144xf32>, vector<10x144xf32> -> vector<10x144xf32>
    %c0_28 = arith.constant 0 : index
    %c0_29 = arith.constant 0 : index
    %c0_30 = arith.constant 0 : index
    %27 = vector.load %arg6[%c0_28, %c0_29, %c0_30] : memref<3x144x80xf32, #tpu.memory_space<vmem>>, vector<1x144x80xf32>
    %28 = vector.shape_cast %27 : vector<1x144x80xf32> to vector<144x80xf32>
    %cst_31 = arith.constant dense<0.000000e+00> : vector<10x80xf32>
    %29 = tpu.matmul %26, %28, %cst_31 {dimension_numbers = #tpu.dot_dimension_numbers<[1], [0], [0], [1], [0, 0, 1, 1], [], []>} : vector<10x144xf32>, vector<144x80xf32>, vector<10x80xf32> -> vector<10x80xf32>
    %c1_32 = arith.constant 1 : index
    %c0_33 = arith.constant 0 : index
    %c0_34 = arith.constant 0 : index
    %30 = vector.load %arg5[%c1_32, %c0_33, %c0_34] : memref<3x10x18xf32, #tpu.memory_space<vmem>>, vector<1x10x18xf32>
    %31 = vector.shape_cast %30 : vector<1x10x18xf32> to vector<10x18xf32>
    %cst_35 = arith.constant dense<0.000000e+00> : vector<10x144xf32>
    %32 = tpu.matmul %31, %23, %cst_35 {dimension_numbers = #tpu.dot_dimension_numbers<[1], [0], [0], [1], [0, 0, 1, 1], [], []>} : vector<10x18xf32>, vector<18x144xf32>, vector<10x144xf32> -> vector<10x144xf32>
    %c1_36 = arith.constant 1 : index
    %c0_37 = arith.constant 0 : index
    %c0_38 = arith.constant 0 : index
    %33 = vector.load %arg6[%c1_36, %c0_37, %c0_38] : memref<3x144x80xf32, #tpu.memory_space<vmem>>, vector<1x144x80xf32>
    %34 = vector.shape_cast %33 : vector<1x144x80xf32> to vector<144x80xf32>
    %cst_39 = arith.constant dense<0.000000e+00> : vector<10x80xf32>
    %35 = tpu.matmul %32, %34, %cst_39 {dimension_numbers = #tpu.dot_dimension_numbers<[1], [0], [0], [1], [0, 0, 1, 1], [], []>} : vector<10x144xf32>, vector<144x80xf32>, vector<10x80xf32> -> vector<10x80xf32>
    %36 = arith.addf %29, %35 : vector<10x80xf32>
    %c2_40 = arith.constant 2 : index
    %c0_41 = arith.constant 0 : index
    %c0_42 = arith.constant 0 : index
    %37 = vector.load %arg5[%c2_40, %c0_41, %c0_42] : memref<3x10x18xf32, #tpu.memory_space<vmem>>, vector<1x10x18xf32>
    %38 = vector.shape_cast %37 : vector<1x10x18xf32> to vector<10x18xf32>
    %cst_43 = arith.constant dense<0.000000e+00> : vector<10x144xf32>
    %39 = tpu.matmul %38, %23, %cst_43 {dimension_numbers = #tpu.dot_dimension_numbers<[1], [0], [0], [1], [0, 0, 1, 1], [], []>} : vector<10x18xf32>, vector<18x144xf32>, vector<10x144xf32> -> vector<10x144xf32>
    %c2_44 = arith.constant 2 : index
    %c0_45 = arith.constant 0 : index
    %c0_46 = arith.constant 0 : index
    %40 = vector.load %arg6[%c2_44, %c0_45, %c0_46] : memref<3x144x80xf32, #tpu.memory_space<vmem>>, vector<1x144x80xf32>
    %41 = vector.shape_cast %40 : vector<1x144x80xf32> to vector<144x80xf32>
    %cst_47 = arith.constant dense<0.000000e+00> : vector<10x80xf32>
    %42 = tpu.matmul %39, %41, %cst_47 {dimension_numbers = #tpu.dot_dimension_numbers<[1], [0], [0], [1], [0, 0, 1, 1], [], []>} : vector<10x144xf32>, vector<144x80xf32>, vector<10x80xf32> -> vector<10x80xf32>
    %43 = arith.addf %36, %42 : vector<10x80xf32>
    %c0_48 = arith.constant 0 : index
    %c0_49 = arith.constant 0 : index
    %44 = vector.load %arg7[%c0_48, %c0_49] : memref<1x80xf32, #tpu.memory_space<vmem>>, vector<1x80xf32>
    %45 = vector.broadcast %44 : vector<1x80xf32> to vector<10x80xf32>
    %46 = arith.addf %43, %45 : vector<10x80xf32>
    %cst_50 = arith.constant 0.000000e+00 : f32
    %47 = vector.broadcast %cst_50 : f32 to vector<10x80xf32>
    %48 = arith.maximumf %46, %47 : vector<10x80xf32>
    %c0_51 = arith.constant 0 : index
    %c0_52 = arith.constant 0 : index
    %c0_53 = arith.constant 0 : index
    %49 = vector.load %arg8[%c0_51, %c0_52, %c0_53] : memref<3x6x10xf32, #tpu.memory_space<vmem>>, vector<1x6x10xf32>
    %50 = vector.shape_cast %49 : vector<1x6x10xf32> to vector<6x10xf32>
    %cst_54 = arith.constant dense<0.000000e+00> : vector<6x80xf32>
    %51 = tpu.matmul %50, %48, %cst_54 {dimension_numbers = #tpu.dot_dimension_numbers<[1], [0], [0], [1], [0, 0, 1, 1], [], []>} : vector<6x10xf32>, vector<10x80xf32>, vector<6x80xf32> -> vector<6x80xf32>
    %c0_55 = arith.constant 0 : index
    %c0_56 = arith.constant 0 : index
    %c0_57 = arith.constant 0 : index
    %52 = vector.load %arg9[%c0_55, %c0_56, %c0_57] : memref<3x80x48xf32, #tpu.memory_space<vmem>>, vector<1x80x48xf32>
    %53 = vector.shape_cast %52 : vector<1x80x48xf32> to vector<80x48xf32>
    %cst_58 = arith.constant dense<0.000000e+00> : vector<6x48xf32>
    %54 = tpu.matmul %51, %53, %cst_58 {dimension_numbers = #tpu.dot_dimension_numbers<[1], [0], [0], [1], [0, 0, 1, 1], [], []>} : vector<6x80xf32>, vector<80x48xf32>, vector<6x48xf32> -> vector<6x48xf32>
    %c1_59 = arith.constant 1 : index
    %c0_60 = arith.constant 0 : index
    %c0_61 = arith.constant 0 : index
    %55 = vector.load %arg8[%c1_59, %c0_60, %c0_61] : memref<3x6x10xf32, #tpu.memory_space<vmem>>, vector<1x6x10xf32>
    %56 = vector.shape_cast %55 : vector<1x6x10xf32> to vector<6x10xf32>
    %cst_62 = arith.constant dense<0.000000e+00> : vector<6x80xf32>
    %57 = tpu.matmul %56, %48, %cst_62 {dimension_numbers = #tpu.dot_dimension_numbers<[1], [0], [0], [1], [0, 0, 1, 1], [], []>} : vector<6x10xf32>, vector<10x80xf32>, vector<6x80xf32> -> vector<6x80xf32>
    %c1_63 = arith.constant 1 : index
    %c0_64 = arith.constant 0 : index
    %c0_65 = arith.constant 0 : index
    %58 = vector.load %arg9[%c1_63, %c0_64, %c0_65] : memref<3x80x48xf32, #tpu.memory_space<vmem>>, vector<1x80x48xf32>
    %59 = vector.shape_cast %58 : vector<1x80x48xf32> to vector<80x48xf32>
    %cst_66 = arith.constant dense<0.000000e+00> : vector<6x48xf32>
    %60 = tpu.matmul %57, %59, %cst_66 {dimension_numbers = #tpu.dot_dimension_numbers<[1], [0], [0], [1], [0, 0, 1, 1], [], []>} : vector<6x80xf32>, vector<80x48xf32>, vector<6x48xf32> -> vector<6x48xf32>
    %61 = arith.addf %54, %60 : vector<6x48xf32>
    %c2_67 = arith.constant 2 : index
    %c0_68 = arith.constant 0 : index
    %c0_69 = arith.constant 0 : index
    %62 = vector.load %arg8[%c2_67, %c0_68, %c0_69] : memref<3x6x10xf32, #tpu.memory_space<vmem>>, vector<1x6x10xf32>
    %63 = vector.shape_cast %62 : vector<1x6x10xf32> to vector<6x10xf32>
    %cst_70 = arith.constant dense<0.000000e+00> : vector<6x80xf32>
    %64 = tpu.matmul %63, %48, %cst_70 {dimension_numbers = #tpu.dot_dimension_numbers<[1], [0], [0], [1], [0, 0, 1, 1], [], []>} : vector<6x10xf32>, vector<10x80xf32>, vector<6x80xf32> -> vector<6x80xf32>
    %c2_71 = arith.constant 2 : index
    %c0_72 = arith.constant 0 : index
    %c0_73 = arith.constant 0 : index
    %65 = vector.load %arg9[%c2_71, %c0_72, %c0_73] : memref<3x80x48xf32, #tpu.memory_space<vmem>>, vector<1x80x48xf32>
    %66 = vector.shape_cast %65 : vector<1x80x48xf32> to vector<80x48xf32>
    %cst_74 = arith.constant dense<0.000000e+00> : vector<6x48xf32>
    %67 = tpu.matmul %64, %66, %cst_74 {dimension_numbers = #tpu.dot_dimension_numbers<[1], [0], [0], [1], [0, 0, 1, 1], [], []>} : vector<6x80xf32>, vector<80x48xf32>, vector<6x48xf32> -> vector<6x48xf32>
    %68 = arith.addf %61, %67 : vector<6x48xf32>
    %c0_75 = arith.constant 0 : index
    %c0_76 = arith.constant 0 : index
    %69 = vector.load %arg10[%c0_75, %c0_76] : memref<1x48xf32, #tpu.memory_space<vmem>>, vector<1x48xf32>
    %70 = vector.broadcast %69 : vector<1x48xf32> to vector<6x48xf32>
    %71 = arith.addf %68, %70 : vector<6x48xf32>
    %cst_77 = arith.constant 0.000000e+00 : f32
    %72 = vector.broadcast %cst_77 : f32 to vector<6x48xf32>
    %73 = arith.maximumf %71, %72 : vector<6x48xf32>
    %c0_78 = arith.constant 0 : index
    %c0_79 = arith.constant 0 : index
    %c0_80 = arith.constant 0 : index
    %74 = vector.load %arg11[%c0_78, %c0_79, %c0_80] : memref<3x4x6xf32, #tpu.memory_space<vmem>>, vector<1x4x6xf32>
    %75 = vector.shape_cast %74 : vector<1x4x6xf32> to vector<4x6xf32>
    %cst_81 = arith.constant dense<0.000000e+00> : vector<4x48xf32>
    %76 = tpu.matmul %75, %73, %cst_81 {dimension_numbers = #tpu.dot_dimension_numbers<[1], [0], [0], [1], [0, 0, 1, 1], [], []>} : vector<4x6xf32>, vector<6x48xf32>, vector<4x48xf32> -> vector<4x48xf32>
    %c0_82 = arith.constant 0 : index
    %c0_83 = arith.constant 0 : index
    %c0_84 = arith.constant 0 : index
    %77 = vector.load %arg12[%c0_82, %c0_83, %c0_84] : memref<3x48x32xf32, #tpu.memory_space<vmem>>, vector<1x48x32xf32>
    %78 = vector.shape_cast %77 : vector<1x48x32xf32> to vector<48x32xf32>
    %cst_85 = arith.constant dense<0.000000e+00> : vector<4x32xf32>
    %79 = tpu.matmul %76, %78, %cst_85 {dimension_numbers = #tpu.dot_dimension_numbers<[1], [0], [0], [1], [0, 0, 1, 1], [], []>} : vector<4x48xf32>, vector<48x32xf32>, vector<4x32xf32> -> vector<4x32xf32>
    %c1_86 = arith.constant 1 : index
    %c0_87 = arith.constant 0 : index
    %c0_88 = arith.constant 0 : index
    %80 = vector.load %arg11[%c1_86, %c0_87, %c0_88] : memref<3x4x6xf32, #tpu.memory_space<vmem>>, vector<1x4x6xf32>
    %81 = vector.shape_cast %80 : vector<1x4x6xf32> to vector<4x6xf32>
    %cst_89 = arith.constant dense<0.000000e+00> : vector<4x48xf32>
    %82 = tpu.matmul %81, %73, %cst_89 {dimension_numbers = #tpu.dot_dimension_numbers<[1], [0], [0], [1], [0, 0, 1, 1], [], []>} : vector<4x6xf32>, vector<6x48xf32>, vector<4x48xf32> -> vector<4x48xf32>
    %c1_90 = arith.constant 1 : index
    %c0_91 = arith.constant 0 : index
    %c0_92 = arith.constant 0 : index
    %83 = vector.load %arg12[%c1_90, %c0_91, %c0_92] : memref<3x48x32xf32, #tpu.memory_space<vmem>>, vector<1x48x32xf32>
    %84 = vector.shape_cast %83 : vector<1x48x32xf32> to vector<48x32xf32>
    %cst_93 = arith.constant dense<0.000000e+00> : vector<4x32xf32>
    %85 = tpu.matmul %82, %84, %cst_93 {dimension_numbers = #tpu.dot_dimension_numbers<[1], [0], [0], [1], [0, 0, 1, 1], [], []>} : vector<4x48xf32>, vector<48x32xf32>, vector<4x32xf32> -> vector<4x32xf32>
    %86 = arith.addf %79, %85 : vector<4x32xf32>
    %c2_94 = arith.constant 2 : index
    %c0_95 = arith.constant 0 : index
    %c0_96 = arith.constant 0 : index
    %87 = vector.load %arg11[%c2_94, %c0_95, %c0_96] : memref<3x4x6xf32, #tpu.memory_space<vmem>>, vector<1x4x6xf32>
    %88 = vector.shape_cast %87 : vector<1x4x6xf32> to vector<4x6xf32>
    %cst_97 = arith.constant dense<0.000000e+00> : vector<4x48xf32>
    %89 = tpu.matmul %88, %73, %cst_97 {dimension_numbers = #tpu.dot_dimension_numbers<[1], [0], [0], [1], [0, 0, 1, 1], [], []>} : vector<4x6xf32>, vector<6x48xf32>, vector<4x48xf32> -> vector<4x48xf32>
    %c2_98 = arith.constant 2 : index
    %c0_99 = arith.constant 0 : index
    %c0_100 = arith.constant 0 : index
    %90 = vector.load %arg12[%c2_98, %c0_99, %c0_100] : memref<3x48x32xf32, #tpu.memory_space<vmem>>, vector<1x48x32xf32>
    %91 = vector.shape_cast %90 : vector<1x48x32xf32> to vector<48x32xf32>
    %cst_101 = arith.constant dense<0.000000e+00> : vector<4x32xf32>
    %92 = tpu.matmul %89, %91, %cst_101 {dimension_numbers = #tpu.dot_dimension_numbers<[1], [0], [0], [1], [0, 0, 1, 1], [], []>} : vector<4x48xf32>, vector<48x32xf32>, vector<4x32xf32> -> vector<4x32xf32>
    %93 = arith.addf %86, %92 : vector<4x32xf32>
    %c0_102 = arith.constant 0 : index
    %c0_103 = arith.constant 0 : index
    %94 = vector.load %arg13[%c0_102, %c0_103] : memref<1x32xf32, #tpu.memory_space<vmem>>, vector<1x32xf32>
    %95 = vector.broadcast %94 : vector<1x32xf32> to vector<4x32xf32>
    %96 = arith.addf %93, %95 : vector<4x32xf32>
    %cst_104 = arith.constant 0.000000e+00 : f32
    %97 = vector.broadcast %cst_104 : f32 to vector<4x32xf32>
    %98 = arith.maximumf %96, %97 : vector<4x32xf32>
    %c0_105 = arith.constant 0 : index
    %c0_106 = arith.constant 0 : index
    %c0_107 = arith.constant 0 : index
    %99 = vector.load %arg14[%c0_105, %c0_106, %c0_107] : memref<3x6x4xf32, #tpu.memory_space<vmem>>, vector<1x6x4xf32>
    %100 = vector.shape_cast %99 : vector<1x6x4xf32> to vector<6x4xf32>
    %cst_108 = arith.constant dense<0.000000e+00> : vector<6x32xf32>
    %101 = tpu.matmul %100, %98, %cst_108 {dimension_numbers = #tpu.dot_dimension_numbers<[1], [0], [0], [1], [0, 0, 1, 1], [], []>} : vector<6x4xf32>, vector<4x32xf32>, vector<6x32xf32> -> vector<6x32xf32>
    %c0_109 = arith.constant 0 : index
    %c0_110 = arith.constant 0 : index
    %c0_111 = arith.constant 0 : index
    %102 = vector.load %arg15[%c0_109, %c0_110, %c0_111] : memref<3x32x48xf32, #tpu.memory_space<vmem>>, vector<1x32x48xf32>
    %103 = vector.shape_cast %102 : vector<1x32x48xf32> to vector<32x48xf32>
    %cst_112 = arith.constant dense<0.000000e+00> : vector<6x48xf32>
    %104 = tpu.matmul %101, %103, %cst_112 {dimension_numbers = #tpu.dot_dimension_numbers<[1], [0], [0], [1], [0, 0, 1, 1], [], []>} : vector<6x32xf32>, vector<32x48xf32>, vector<6x48xf32> -> vector<6x48xf32>
    %c1_113 = arith.constant 1 : index
    %c0_114 = arith.constant 0 : index
    %c0_115 = arith.constant 0 : index
    %105 = vector.load %arg14[%c1_113, %c0_114, %c0_115] : memref<3x6x4xf32, #tpu.memory_space<vmem>>, vector<1x6x4xf32>
    %106 = vector.shape_cast %105 : vector<1x6x4xf32> to vector<6x4xf32>
    %cst_116 = arith.constant dense<0.000000e+00> : vector<6x32xf32>
    %107 = tpu.matmul %106, %98, %cst_116 {dimension_numbers = #tpu.dot_dimension_numbers<[1], [0], [0], [1], [0, 0, 1, 1], [], []>} : vector<6x4xf32>, vector<4x32xf32>, vector<6x32xf32> -> vector<6x32xf32>
    %c1_117 = arith.constant 1 : index
    %c0_118 = arith.constant 0 : index
    %c0_119 = arith.constant 0 : index
    %108 = vector.load %arg15[%c1_117, %c0_118, %c0_119] : memref<3x32x48xf32, #tpu.memory_space<vmem>>, vector<1x32x48xf32>
    %109 = vector.shape_cast %108 : vector<1x32x48xf32> to vector<32x48xf32>
    %cst_120 = arith.constant dense<0.000000e+00> : vector<6x48xf32>
    %110 = tpu.matmul %107, %109, %cst_120 {dimension_numbers = #tpu.dot_dimension_numbers<[1], [0], [0], [1], [0, 0, 1, 1], [], []>} : vector<6x32xf32>, vector<32x48xf32>, vector<6x48xf32> -> vector<6x48xf32>
    %111 = arith.addf %104, %110 : vector<6x48xf32>
    %c2_121 = arith.constant 2 : index
    %c0_122 = arith.constant 0 : index
    %c0_123 = arith.constant 0 : index
    %112 = vector.load %arg14[%c2_121, %c0_122, %c0_123] : memref<3x6x4xf32, #tpu.memory_space<vmem>>, vector<1x6x4xf32>
    %113 = vector.shape_cast %112 : vector<1x6x4xf32> to vector<6x4xf32>
    %cst_124 = arith.constant dense<0.000000e+00> : vector<6x32xf32>
    %114 = tpu.matmul %113, %98, %cst_124 {dimension_numbers = #tpu.dot_dimension_numbers<[1], [0], [0], [1], [0, 0, 1, 1], [], []>} : vector<6x4xf32>, vector<4x32xf32>, vector<6x32xf32> -> vector<6x32xf32>
    %c2_125 = arith.constant 2 : index
    %c0_126 = arith.constant 0 : index
    %c0_127 = arith.constant 0 : index
    %115 = vector.load %arg15[%c2_125, %c0_126, %c0_127] : memref<3x32x48xf32, #tpu.memory_space<vmem>>, vector<1x32x48xf32>
    %116 = vector.shape_cast %115 : vector<1x32x48xf32> to vector<32x48xf32>
    %cst_128 = arith.constant dense<0.000000e+00> : vector<6x48xf32>
    %117 = tpu.matmul %114, %116, %cst_128 {dimension_numbers = #tpu.dot_dimension_numbers<[1], [0], [0], [1], [0, 0, 1, 1], [], []>} : vector<6x32xf32>, vector<32x48xf32>, vector<6x48xf32> -> vector<6x48xf32>
    %118 = arith.addf %111, %117 : vector<6x48xf32>
    %c0_129 = arith.constant 0 : index
    %c0_130 = arith.constant 0 : index
    %119 = vector.load %arg16[%c0_129, %c0_130] : memref<1x48xf32, #tpu.memory_space<vmem>>, vector<1x48xf32>
    %120 = vector.broadcast %119 : vector<1x48xf32> to vector<6x48xf32>
    %121 = arith.addf %118, %120 : vector<6x48xf32>
    %cst_131 = arith.constant 0.000000e+00 : f32
    %122 = vector.broadcast %cst_131 : f32 to vector<6x48xf32>
    %123 = arith.maximumf %121, %122 : vector<6x48xf32>
    %124 = arith.addf %123, %73 : vector<6x48xf32>
    %c0_132 = arith.constant 0 : index
    %c0_133 = arith.constant 0 : index
    %c0_134 = arith.constant 0 : index
    %125 = vector.load %arg17[%c0_132, %c0_133, %c0_134] : memref<3x10x6xf32, #tpu.memory_space<vmem>>, vector<1x10x6xf32>
    %126 = vector.shape_cast %125 : vector<1x10x6xf32> to vector<10x6xf32>
    %cst_135 = arith.constant dense<0.000000e+00> : vector<10x48xf32>
    %127 = tpu.matmul %126, %124, %cst_135 {dimension_numbers = #tpu.dot_dimension_numbers<[1], [0], [0], [1], [0, 0, 1, 1], [], []>} : vector<10x6xf32>, vector<6x48xf32>, vector<10x48xf32> -> vector<10x48xf32>
    %c0_136 = arith.constant 0 : index
    %c0_137 = arith.constant 0 : index
    %c0_138 = arith.constant 0 : index
    %128 = vector.load %arg18[%c0_136, %c0_137, %c0_138] : memref<3x48x80xf32, #tpu.memory_space<vmem>>, vector<1x48x80xf32>
    %129 = vector.shape_cast %128 : vector<1x48x80xf32> to vector<48x80xf32>
    %cst_139 = arith.constant dense<0.000000e+00> : vector<10x80xf32>
    %130 = tpu.matmul %127, %129, %cst_139 {dimension_numbers = #tpu.dot_dimension_numbers<[1], [0], [0], [1], [0, 0, 1, 1], [], []>} : vector<10x48xf32>, vector<48x80xf32>, vector<10x80xf32> -> vector<10x80xf32>
    %c1_140 = arith.constant 1 : index
    %c0_141 = arith.constant 0 : index
    %c0_142 = arith.constant 0 : index
    %131 = vector.load %arg17[%c1_140, %c0_141, %c0_142] : memref<3x10x6xf32, #tpu.memory_space<vmem>>, vector<1x10x6xf32>
    %132 = vector.shape_cast %131 : vector<1x10x6xf32> to vector<10x6xf32>
    %cst_143 = arith.constant dense<0.000000e+00> : vector<10x48xf32>
    %133 = tpu.matmul %132, %124, %cst_143 {dimension_numbers = #tpu.dot_dimension_numbers<[1], [0], [0], [1], [0, 0, 1, 1], [], []>} : vector<10x6xf32>, vector<6x48xf32>, vector<10x48xf32> -> vector<10x48xf32>
    %c1_144 = arith.constant 1 : index
    %c0_145 = arith.constant 0 : index
    %c0_146 = arith.constant 0 : index
    %134 = vector.load %arg18[%c1_144, %c0_145, %c0_146] : memref<3x48x80xf32, #tpu.memory_space<vmem>>, vector<1x48x80xf32>
    %135 = vector.shape_cast %134 : vector<1x48x80xf32> to vector<48x80xf32>
    %cst_147 = arith.constant dense<0.000000e+00> : vector<10x80xf32>
    %136 = tpu.matmul %133, %135, %cst_147 {dimension_numbers = #tpu.dot_dimension_numbers<[1], [0], [0], [1], [0, 0, 1, 1], [], []>} : vector<10x48xf32>, vector<48x80xf32>, vector<10x80xf32> -> vector<10x80xf32>
    %137 = arith.addf %130, %136 : vector<10x80xf32>
    %c2_148 = arith.constant 2 : index
    %c0_149 = arith.constant 0 : index
    %c0_150 = arith.constant 0 : index
    %138 = vector.load %arg17[%c2_148, %c0_149, %c0_150] : memref<3x10x6xf32, #tpu.memory_space<vmem>>, vector<1x10x6xf32>
    %139 = vector.shape_cast %138 : vector<1x10x6xf32> to vector<10x6xf32>
    %cst_151 = arith.constant dense<0.000000e+00> : vector<10x48xf32>
    %140 = tpu.matmul %139, %124, %cst_151 {dimension_numbers = #tpu.dot_dimension_numbers<[1], [0], [0], [1], [0, 0, 1, 1], [], []>} : vector<10x6xf32>, vector<6x48xf32>, vector<10x48xf32> -> vector<10x48xf32>
    %c2_152 = arith.constant 2 : index
    %c0_153 = arith.constant 0 : index
    %c0_154 = arith.constant 0 : index
    %141 = vector.load %arg18[%c2_152, %c0_153, %c0_154] : memref<3x48x80xf32, #tpu.memory_space<vmem>>, vector<1x48x80xf32>
    %142 = vector.shape_cast %141 : vector<1x48x80xf32> to vector<48x80xf32>
    %cst_155 = arith.constant dense<0.000000e+00> : vector<10x80xf32>
    %143 = tpu.matmul %140, %142, %cst_155 {dimension_numbers = #tpu.dot_dimension_numbers<[1], [0], [0], [1], [0, 0, 1, 1], [], []>} : vector<10x48xf32>, vector<48x80xf32>, vector<10x80xf32> -> vector<10x80xf32>
    %144 = arith.addf %137, %143 : vector<10x80xf32>
    %c0_156 = arith.constant 0 : index
    %c0_157 = arith.constant 0 : index
    %145 = vector.load %arg19[%c0_156, %c0_157] : memref<1x80xf32, #tpu.memory_space<vmem>>, vector<1x80xf32>
    %146 = vector.broadcast %145 : vector<1x80xf32> to vector<10x80xf32>
    %147 = arith.addf %144, %146 : vector<10x80xf32>
    %cst_158 = arith.constant 0.000000e+00 : f32
    %148 = vector.broadcast %cst_158 : f32 to vector<10x80xf32>
    %149 = arith.maximumf %147, %148 : vector<10x80xf32>
    %150 = arith.addf %149, %48 : vector<10x80xf32>
    %c0_159 = arith.constant 0 : index
    %c0_160 = arith.constant 0 : index
    %c0_161 = arith.constant 0 : index
    %151 = vector.load %arg20[%c0_159, %c0_160, %c0_161] : memref<3x18x10xf32, #tpu.memory_space<vmem>>, vector<1x18x10xf32>
    %152 = vector.shape_cast %151 : vector<1x18x10xf32> to vector<18x10xf32>
    %cst_162 = arith.constant dense<0.000000e+00> : vector<18x80xf32>
    %153 = tpu.matmul %152, %150, %cst_162 {dimension_numbers = #tpu.dot_dimension_numbers<[1], [0], [0], [1], [0, 0, 1, 1], [], []>} : vector<18x10xf32>, vector<10x80xf32>, vector<18x80xf32> -> vector<18x80xf32>
    %c0_163 = arith.constant 0 : index
    %c0_164 = arith.constant 0 : index
    %c0_165 = arith.constant 0 : index
    %154 = vector.load %arg21[%c0_163, %c0_164, %c0_165] : memref<3x80x144xf32, #tpu.memory_space<vmem>>, vector<1x80x144xf32>
    %155 = vector.shape_cast %154 : vector<1x80x144xf32> to vector<80x144xf32>
    %cst_166 = arith.constant dense<0.000000e+00> : vector<18x144xf32>
    %156 = tpu.matmul %153, %155, %cst_166 {dimension_numbers = #tpu.dot_dimension_numbers<[1], [0], [0], [1], [0, 0, 1, 1], [], []>} : vector<18x80xf32>, vector<80x144xf32>, vector<18x144xf32> -> vector<18x144xf32>
    %c1_167 = arith.constant 1 : index
    %c0_168 = arith.constant 0 : index
    %c0_169 = arith.constant 0 : index
    %157 = vector.load %arg20[%c1_167, %c0_168, %c0_169] : memref<3x18x10xf32, #tpu.memory_space<vmem>>, vector<1x18x10xf32>
    %158 = vector.shape_cast %157 : vector<1x18x10xf32> to vector<18x10xf32>
    %cst_170 = arith.constant dense<0.000000e+00> : vector<18x80xf32>
    %159 = tpu.matmul %158, %150, %cst_170 {dimension_numbers = #tpu.dot_dimension_numbers<[1], [0], [0], [1], [0, 0, 1, 1], [], []>} : vector<18x10xf32>, vector<10x80xf32>, vector<18x80xf32> -> vector<18x80xf32>
    %c1_171 = arith.constant 1 : index
    %c0_172 = arith.constant 0 : index
    %c0_173 = arith.constant 0 : index
    %160 = vector.load %arg21[%c1_171, %c0_172, %c0_173] : memref<3x80x144xf32, #tpu.memory_space<vmem>>, vector<1x80x144xf32>
    %161 = vector.shape_cast %160 : vector<1x80x144xf32> to vector<80x144xf32>
    %cst_174 = arith.constant dense<0.000000e+00> : vector<18x144xf32>
    %162 = tpu.matmul %159, %161, %cst_174 {dimension_numbers = #tpu.dot_dimension_numbers<[1], [0], [0], [1], [0, 0, 1, 1], [], []>} : vector<18x80xf32>, vector<80x144xf32>, vector<18x144xf32> -> vector<18x144xf32>
    %163 = arith.addf %156, %162 : vector<18x144xf32>
    %c2_175 = arith.constant 2 : index
    %c0_176 = arith.constant 0 : index
    %c0_177 = arith.constant 0 : index
    %164 = vector.load %arg20[%c2_175, %c0_176, %c0_177] : memref<3x18x10xf32, #tpu.memory_space<vmem>>, vector<1x18x10xf32>
    %165 = vector.shape_cast %164 : vector<1x18x10xf32> to vector<18x10xf32>
    %cst_178 = arith.constant dense<0.000000e+00> : vector<18x80xf32>
    %166 = tpu.matmul %165, %150, %cst_178 {dimension_numbers = #tpu.dot_dimension_numbers<[1], [0], [0], [1], [0, 0, 1, 1], [], []>} : vector<18x10xf32>, vector<10x80xf32>, vector<18x80xf32> -> vector<18x80xf32>
    %c2_179 = arith.constant 2 : index
    %c0_180 = arith.constant 0 : index
    %c0_181 = arith.constant 0 : index
    %167 = vector.load %arg21[%c2_179, %c0_180, %c0_181] : memref<3x80x144xf32, #tpu.memory_space<vmem>>, vector<1x80x144xf32>
    %168 = vector.shape_cast %167 : vector<1x80x144xf32> to vector<80x144xf32>
    %cst_182 = arith.constant dense<0.000000e+00> : vector<18x144xf32>
    %169 = tpu.matmul %166, %168, %cst_182 {dimension_numbers = #tpu.dot_dimension_numbers<[1], [0], [0], [1], [0, 0, 1, 1], [], []>} : vector<18x80xf32>, vector<80x144xf32>, vector<18x144xf32> -> vector<18x144xf32>
    %170 = arith.addf %163, %169 : vector<18x144xf32>
    %c0_183 = arith.constant 0 : index
    %c0_184 = arith.constant 0 : index
    %171 = vector.load %arg22[%c0_183, %c0_184] : memref<1x144xf32, #tpu.memory_space<vmem>>, vector<1x144xf32>
    %172 = vector.broadcast %171 : vector<1x144xf32> to vector<18x144xf32>
    %173 = arith.addf %170, %172 : vector<18x144xf32>
    %cst_185 = arith.constant 0.000000e+00 : f32
    %174 = vector.broadcast %cst_185 : f32 to vector<18x144xf32>
    %175 = arith.maximumf %173, %174 : vector<18x144xf32>
    %176 = arith.addf %175, %23 : vector<18x144xf32>
    %c0_186 = arith.constant 0 : index
    %c0_187 = arith.constant 0 : index
    %c0_188 = arith.constant 0 : index
    %177 = vector.load %arg23[%c0_186, %c0_187, %c0_188] : memref<1x18x6xf32, #tpu.memory_space<vmem>>, vector<1x18x6xf32>
    %178 = vector.shape_cast %177 : vector<1x18x6xf32> to vector<18x6xf32>
    %cst_189 = arith.constant dense<0.000000e+00> : vector<18x48xf32>
    %179 = tpu.matmul %178, %124, %cst_189 {dimension_numbers = #tpu.dot_dimension_numbers<[1], [0], [0], [1], [0, 0, 1, 1], [], []>} : vector<18x6xf32>, vector<6x48xf32>, vector<18x48xf32> -> vector<18x48xf32>
    %c0_190 = arith.constant 0 : index
    %c0_191 = arith.constant 0 : index
    %c0_192 = arith.constant 0 : index
    %180 = vector.load %arg24[%c0_190, %c0_191, %c0_192] : memref<1x48x144xf32, #tpu.memory_space<vmem>>, vector<1x48x144xf32>
    %181 = vector.shape_cast %180 : vector<1x48x144xf32> to vector<48x144xf32>
    %cst_193 = arith.constant dense<0.000000e+00> : vector<18x144xf32>
    %182 = tpu.matmul %179, %181, %cst_193 {dimension_numbers = #tpu.dot_dimension_numbers<[1], [0], [0], [1], [0, 0, 1, 1], [], []>} : vector<18x48xf32>, vector<48x144xf32>, vector<18x144xf32> -> vector<18x144xf32>
    %c0_194 = arith.constant 0 : index
    %c0_195 = arith.constant 0 : index
    %c0_196 = arith.constant 0 : index
    %183 = vector.load %arg25[%c0_194, %c0_195, %c0_196] : memref<1x18x10xf32, #tpu.memory_space<vmem>>, vector<1x18x10xf32>
    %184 = vector.shape_cast %183 : vector<1x18x10xf32> to vector<18x10xf32>
    %cst_197 = arith.constant dense<0.000000e+00> : vector<18x80xf32>
    %185 = tpu.matmul %184, %150, %cst_197 {dimension_numbers = #tpu.dot_dimension_numbers<[1], [0], [0], [1], [0, 0, 1, 1], [], []>} : vector<18x10xf32>, vector<10x80xf32>, vector<18x80xf32> -> vector<18x80xf32>
    %c0_198 = arith.constant 0 : index
    %c0_199 = arith.constant 0 : index
    %c0_200 = arith.constant 0 : index
    %186 = vector.load %arg26[%c0_198, %c0_199, %c0_200] : memref<1x80x144xf32, #tpu.memory_space<vmem>>, vector<1x80x144xf32>
    %187 = vector.shape_cast %186 : vector<1x80x144xf32> to vector<80x144xf32>
    %cst_201 = arith.constant dense<0.000000e+00> : vector<18x144xf32>
    %188 = tpu.matmul %185, %187, %cst_201 {dimension_numbers = #tpu.dot_dimension_numbers<[1], [0], [0], [1], [0, 0, 1, 1], [], []>} : vector<18x80xf32>, vector<80x144xf32>, vector<18x144xf32> -> vector<18x144xf32>
    %c0_202 = arith.constant 0 : index
    %c0_203 = arith.constant 0 : index
    %c0_204 = arith.constant 0 : index
    %189 = vector.load %arg27[%c0_202, %c0_203, %c0_204] : memref<3x144x144xf32, #tpu.memory_space<vmem>>, vector<1x144x144xf32>
    %190 = vector.shape_cast %189 : vector<1x144x144xf32> to vector<144x144xf32>
    %cst_205 = arith.constant dense<0.000000e+00> : vector<18x144xf32>
    %191 = tpu.matmul %176, %190, %cst_205 {dimension_numbers = #tpu.dot_dimension_numbers<[1], [0], [0], [1], [0, 0, 1, 1], [], []>} : vector<18x144xf32>, vector<144x144xf32>, vector<18x144xf32> -> vector<18x144xf32>
    %c1_206 = arith.constant 1 : index
    %c0_207 = arith.constant 0 : index
    %c0_208 = arith.constant 0 : index
    %192 = vector.load %arg27[%c1_206, %c0_207, %c0_208] : memref<3x144x144xf32, #tpu.memory_space<vmem>>, vector<1x144x144xf32>
    %193 = vector.shape_cast %192 : vector<1x144x144xf32> to vector<144x144xf32>
    %cst_209 = arith.constant dense<0.000000e+00> : vector<18x144xf32>
    %194 = tpu.matmul %182, %193, %cst_209 {dimension_numbers = #tpu.dot_dimension_numbers<[1], [0], [0], [1], [0, 0, 1, 1], [], []>} : vector<18x144xf32>, vector<144x144xf32>, vector<18x144xf32> -> vector<18x144xf32>
    %195 = arith.addf %191, %194 : vector<18x144xf32>
    %c2_210 = arith.constant 2 : index
    %c0_211 = arith.constant 0 : index
    %c0_212 = arith.constant 0 : index
    %196 = vector.load %arg27[%c2_210, %c0_211, %c0_212] : memref<3x144x144xf32, #tpu.memory_space<vmem>>, vector<1x144x144xf32>
    %197 = vector.shape_cast %196 : vector<1x144x144xf32> to vector<144x144xf32>
    %cst_213 = arith.constant dense<0.000000e+00> : vector<18x144xf32>
    %198 = tpu.matmul %188, %197, %cst_213 {dimension_numbers = #tpu.dot_dimension_numbers<[1], [0], [0], [1], [0, 0, 1, 1], [], []>} : vector<18x144xf32>, vector<144x144xf32>, vector<18x144xf32> -> vector<18x144xf32>
    %199 = arith.addf %195, %198 : vector<18x144xf32>
    %c0_214 = arith.constant 0 : index
    %c0_215 = arith.constant 0 : index
    %200 = vector.load %arg28[%c0_214, %c0_215] : memref<1x144xf32, #tpu.memory_space<vmem>>, vector<1x144xf32>
    %201 = vector.broadcast %200 : vector<1x144xf32> to vector<18x144xf32>
    %202 = arith.addf %199, %201 : vector<18x144xf32>
    %c0_216 = arith.constant 0 : index
    %c0_217 = arith.constant 0 : index
    %c0_218 = arith.constant 0 : index
    %203 = vector.load %arg29[%c0_216, %c0_217, %c0_218] : memref<3x18x18xf32, #tpu.memory_space<vmem>>, vector<1x18x18xf32>
    %204 = vector.shape_cast %203 : vector<1x18x18xf32> to vector<18x18xf32>
    %cst_219 = arith.constant dense<0.000000e+00> : vector<18x144xf32>
    %205 = tpu.matmul %204, %202, %cst_219 {dimension_numbers = #tpu.dot_dimension_numbers<[1], [0], [0], [1], [0, 0, 1, 1], [], []>} : vector<18x18xf32>, vector<18x144xf32>, vector<18x144xf32> -> vector<18x144xf32>
    %c0_220 = arith.constant 0 : index
    %c0_221 = arith.constant 0 : index
    %c0_222 = arith.constant 0 : index
    %206 = vector.load %arg30[%c0_220, %c0_221, %c0_222] : memref<3x144x9xf32, #tpu.memory_space<vmem>>, vector<1x144x9xf32>
    %207 = vector.shape_cast %206 : vector<1x144x9xf32> to vector<144x9xf32>
    %cst_223 = arith.constant dense<0.000000e+00> : vector<18x9xf32>
    %208 = tpu.matmul %205, %207, %cst_223 {dimension_numbers = #tpu.dot_dimension_numbers<[1], [0], [0], [1], [0, 0, 1, 1], [], []>} : vector<18x144xf32>, vector<144x9xf32>, vector<18x9xf32> -> vector<18x9xf32>
    %c1_224 = arith.constant 1 : index
    %c0_225 = arith.constant 0 : index
    %c0_226 = arith.constant 0 : index
    %209 = vector.load %arg29[%c1_224, %c0_225, %c0_226] : memref<3x18x18xf32, #tpu.memory_space<vmem>>, vector<1x18x18xf32>
    %210 = vector.shape_cast %209 : vector<1x18x18xf32> to vector<18x18xf32>
    %cst_227 = arith.constant dense<0.000000e+00> : vector<18x144xf32>
    %211 = tpu.matmul %210, %202, %cst_227 {dimension_numbers = #tpu.dot_dimension_numbers<[1], [0], [0], [1], [0, 0, 1, 1], [], []>} : vector<18x18xf32>, vector<18x144xf32>, vector<18x144xf32> -> vector<18x144xf32>
    %c1_228 = arith.constant 1 : index
    %c0_229 = arith.constant 0 : index
    %c0_230 = arith.constant 0 : index
    %212 = vector.load %arg30[%c1_228, %c0_229, %c0_230] : memref<3x144x9xf32, #tpu.memory_space<vmem>>, vector<1x144x9xf32>
    %213 = vector.shape_cast %212 : vector<1x144x9xf32> to vector<144x9xf32>
    %cst_231 = arith.constant dense<0.000000e+00> : vector<18x9xf32>
    %214 = tpu.matmul %211, %213, %cst_231 {dimension_numbers = #tpu.dot_dimension_numbers<[1], [0], [0], [1], [0, 0, 1, 1], [], []>} : vector<18x144xf32>, vector<144x9xf32>, vector<18x9xf32> -> vector<18x9xf32>
    %215 = arith.addf %208, %214 : vector<18x9xf32>
    %c2_232 = arith.constant 2 : index
    %c0_233 = arith.constant 0 : index
    %c0_234 = arith.constant 0 : index
    %216 = vector.load %arg29[%c2_232, %c0_233, %c0_234] : memref<3x18x18xf32, #tpu.memory_space<vmem>>, vector<1x18x18xf32>
    %217 = vector.shape_cast %216 : vector<1x18x18xf32> to vector<18x18xf32>
    %cst_235 = arith.constant dense<0.000000e+00> : vector<18x144xf32>
    %218 = tpu.matmul %217, %202, %cst_235 {dimension_numbers = #tpu.dot_dimension_numbers<[1], [0], [0], [1], [0, 0, 1, 1], [], []>} : vector<18x18xf32>, vector<18x144xf32>, vector<18x144xf32> -> vector<18x144xf32>
    %c2_236 = arith.constant 2 : index
    %c0_237 = arith.constant 0 : index
    %c0_238 = arith.constant 0 : index
    %219 = vector.load %arg30[%c2_236, %c0_237, %c0_238] : memref<3x144x9xf32, #tpu.memory_space<vmem>>, vector<1x144x9xf32>
    %220 = vector.shape_cast %219 : vector<1x144x9xf32> to vector<144x9xf32>
    %cst_239 = arith.constant dense<0.000000e+00> : vector<18x9xf32>
    %221 = tpu.matmul %218, %220, %cst_239 {dimension_numbers = #tpu.dot_dimension_numbers<[1], [0], [0], [1], [0, 0, 1, 1], [], []>} : vector<18x144xf32>, vector<144x9xf32>, vector<18x9xf32> -> vector<18x9xf32>
    %222 = arith.addf %215, %221 : vector<18x9xf32>
    %c0_240 = arith.constant 0 : index
    %c0_241 = arith.constant 0 : index
    %223 = vector.load %arg31[%c0_240, %c0_241] : memref<1x9xf32, #tpu.memory_space<vmem>>, vector<1x9xf32>
    %224 = vector.broadcast %223 : vector<1x9xf32> to vector<18x9xf32>
    %225 = arith.addf %222, %224 : vector<18x9xf32>
    %c0_242 = arith.constant 0 : index
    %c0_243 = arith.constant 0 : index
    %226 = vector.load %arg32[%c0_242, %c0_243] : memref<18x9xf32, #tpu.memory_space<vmem>>, vector<18x9xf32>
    tpu.vector_store %arg32[%c0_242, %c0_243], %225 {strides = array<i32>} : memref<18x9xf32, #tpu.memory_space<vmem>>, vector<18x9xf32>,
    return
  }
  func.func @transform_0(%arg0: i32) -> (i32, i32) {
    %c0_i32 = arith.constant 0 : i32
    %c0_i32_0 = arith.constant 0 : i32
    %c0_i32_1 = arith.constant 0 : i32
    return %c0_i32, %c0_i32_0 : i32, i32
  }
  func.func @transform_1(%arg0: i32) -> (i32, i32, i32) {
    %c0_i32 = arith.constant 0 : i32
    %c0_i32_0 = arith.constant 0 : i32
    %c0_i32_1 = arith.constant 0 : i32
    %c0_i32_2 = arith.constant 0 : i32
    return %c0_i32, %c0_i32_0, %c0_i32_1 : i32, i32, i32
  }
  func.func @transform_2(%arg0: i32) -> (i32, i32, i32) {
    %c0_i32 = arith.constant 0 : i32
    %c0_i32_0 = arith.constant 0 : i32
    %c0_i32_1 = arith.constant 0 : i32
    %c0_i32_2 = arith.constant 0 : i32
    return %c0_i32, %c0_i32_0, %c0_i32_1 : i32, i32, i32
  }
  func.func @transform_3(%arg0: i32) -> (i32, i32) {
    %c0_i32 = arith.constant 0 : i32
    %c0_i32_0 = arith.constant 0 : i32
    %c0_i32_1 = arith.constant 0 : i32
    return %c0_i32, %c0_i32_0 : i32, i32
  }
  func.func @transform_4(%arg0: i32) -> (i32, i32, i32) {
    %c0_i32 = arith.constant 0 : i32
    %c0_i32_0 = arith.constant 0 : i32
    %c0_i32_1 = arith.constant 0 : i32
    %c0_i32_2 = arith.constant 0 : i32
    return %c0_i32, %c0_i32_0, %c0_i32_1 : i32, i32, i32
  }
  func.func @transform_5(%arg0: i32) -> (i32, i32, i32) {
    %c0_i32 = arith.constant 0 : i32
    %c0_i32_0 = arith.constant 0 : i32
    %c0_i32_1 = arith.constant 0 : i32
    %c0_i32_2 = arith.constant 0 : i32
    return %c0_i32, %c0_i32_0, %c0_i32_1 : i32, i32, i32
  }
  func.func @transform_6(%arg0: i32) -> (i32, i32) {
    %c0_i32 = arith.constant 0 : i32
    %c0_i32_0 = arith.constant 0 : i32
    %c0_i32_1 = arith.constant 0 : i32
    return %c0_i32, %c0_i32_0 : i32, i32
  }
  func.func @transform_7(%arg0: i32) -> (i32, i32, i32) {
    %c0_i32 = arith.constant 0 : i32
    %c0_i32_0 = arith.constant 0 : i32
    %c0_i32_1 = arith.constant 0 : i32
    %c0_i32_2 = arith.constant 0 : i32
    return %c0_i32, %c0_i32_0, %c0_i32_1 : i32, i32, i32
  }
  func.func @transform_8(%arg0: i32) -> (i32, i32, i32) {
    %c0_i32 = arith.constant 0 : i32
    %c0_i32_0 = arith.constant 0 : i32
    %c0_i32_1 = arith.constant 0 : i32
    %c0_i32_2 = arith.constant 0 : i32
    return %c0_i32, %c0_i32_0, %c0_i32_1 : i32, i32, i32
  }
  func.func @transform_9(%arg0: i32) -> (i32, i32) {
    %c0_i32 = arith.constant 0 : i32
    %c0_i32_0 = arith.constant 0 : i32
    %c0_i32_1 = arith.constant 0 : i32
    return %c0_i32, %c0_i32_0 : i32, i32
  }
  func.func @transform_10(%arg0: i32) -> (i32, i32, i32) {
    %c0_i32 = arith.constant 0 : i32
    %c0_i32_0 = arith.constant 0 : i32
    %c0_i32_1 = arith.constant 0 : i32
    %c0_i32_2 = arith.constant 0 : i32
    return %c0_i32, %c0_i32_0, %c0_i32_1 : i32, i32, i32
  }
  func.func @transform_11(%arg0: i32) -> (i32, i32, i32) {
    %c0_i32 = arith.constant 0 : i32
    %c0_i32_0 = arith.constant 0 : i32
    %c0_i32_1 = arith.constant 0 : i32
    %c0_i32_2 = arith.constant 0 : i32
    return %c0_i32, %c0_i32_0, %c0_i32_1 : i32, i32, i32
  }
  func.func @transform_12(%arg0: i32) -> (i32, i32) {
    %c0_i32 = arith.constant 0 : i32
    %c0_i32_0 = arith.constant 0 : i32
    %c0_i32_1 = arith.constant 0 : i32
    return %c0_i32, %c0_i32_0 : i32, i32
  }
  func.func @transform_13(%arg0: i32) -> (i32, i32, i32) {
    %c0_i32 = arith.constant 0 : i32
    %c0_i32_0 = arith.constant 0 : i32
    %c0_i32_1 = arith.constant 0 : i32
    %c0_i32_2 = arith.constant 0 : i32
    return %c0_i32, %c0_i32_0, %c0_i32_1 : i32, i32, i32
  }
  func.func @transform_14(%arg0: i32) -> (i32, i32, i32) {
    %c0_i32 = arith.constant 0 : i32
    %c0_i32_0 = arith.constant 0 : i32
    %c0_i32_1 = arith.constant 0 : i32
    %c0_i32_2 = arith.constant 0 : i32
    return %c0_i32, %c0_i32_0, %c0_i32_1 : i32, i32, i32
  }
  func.func @transform_15(%arg0: i32) -> (i32, i32) {
    %c0_i32 = arith.constant 0 : i32
    %c0_i32_0 = arith.constant 0 : i32
    %c0_i32_1 = arith.constant 0 : i32
    return %c0_i32, %c0_i32_0 : i32, i32
  }
  func.func @transform_16(%arg0: i32) -> (i32, i32, i32) {
    %c0_i32 = arith.constant 0 : i32
    %c0_i32_0 = arith.constant 0 : i32
    %c0_i32_1 = arith.constant 0 : i32
    %c0_i32_2 = arith.constant 0 : i32
    return %c0_i32, %c0_i32_0, %c0_i32_1 : i32, i32, i32
  }
  func.func @transform_17(%arg0: i32) -> (i32, i32, i32) {
    %c0_i32 = arith.constant 0 : i32
    %c0_i32_0 = arith.constant 0 : i32
    %c0_i32_1 = arith.constant 0 : i32
    %c0_i32_2 = arith.constant 0 : i32
    return %c0_i32, %c0_i32_0, %c0_i32_1 : i32, i32, i32
  }
  func.func @transform_18(%arg0: i32) -> (i32, i32) {
    %c0_i32 = arith.constant 0 : i32
    %c0_i32_0 = arith.constant 0 : i32
    %c0_i32_1 = arith.constant 0 : i32
    return %c0_i32, %c0_i32_0 : i32, i32
  }
  func.func @transform_19(%arg0: i32) -> (i32, i32, i32) {
    %c0_i32 = arith.constant 0 : i32
    %c0_i32_0 = arith.constant 0 : i32
    %c0_i32_1 = arith.constant 0 : i32
    %c0_i32_2 = arith.constant 0 : i32
    return %c0_i32, %c0_i32_0, %c0_i32_1 : i32, i32, i32
  }
  func.func @transform_20(%arg0: i32) -> (i32, i32, i32) {
    %c0_i32 = arith.constant 0 : i32
    %c0_i32_0 = arith.constant 0 : i32
    %c0_i32_1 = arith.constant 0 : i32
    %c0_i32_2 = arith.constant 0 : i32
    return %c0_i32, %c0_i32_0, %c0_i32_1 : i32, i32, i32
  }
  func.func @transform_21(%arg0: i32) -> (i32, i32) {
    %c0_i32 = arith.constant 0 : i32
    %c0_i32_0 = arith.constant 0 : i32
    %c0_i32_1 = arith.constant 0 : i32
    return %c0_i32, %c0_i32_0 : i32, i32
  }
  func.func @transform_22(%arg0: i32) -> (i32, i32, i32) {
    %c0_i32 = arith.constant 0 : i32
    %c0_i32_0 = arith.constant 0 : i32
    %c0_i32_1 = arith.constant 0 : i32
    %c0_i32_2 = arith.constant 0 : i32
    return %c0_i32, %c0_i32_0, %c0_i32_1 : i32, i32, i32
  }
  func.func @transform_23(%arg0: i32) -> (i32, i32, i32) {
    %c0_i32 = arith.constant 0 : i32
    %c0_i32_0 = arith.constant 0 : i32
    %c0_i32_1 = arith.constant 0 : i32
    %c0_i32_2 = arith.constant 0 : i32
    return %c0_i32, %c0_i32_0, %c0_i32_1 : i32, i32, i32
  }
  func.func @transform_24(%arg0: i32) -> (i32, i32, i32) {
    %c0_i32 = arith.constant 0 : i32
    %c0_i32_0 = arith.constant 0 : i32
    %c0_i32_1 = arith.constant 0 : i32
    %c0_i32_2 = arith.constant 0 : i32
    return %c0_i32, %c0_i32_0, %c0_i32_1 : i32, i32, i32
  }
  func.func @transform_25(%arg0: i32) -> (i32, i32, i32) {
    %c0_i32 = arith.constant 0 : i32
    %c0_i32_0 = arith.constant 0 : i32
    %c0_i32_1 = arith.constant 0 : i32
    %c0_i32_2 = arith.constant 0 : i32
    return %c0_i32, %c0_i32_0, %c0_i32_1 : i32, i32, i32
  }
  func.func @transform_26(%arg0: i32) -> (i32, i32, i32) {
    %c0_i32 = arith.constant 0 : i32
    %c0_i32_0 = arith.constant 0 : i32
    %c0_i32_1 = arith.constant 0 : i32
    %c0_i32_2 = arith.constant 0 : i32
    return %c0_i32, %c0_i32_0, %c0_i32_1 : i32, i32, i32
  }
  func.func @transform_27(%arg0: i32) -> (i32, i32) {
    %c0_i32 = arith.constant 0 : i32
    %c0_i32_0 = arith.constant 0 : i32
    %c0_i32_1 = arith.constant 0 : i32
    return %c0_i32, %c0_i32_0 : i32, i32
  }
  func.func @transform_28(%arg0: i32) -> (i32, i32, i32) {
    %c0_i32 = arith.constant 0 : i32
    %c0_i32_0 = arith.constant 0 : i32
    %c0_i32_1 = arith.constant 0 : i32
    %c0_i32_2 = arith.constant 0 : i32
    return %c0_i32, %c0_i32_0, %c0_i32_1 : i32, i32, i32
  }
  func.func @transform_29(%arg0: i32) -> (i32, i32, i32) {
    %c0_i32 = arith.constant 0 : i32
    %c0_i32_0 = arith.constant 0 : i32
    %c0_i32_1 = arith.constant 0 : i32
    %c0_i32_2 = arith.constant 0 : i32
    return %c0_i32, %c0_i32_0, %c0_i32_1 : i32, i32, i32
  }
  func.func @transform_30(%arg0: i32) -> (i32, i32) {
    %c0_i32 = arith.constant 0 : i32
    %c0_i32_0 = arith.constant 0 : i32
    %c0_i32_1 = arith.constant 0 : i32
    return %c0_i32, %c0_i32_0 : i32, i32
  }
  func.func @transform_31(%arg0: i32) -> (i32, i32) {
    %c0_i32 = arith.constant 0 : i32
    %c0_i32_0 = arith.constant 0 : i32
    %c0_i32_1 = arith.constant 0 : i32
    return %c0_i32, %c0_i32_0 : i32, i32
  }
}

</mosaic_0001>

<llo_original>
// kernel: tile.48
$region0: #{tile.48}
  #allocation0 [shape = 's32[1]{0}', space=sflag, size = 0x4, scoped, tag = 'scoped memory for tile.48']
  %s0 = inlined_call_operand.vmem [shape: f32[16], index: 0, kind: input, shape index: {}]
  %s1 = inlined_call_operand.vmem [shape: f32[9,16], index: 1, kind: output, shape index: {}]
  // Predicated region
  $region2: #{tile.48} parent=0 // pred_check
    _
  $region3: #{tile.48} parent=0 // pred_check_branch
    %3 = sbr.rel (0) target = $region5
  $region4: #{tile.48} parent=0 // pred_region
    _
  $region5: #{tile.48} parent=0 // pred_fallthru
    _
  %v4 = vld [vmem:[%s0] ss:$0 sm:$0xff]
  %5 = vst [vmem:[%s1] sm:$0xff] %v4
  %s6 = scalar_lea.vmem %s1, 8
  %7 = vst [vmem:[%s6] sm:$0xff] %v4

// kernel: tile.49
$region0: #{tile.49}
  %s0 = inlined_call_operand.vmem [shape: f32[9,16], index: 0, kind: input, shape index: {}]
  %s1 = inlined_call_operand.vmem [shape: f32[1,144], index: 1, kind: output, shape index: {}]
  $region1: #{tile.49} parent=0
    #allocation0 [shape = 'u8[8192]{0}', space=vmem, size = 0x2000, scoped, tag = 'scoped mem for output reshape']
    %s2 = smov 3
    %v3 = vld [vmem:[%s0] ss:$8 sm:%s2]
    %vm4 = vcmask 130048
    %5 = vst.msk [vmem:[#allocation0] ss:$8 sm:$0x3] %vm4, %v3
    %s6 = scalar_lea.vmem %s0, 7
    %v7 = vld [vmem:[%s6] sm:$0x1]
    %8 = vrot.lane.b32.xlu0 %v7, 112
    %v9 = vpop.permute.xlu0 %8
    %vm10 = vcmask 1048448
    %11 = vst.msk [vmem:[#allocation0] sm:$0x1] %vm10, %v9
    %s12 = scalar_lea.vmem %s0, 6
    %v13 = vld [vmem:[%s12] sm:$0x1]
    %14 = vrot.lane.b32.xlu0 %v13, 96
    %v15 = vpop.permute.xlu0 %14
    %vm16 = vcmask 917248
    %17 = vst.msk [vmem:[#allocation0] sm:$0x1] %vm16, %v15
    %s18 = scalar_lea.vmem %s0, 5
    %v19 = vld [vmem:[%s18] sm:$0x1]
    %20 = vrot.lane.b32.xlu0 %v19, 80
    %v21 = vpop.permute.xlu0 %20
    %vm22 = vcmask 786048
    %23 = vst.msk [vmem:[#allocation0] sm:$0x1] %vm22, %v21
    %s24 = scalar_lea.vmem %s0, 4
    %v25 = vld [vmem:[%s24] sm:$0x1]
    %26 = vrot.lane.b32.xlu0 %v25, 64
    %v27 = vpop.permute.xlu0 %26
    %vm28 = vcmask 654848
    %29 = vst.msk [vmem:[#allocation0] sm:$0x1] %vm28, %v27
    %s30 = scalar_lea.vmem %s0, 3
    %v31 = vld [vmem:[%s30] sm:$0x1]
    %32 = vrot.lane.b32.xlu0 %v31, 48
    %v33 = vpop.permute.xlu0 %32
    %vm34 = vcmask 523648
    %35 = vst.msk [vmem:[#allocation0] sm:$0x1] %vm34, %v33
    %s36 = scalar_lea.vmem %s0, 2
    %v37 = vld [vmem:[%s36] sm:$0x1]
    %38 = vrot.lane.b32.xlu0 %v37, 32
    %v39 = vpop.permute.xlu0 %38
    %vm40 = vcmask 392448
    %41 = vst.msk [vmem:[#allocation0] sm:$0x1] %vm40, %v39
    %s42 = scalar_lea.vmem %s0, 1
    %v43 = vld [vmem:[%s42] sm:$0x1]
    %44 = vrot.lane.b32.xlu0 %v43, 16
    %v45 = vpop.permute.xlu0 %44
    %vm46 = vcmask 261248
    %47 = vst.msk [vmem:[#allocation0] sm:$0x1] %vm46, %v45
    %s49 = ssub.s32 2, 1
    %v50 = vld [vmem:[#allocation0] sm:%s49]
    %s52 = ssub.s32 2, 1
    %53 = vst [vmem:[%s1] sm:%s52] %v50
    %s54 = scalar_lea.vmem [#allocation0], 8
    %v55 = vld [vmem:[%s54] sm:%s49]
    %s57 = ssub.s32 2, 1
    %s58 = scalar_lea.vmem %s1, 1
    %59 = vst [vmem:[%s58] sm:%s57] %v55

// kernel: tile.53
$region0: #{tile.53}
  #allocation0 [shape = 's32[1]{0}', space=sflag, size = 0x4, scoped, tag = 'scoped memory for tile.53']
  %s0 = inlined_call_operand.vmem [shape: f32[16], index: 0, kind: input, shape index: {}]
  %s1 = inlined_call_operand.vmem [shape: f32[5,16], index: 1, kind: output, shape index: {}]
  // Predicated region
  $region2: #{tile.53} parent=0 // pred_check
    _
  $region3: #{tile.53} parent=0 // pred_check_branch
    %3 = sbr.rel (0) target = $region5
  $region4: #{tile.53} parent=0 // pred_region
    _
  $region5: #{tile.53} parent=0 // pred_fallthru
    _
  %v4 = vld [vmem:[%s0] ss:$0 sm:$0xff]
  %5 = vst [vmem:[%s1] sm:$0xff] %v4

// kernel: tile.54
$region0: #{tile.54}
  %s0 = inlined_call_operand.vmem [shape: f32[5,16], index: 0, kind: input, shape index: {}]
  %s1 = inlined_call_operand.vmem [shape: f32[1,80], index: 1, kind: output, shape index: {}]
  $region1: #{tile.54} parent=0
    #allocation0 [shape = 'u8[4096]{0}', space=vmem, size = 0x1000, scoped, tag = 'scoped mem for output reshape']
    %v2 = vld [vmem:[%s0] sm:$0x1]
    %vm3 = vcmask 130048
    %4 = vst.msk [vmem:[#allocation0] sm:$0x1] %vm3, %v2
    %s5 = scalar_lea.vmem %s0, 4
    %v6 = vld [vmem:[%s5] sm:$0x1]
    %7 = vrot.lane.b32.xlu0 %v6, 64
    %v8 = vpop.permute.xlu0 %7
    %vm9 = vcmask 654848
    %10 = vst.msk [vmem:[#allocation0] sm:$0x1] %vm9, %v8
    %s11 = scalar_lea.vmem %s0, 3
    %v12 = vld [vmem:[%s11] sm:$0x1]
    %13 = vrot.lane.b32.xlu0 %v12, 48
    %v14 = vpop.permute.xlu0 %13
    %vm15 = vcmask 523648
    %16 = vst.msk [vmem:[#allocation0] sm:$0x1] %vm15, %v14
    %s17 = scalar_lea.vmem %s0, 2
    %v18 = vld [vmem:[%s17] sm:$0x1]
    %19 = vrot.lane.b32.xlu0 %v18, 32
    %v20 = vpop.permute.xlu0 %19
    %vm21 = vcmask 392448
    %22 = vst.msk [vmem:[#allocation0] sm:$0x1] %vm21, %v20
    %s23 = scalar_lea.vmem %s0, 1
    %v24 = vld [vmem:[%s23] sm:$0x1]
    %25 = vrot.lane.b32.xlu0 %v24, 16
    %v26 = vpop.permute.xlu0 %25
    %vm27 = vcmask 261248
    %28 = vst.msk [vmem:[#allocation0] sm:$0x1] %vm27, %v26
    %s30 = ssub.s32 2, 1
    %v31 = vld [vmem:[#allocation0] sm:%s30]
    %s33 = ssub.s32 2, 1
    %34 = vst [vmem:[%s1] sm:%s33] %v31

// kernel: tile.58
$region0: #{tile.58}
  #allocation0 [shape = 's32[1]{0}', space=sflag, size = 0x4, scoped, tag = 'scoped memory for tile.58']
  %s0 = inlined_call_operand.vmem [shape: f32[16], index: 0, kind: input, shape index: {}]
  %s1 = inlined_call_operand.vmem [shape: f32[3,16], index: 1, kind: output, shape index: {}]
  // Predicated region
  $region2: #{tile.58} parent=0 // pred_check
    _
  $region3: #{tile.58} parent=0 // pred_check_branch
    %3 = sbr.rel (0) target = $region5
  $region4: #{tile.58} parent=0 // pred_region
    _
  $region5: #{tile.58} parent=0 // pred_fallthru
    _
  %v4 = vld [vmem:[%s0] ss:$0 sm:$0xff]
  %5 = vst [vmem:[%s1] sm:$0xf] %v4

// kernel: tile.59
$region0: #{tile.59}
  %s0 = inlined_call_operand.vmem [shape: f32[3,16], index: 0, kind: input, shape index: {}]
  %s1 = inlined_call_operand.vmem [shape: f32[1,48], index: 1, kind: output, shape index: {}]
  $region1: #{tile.59} parent=0
    #allocation0 [shape = 'u8[4096]{0}', space=vmem, size = 0x1000, scoped, tag = 'scoped mem for output reshape']
    #allocation1 [shape = 'u8[4096]{0}', space=vmem, size = 0x1000, scoped, tag = 'scoped mem for input reshape']
    %s3 = ssub.s32 16, 1
    %v4 = vld [vmem:[%s0] sm:%s3]
    %5 = vst [vmem:[#allocation1] sm:%s3] %v4
    %v6 = vld [vmem:[#allocation1] sm:$0x1]
    %vm7 = vcmask 130048
    %8 = vst.msk [vmem:[#allocation0] sm:$0x1] %vm7, %v6
    %s9 = scalar_lea.vmem [#allocation1], 2
    %v10 = vld [vmem:[%s9] sm:$0x1]
    %11 = vrot.lane.b32.xlu0 %v10, 32
    %v12 = vpop.permute.xlu0 %11
    %vm13 = vcmask 392448
    %14 = vst.msk [vmem:[#allocation0] sm:$0x1] %vm13, %v12
    %s15 = scalar_lea.vmem [#allocation1], 1
    %v16 = vld [vmem:[%s15] sm:$0x1]
    %17 = vrot.lane.b32.xlu0 %v16, 16
    %v18 = vpop.permute.xlu0 %17
    %vm19 = vcmask 261248
    %20 = vst.msk [vmem:[#allocation0] sm:$0x1] %vm19, %v18
    %s22 = ssub.s32 2, 1
    %v23 = vld [vmem:[#allocation0] sm:%s22]
    %s25 = ssub.s32 2, 1
    %26 = vst [vmem:[%s1] sm:%s25] %v23

// kernel: tile.63
$region0: #{tile.63}
  #allocation0 [shape = 's32[1]{0}', space=sflag, size = 0x4, scoped, tag = 'scoped memory for tile.63']
  %s0 = inlined_call_operand.vmem [shape: f32[16], index: 0, kind: input, shape index: {}]
  %s1 = inlined_call_operand.vmem [shape: f32[2,16], index: 1, kind: output, shape index: {}]
  // Predicated region
  $region2: #{tile.63} parent=0 // pred_check
    _
  $region3: #{tile.63} parent=0 // pred_check_branch
    %3 = sbr.rel (0) target = $region5
  $region4: #{tile.63} parent=0 // pred_region
    _
  $region5: #{tile.63} parent=0 // pred_fallthru
    _
  %v4 = vld [vmem:[%s0] ss:$0 sm:$0xff]
  %5 = vst [vmem:[%s1] sm:$0x3] %v4

// kernel: tile.64
$region0: #{tile.64}
  %s0 = inlined_call_operand.vmem [shape: f32[2,16], index: 0, kind: input, shape index: {}]
  %s1 = inlined_call_operand.vmem [shape: f32[1,32], index: 1, kind: output, shape index: {}]
  $region1: #{tile.64} parent=0
    #allocation0 [shape = 'u8[4096]{0}', space=vmem, size = 0x1000, scoped, tag = 'scoped mem for output reshape']
    #allocation1 [shape = 'u8[4096]{0}', space=vmem, size = 0x1000, scoped, tag = 'scoped mem for input reshape']
    %s3 = ssub.s32 4, 1
    %v4 = vld [vmem:[%s0] sm:%s3]
    %5 = vst [vmem:[#allocation1] sm:%s3] %v4
    %v6 = vld [vmem:[#allocation1] sm:$0x1]
    %vm7 = vcmask 130048
    %8 = vst.msk [vmem:[#allocation0] sm:$0x1] %vm7, %v6
    %s9 = scalar_lea.vmem [#allocation1], 1
    %v10 = vld [vmem:[%s9] sm:$0x1]
    %11 = vrot.lane.b32.xlu0 %v10, 16
    %v12 = vpop.permute.xlu0 %11
    %vm13 = vcmask 261248
    %14 = vst.msk [vmem:[#allocation0] sm:$0x1] %vm13, %v12
    %s16 = ssub.s32 2, 1
    %v17 = vld [vmem:[#allocation0] sm:%s16]
    %s19 = ssub.s32 2, 1
    %20 = vst [vmem:[%s1] sm:%s19] %v17

// kernel: relightnet_forward.1
$region0: #{relightnet_forward.1}
  #allocation0 [shape = 'u32[]', space=smem, size = 0x4, offset = 0x4, fixed_abs, tag = 'smem constant byte address 0x4 - core index']
  #allocation1 [shape = 'u32[72,128]{1,0:T(1,128)}', space=vmem, size = 0x9000, scoped, tag = 'internal scratch']
  %s0 = inlined_call_operand.smem [shape: u32[32], index: -1, kind: input, shape index: {}]
  %s1 = sld [smem:[%s0]]
  %s2 = scalar_lea.smem %s0, 1
  %s3 = sld [smem:[%s2]]
  %s4 = scalar_lea.smem %s0, 2
  %s5 = sld [smem:[%s4]]
  %s6 = scalar_lea.smem %s0, 3
  %s7 = sld [smem:[%s6]]
  %s8 = scalar_lea.smem %s0, 4
  %s9 = sld [smem:[%s8]]
  %s10 = scalar_lea.smem %s0, 5
  %s11 = sld [smem:[%s10]]
  %s12 = scalar_lea.smem %s0, 6
  %s13 = sld [smem:[%s12]]
  %s14 = scalar_lea.smem %s0, 7
  %s15 = sld [smem:[%s14]]
  %s16 = scalar_lea.smem %s0, 8
  %s17 = sld [smem:[%s16]]
  %s18 = scalar_lea.smem %s0, 9
  %s19 = sld [smem:[%s18]]
  %s20 = scalar_lea.smem %s0, 10
  %s21 = sld [smem:[%s20]]
  %s22 = scalar_lea.smem %s0, 11
  %s23 = sld [smem:[%s22]]
  %s24 = scalar_lea.smem %s0, 12
  %s25 = sld [smem:[%s24]]
  %s26 = scalar_lea.smem %s0, 13
  %s27 = sld [smem:[%s26]]
  %s28 = scalar_lea.smem %s0, 14
  %s29 = sld [smem:[%s28]]
  %s30 = scalar_lea.smem %s0, 15
  %s31 = sld [smem:[%s30]]
  %s32 = scalar_lea.smem %s0, 16
  %s33 = sld [smem:[%s32]]
  %s34 = scalar_lea.smem %s0, 17
  %s35 = sld [smem:[%s34]]
  %s36 = scalar_lea.smem %s0, 18
  %s37 = sld [smem:[%s36]]
  %s38 = scalar_lea.smem %s0, 19
  %s39 = sld [smem:[%s38]]
  %s40 = scalar_lea.smem %s0, 20
  %s41 = sld [smem:[%s40]]
  %s42 = scalar_lea.smem %s0, 21
  %s43 = sld [smem:[%s42]]
  %s44 = scalar_lea.smem %s0, 22
  %s45 = sld [smem:[%s44]]
  %s46 = scalar_lea.smem %s0, 23
  %s47 = sld [smem:[%s46]]
  %s48 = scalar_lea.smem %s0, 24
  %s49 = sld [smem:[%s48]]
  %s50 = scalar_lea.smem %s0, 25
  %s51 = sld [smem:[%s50]]
  %s52 = scalar_lea.smem %s0, 26
  %s53 = sld [smem:[%s52]]
  %s54 = scalar_lea.smem %s0, 27
  %s55 = sld [smem:[%s54]]
  %s56 = scalar_lea.smem %s0, 28
  %s57 = sld [smem:[%s56]]
  %s58 = scalar_lea.smem %s0, 29
  %s59 = sld [smem:[%s58]]
  %s60 = scalar_lea.smem %s0, 30
  %s61 = sld [smem:[%s60]]
  %s62 = scalar_lea.smem %s0, 31
  %s63 = sld [smem:[%s62]]
  %s64 = sld [smem:[#allocation0]]
  $region134: #{relightnet_forward.1} parent=0
    _
  %s66 = ssub.s32 1, %s64
  %s67 = scalar_select 0, %s66, %s64
  // Predicated region
  $region2: #{relightnet_forward.1} parent=0 // pred_check
    _
  $region3: #{relightnet_forward.1} parent=0 // pred_check_branch
    %69 = sbr.rel (0) target = $region5
  $region4: #{relightnet_forward.1} parent=0 // pred_region
    _
  $region5: #{relightnet_forward.1} parent=0 // pred_fallthru
    _
  // Predicated region
  $region6: #{relightnet_forward.1} parent=0 // pred_check
    _
  $region7: #{relightnet_forward.1} parent=0 // pred_check_branch
    %71 = sbr.rel (0) target = $region9
  $region8: #{relightnet_forward.1} parent=0 // pred_region
    _
  $region9: #{relightnet_forward.1} parent=0 // pred_fallthru
    _
  // Predicated region
  $region10: #{relightnet_forward.1} parent=0 // pred_check
    _
  $region11: #{relightnet_forward.1} parent=0 // pred_check_branch
    %73 = sbr.rel (0) target = $region13
  $region12: #{relightnet_forward.1} parent=0 // pred_region
    _
  $region13: #{relightnet_forward.1} parent=0 // pred_fallthru
    _
  // Predicated region
  $region14: #{relightnet_forward.1} parent=0 // pred_check
    _
  $region15: #{relightnet_forward.1} parent=0 // pred_check_branch
    %75 = sbr.rel (0) target = $region17
  $region16: #{relightnet_forward.1} parent=0 // pred_region
    _
  $region17: #{relightnet_forward.1} parent=0 // pred_fallthru
    _
  // Predicated region
  $region18: #{relightnet_forward.1} parent=0 // pred_check
    _
  $region19: #{relightnet_forward.1} parent=0 // pred_check_branch
    %77 = sbr.rel (0) target = $region21
  $region20: #{relightnet_forward.1} parent=0 // pred_region
    _
  $region21: #{relightnet_forward.1} parent=0 // pred_fallthru
    _
  // Predicated region
  $region22: #{relightnet_forward.1} parent=0 // pred_check
    _
  $region23: #{relightnet_forward.1} parent=0 // pred_check_branch
    %79 = sbr.rel (0) target = $region25
  $region24: #{relightnet_forward.1} parent=0 // pred_region
    _
  $region25: #{relightnet_forward.1} parent=0 // pred_fallthru
    _
  // Predicated region
  $region26: #{relightnet_forward.1} parent=0 // pred_check
    _
  $region27: #{relightnet_forward.1} parent=0 // pred_check_branch
    %81 = sbr.rel (0) target = $region29
  $region28: #{relightnet_forward.1} parent=0 // pred_region
    _
  $region29: #{relightnet_forward.1} parent=0 // pred_fallthru
    _
  // Predicated region
  $region30: #{relightnet_forward.1} parent=0 // pred_check
    _
  $region31: #{relightnet_forward.1} parent=0 // pred_check_branch
    %83 = sbr.rel (0) target = $region33
  $region32: #{relightnet_forward.1} parent=0 // pred_region
    _
  $region33: #{relightnet_forward.1} parent=0 // pred_fallthru
    _
  // Predicated region
  $region34: #{relightnet_forward.1} parent=0 // pred_check
    _
  $region35: #{relightnet_forward.1} parent=0 // pred_check_branch
    %85 = sbr.rel (0) target = $region37
  $region36: #{relightnet_forward.1} parent=0 // pred_region
    _
  $region37: #{relightnet_forward.1} parent=0 // pred_fallthru
    _
  // Predicated region
  $region38: #{relightnet_forward.1} parent=0 // pred_check
    _
  $region39: #{relightnet_forward.1} parent=0 // pred_check_branch
    %87 = sbr.rel (0) target = $region41
  $region40: #{relightnet_forward.1} parent=0 // pred_region
    _
  $region41: #{relightnet_forward.1} parent=0 // pred_fallthru
    _
  // Predicated region
  $region42: #{relightnet_forward.1} parent=0 // pred_check
    _
  $region43: #{relightnet_forward.1} parent=0 // pred_check_branch
    %89 = sbr.rel (0) target = $region45
  $region44: #{relightnet_forward.1} parent=0 // pred_region
    _
  $region45: #{relightnet_forward.1} parent=0 // pred_fallthru
    _
  // Predicated region
  $region46: #{relightnet_forward.1} parent=0 // pred_check
    _
  $region47: #{relightnet_forward.1} parent=0 // pred_check_branch
    %91 = sbr.rel (0) target = $region49
  $region48: #{relightnet_forward.1} parent=0 // pred_region
    _
  $region49: #{relightnet_forward.1} parent=0 // pred_fallthru
    _
  // Predicated region
  $region50: #{relightnet_forward.1} parent=0 // pred_check
    _
  $region51: #{relightnet_forward.1} parent=0 // pred_check_branch
    %93 = sbr.rel (0) target = $region53
  $region52: #{relightnet_forward.1} parent=0 // pred_region
    _
  $region53: #{relightnet_forward.1} parent=0 // pred_fallthru
    _
  // Predicated region
  $region54: #{relightnet_forward.1} parent=0 // pred_check
    _
  $region55: #{relightnet_forward.1} parent=0 // pred_check_branch
    %95 = sbr.rel (0) target = $region57
  $region56: #{relightnet_forward.1} parent=0 // pred_region
    _
  $region57: #{relightnet_forward.1} parent=0 // pred_fallthru
    _
  // Predicated region
  $region58: #{relightnet_forward.1} parent=0 // pred_check
    _
  $region59: #{relightnet_forward.1} parent=0 // pred_check_branch
    %97 = sbr.rel (0) target = $region61
  $region60: #{relightnet_forward.1} parent=0 // pred_region
    _
  $region61: #{relightnet_forward.1} parent=0 // pred_fallthru
    _
  // Predicated region
  $region62: #{relightnet_forward.1} parent=0 // pred_check
    _
  $region63: #{relightnet_forward.1} parent=0 // pred_check_branch
    %99 = sbr.rel (0) target = $region65
  $region64: #{relightnet_forward.1} parent=0 // pred_region
    _
  $region65: #{relightnet_forward.1} parent=0 // pred_fallthru
    _
  // Predicated region
  $region66: #{relightnet_forward.1} parent=0 // pred_check
    _
  $region67: #{relightnet_forward.1} parent=0 // pred_check_branch
    %101 = sbr.rel (0) target = $region69
  $region68: #{relightnet_forward.1} parent=0 // pred_region
    _
  $region69: #{relightnet_forward.1} parent=0 // pred_fallthru
    _
  // Predicated region
  $region70: #{relightnet_forward.1} parent=0 // pred_check
    _
  $region71: #{relightnet_forward.1} parent=0 // pred_check_branch
    %103 = sbr.rel (0) target = $region73
  $region72: #{relightnet_forward.1} parent=0 // pred_region
    _
  $region73: #{relightnet_forward.1} parent=0 // pred_fallthru
    _
  // Predicated region
  $region74: #{relightnet_forward.1} parent=0 // pred_check
    _
  $region75: #{relightnet_forward.1} parent=0 // pred_check_branch
    %105 = sbr.rel (0) target = $region77
  $region76: #{relightnet_forward.1} parent=0 // pred_region
    _
  $region77: #{relightnet_forward.1} parent=0 // pred_fallthru
    _
  // Predicated region
  $region78: #{relightnet_forward.1} parent=0 // pred_check
    _
  $region79: #{relightnet_forward.1} parent=0 // pred_check_branch
    %107 = sbr.rel (0) target = $region81
  $region80: #{relightnet_forward.1} parent=0 // pred_region
    _
  $region81: #{relightnet_forward.1} parent=0 // pred_fallthru
    _
  // Predicated region
  $region82: #{relightnet_forward.1} parent=0 // pred_check
    _
  $region83: #{relightnet_forward.1} parent=0 // pred_check_branch
    %109 = sbr.rel (0) target = $region85
  $region84: #{relightnet_forward.1} parent=0 // pred_region
    _
  $region85: #{relightnet_forward.1} parent=0 // pred_fallthru
    _
  // Predicated region
  $region86: #{relightnet_forward.1} parent=0 // pred_check
    _
  $region87: #{relightnet_forward.1} parent=0 // pred_check_branch
    %111 = sbr.rel (0) target = $region89
  $region88: #{relightnet_forward.1} parent=0 // pred_region
    _
  $region89: #{relightnet_forward.1} parent=0 // pred_fallthru
    _
  // Predicated region
  $region90: #{relightnet_forward.1} parent=0 // pred_check
    _
  $region91: #{relightnet_forward.1} parent=0 // pred_check_branch
    %113 = sbr.rel (0) target = $region93
  $region92: #{relightnet_forward.1} parent=0 // pred_region
    _
  $region93: #{relightnet_forward.1} parent=0 // pred_fallthru
    _
  // Predicated region
  $region94: #{relightnet_forward.1} parent=0 // pred_check
    _
  $region95: #{relightnet_forward.1} parent=0 // pred_check_branch
    %115 = sbr.rel (0) target = $region97
  $region96: #{relightnet_forward.1} parent=0 // pred_region
    _
  $region97: #{relightnet_forward.1} parent=0 // pred_fallthru
    _
  // Predicated region
  $region98: #{relightnet_forward.1} parent=0 // pred_check
    _
  $region99: #{relightnet_forward.1} parent=0 // pred_check_branch
    %117 = sbr.rel (0) target = $region101
  $region100: #{relightnet_forward.1} parent=0 // pred_region
    _
  $region101: #{relightnet_forward.1} parent=0 // pred_fallthru
    _
  // Predicated region
  $region102: #{relightnet_forward.1} parent=0 // pred_check
    _
  $region103: #{relightnet_forward.1} parent=0 // pred_check_branch
    %119 = sbr.rel (0) target = $region105
  $region104: #{relightnet_forward.1} parent=0 // pred_region
    _
  $region105: #{relightnet_forward.1} parent=0 // pred_fallthru
    _
  // Predicated region
  $region106: #{relightnet_forward.1} parent=0 // pred_check
    _
  $region107: #{relightnet_forward.1} parent=0 // pred_check_branch
    %121 = sbr.rel (0) target = $region109
  $region108: #{relightnet_forward.1} parent=0 // pred_region
    _
  $region109: #{relightnet_forward.1} parent=0 // pred_fallthru
    _
  // Predicated region
  $region110: #{relightnet_forward.1} parent=0 // pred_check
    _
  $region111: #{relightnet_forward.1} parent=0 // pred_check_branch
    %123 = sbr.rel (0) target = $region113
  $region112: #{relightnet_forward.1} parent=0 // pred_region
    _
  $region113: #{relightnet_forward.1} parent=0 // pred_fallthru
    _
  // Predicated region
  $region114: #{relightnet_forward.1} parent=0 // pred_check
    _
  $region115: #{relightnet_forward.1} parent=0 // pred_check_branch
    %125 = sbr.rel (0) target = $region117
  $region116: #{relightnet_forward.1} parent=0 // pred_region
    _
  $region117: #{relightnet_forward.1} parent=0 // pred_fallthru
    _
  // Predicated region
  $region118: #{relightnet_forward.1} parent=0 // pred_check
    _
  $region119: #{relightnet_forward.1} parent=0 // pred_check_branch
    %127 = sbr.rel (0) target = $region121
  $region120: #{relightnet_forward.1} parent=0 // pred_region
    _
  $region121: #{relightnet_forward.1} parent=0 // pred_fallthru
    _
  // Predicated region
  $region122: #{relightnet_forward.1} parent=0 // pred_check
    _
  $region123: #{relightnet_forward.1} parent=0 // pred_check_branch
    %129 = sbr.rel (0) target = $region125
  $region124: #{relightnet_forward.1} parent=0 // pred_region
    _
  $region125: #{relightnet_forward.1} parent=0 // pred_fallthru
    _
  %v130 = vld [vmem:[%s1] sm:$0xff]
  %v131 = vld [vmem:[%s1 + $0x8] sm:$0xff]
  %v132 = vld [vmem:[%s1 + $0x10] sm:$0x3]
  %v133 = vld [vmem:[%s3] sm:$0xff]
  %v134 = vld [vmem:[%s3 + $0x8] sm:$0xff]
  %v135 = vld [vmem:[%s3 + $0x10] sm:$0x3]
  %vm136 = vcmask 146432
  %v138 = vsel %vm136, %v133, 0
  %v141 = vsel %vm136, %v134, 0
  %v144 = vsel %vm136, %v135, 0
  %vm146 = vcmask 1041408
  %v148 = vsel %vm146, %v132, 0
  %150 = vmatpush.msra.mxu0 0.0
  %151 = vmatpush.msra.mxu0 0.0
  %152 = vmatpush.msra.mxu0 0.0
  %153 = vmatpush.msra.mxu0 0.0
  %154 = vmatpush.msra.mxu0 0.0
  %155 = vmatpush.msra.mxu0 0.0
  %156 = vmatpush.msra.mxu0 0.0
  %157 = vmatpush.msra.mxu0 0.0
  %158 = vmatpush.msra.mxu0 0.0
  %159 = vmatpush.msra.mxu0 0.0
  %160 = vmatpush.msra.mxu0 0.0
  %161 = vmatpush.msra.mxu0 0.0
  %162 = vmatpush.msra.mxu0 0.0
  %163 = vmatpush.msra.mxu0 %v148
  %164 = vmatpush.msra.mxu0 %v131
  %165 = vmatpush.msra.mxu0 %v130
  %166 = vmatmul.f32.gmra.mxu0 %v138
  %v167 = vpop.f32.mrf.mxu0
  %v168 = vadd.f32 0.0, %v167
  %169 = vmatmul.f32.gmra.mxu0 %v141
  %v170 = vpop.f32.mrf.mxu0
  %v171 = vadd.f32 0.0, %v170
  %172 = vmatmul.f32.gmra.mxu0 %v144
  %v173 = vpop.f32.mrf.mxu0
  %v174 = vadd.f32 0.0, %v173
  %175 = vdwg.mxu0
  %v176 = vld [vmem:[%s5] sm:$0xff]
  %v177 = vld [vmem:[%s5 + $0x8] sm:$0xff]
  %v178 = vld [vmem:[%s5 + $0x10] sm:$0xff]
  %v179 = vld [vmem:[%s5 + $0x18] sm:$0xff]
  %v180 = vld [vmem:[%s5 + $0x20] sm:$0xff]
  %v181 = vld [vmem:[%s5 + $0x28] sm:$0xff]
  %v182 = vld [vmem:[%s5 + $0x30] sm:$0xff]
  %v183 = vld [vmem:[%s5 + $0x38] sm:$0xff]
  %v184 = vld [vmem:[%s5 + $0x40] sm:$0xf]
  %v185 = vld [vmem:[%s5 + $0x48] sm:$0xf]
  %s186 = scalar_lea.vmem %s3, 24
  %v187 = vld [vmem:[%s186] sm:$0xff]
  %v188 = vld [vmem:[%s186 + $0x8] sm:$0xff]
  %v189 = vld [vmem:[%s186 + $0x10] sm:$0x3]
  %v191 = vsel %vm136, %v187, 0
  %v194 = vsel %vm136, %v188, 0
  %v197 = vsel %vm136, %v189, 0
  %199 = vmatpush.msra.mxu0 0.0
  %200 = vmatpush.msra.mxu0 0.0
  %201 = vmatpush.msra.mxu0 0.0
  %202 = vmatpush.msra.mxu0 0.0
  %203 = vmatpush.msra.mxu0 0.0
  %204 = vmatpush.msra.mxu0 0.0
  %205 = vmatpush.msra.mxu0 0.0
  %206 = vmatpush.msra.mxu0 0.0
  %207 = vmatpush.msra.mxu0 0.0
  %208 = vmatpush.msra.mxu0 0.0
  %209 = vmatpush.msra.mxu0 0.0
  %210 = vmatpush.msra.mxu0 0.0
  %211 = vmatpush.msra.mxu0 0.0
  %212 = vmatpush.msra.mxu0 %v148
  %213 = vmatpush.msra.mxu0 %v131
  %214 = vmatpush.msra.mxu0 %v130
  %215 = vmatmul.f32.gmra.mxu0 %v191
  %v216 = vpop.f32.mrf.mxu0
  %v217 = vadd.f32 0.0, %v216
  %218 = vmatmul.f32.gmra.mxu0 %v194
  %v219 = vpop.f32.mrf.mxu0
  %v220 = vadd.f32 0.0, %v219
  %221 = vmatmul.f32.gmra.mxu0 %v197
  %v222 = vpop.f32.mrf.mxu0
  %v223 = vadd.f32 0.0, %v222
  %224 = vdwg.mxu0
  %s225 = scalar_lea.vmem %s5, 80
  %v226 = vld [vmem:[%s225] sm:$0xff]
  %v227 = vld [vmem:[%s225 + $0x8] sm:$0xff]
  %v228 = vld [vmem:[%s225 + $0x10] sm:$0xff]
  %v229 = vld [vmem:[%s225 + $0x18] sm:$0xff]
  %v230 = vld [vmem:[%s225 + $0x20] sm:$0xff]
  %v231 = vld [vmem:[%s225 + $0x28] sm:$0xff]
  %v232 = vld [vmem:[%s225 + $0x30] sm:$0xff]
  %v233 = vld [vmem:[%s225 + $0x38] sm:$0xff]
  %v234 = vld [vmem:[%s225 + $0x40] sm:$0xf]
  %v235 = vld [vmem:[%s225 + $0x48] sm:$0xf]
  %vm236 = vcmask 293888
  %v238 = vsel %vm236, %v217, 0
  %v241 = vsel %vm236, %v220, 0
  %v244 = vsel %vm236, %v223, 0
  %vm246 = vcmask 1043456
  %v248 = vsel %vm246, %v234, 0
  %v251 = vsel %vm246, %v235, 0
  %253 = vmatpush.msra.mxu0 0.0
  %254 = vmatpush.msra.mxu0 0.0
  %255 = vmatpush.msra.mxu0 0.0
  %256 = vmatpush.msra.mxu0 0.0
  %257 = vmatpush.msra.mxu0 0.0
  %258 = vmatpush.msra.mxu0 0.0
  %259 = vmatpush.msra.mxu0 0.0
  %260 = vmatpush.msra.mxu0 0.0
  %261 = vmatpush.msra.mxu0 0.0
  %262 = vmatpush.msra.mxu0 0.0
  %263 = vmatpush.msra.mxu0 0.0
  %264 = vmatpush.msra.mxu0 %v248
  %265 = vmatpush.msra.mxu0 %v232
  %266 = vmatpush.msra.mxu0 %v230
  %267 = vmatpush.msra.mxu0 %v228
  %268 = vmatpush.msra.mxu0 %v226
  %269 = vmatmul.f32.gmra.mxu0 %v238
  %v270 = vpop.f32.mrf.mxu0
  %v271 = vadd.f32 0.0, %v270
  %272 = vmatmul.f32.gmra.mxu0 %v241
  %v273 = vpop.f32.mrf.mxu0
  %v274 = vadd.f32 0.0, %v273
  %275 = vmatmul.f32.gmra.mxu0 %v244
  %v276 = vpop.f32.mrf.mxu0
  %v277 = vadd.f32 0.0, %v276
  %278 = vdwg.mxu0
  %279 = vmatpush.msra.mxu0 0.0
  %280 = vmatpush.msra.mxu0 0.0
  %281 = vmatpush.msra.mxu0 0.0
  %282 = vmatpush.msra.mxu0 0.0
  %283 = vmatpush.msra.mxu0 0.0
  %284 = vmatpush.msra.mxu0 0.0
  %285 = vmatpush.msra.mxu0 0.0
  %286 = vmatpush.msra.mxu0 0.0
  %287 = vmatpush.msra.mxu0 0.0
  %288 = vmatpush.msra.mxu0 0.0
  %289 = vmatpush.msra.mxu0 0.0
  %290 = vmatpush.msra.mxu0 %v251
  %291 = vmatpush.msra.mxu0 %v233
  %292 = vmatpush.msra.mxu0 %v231
  %293 = vmatpush.msra.mxu0 %v229
  %294 = vmatpush.msra.mxu0 %v227
  %295 = vmatmul.f32.gmra.mxu0 %v238
  %v296 = vpop.f32.mrf.mxu0
  %v297 = vadd.f32 0.0, %v296
  %298 = vmatmul.f32.gmra.mxu0 %v241
  %v299 = vpop.f32.mrf.mxu0
  %v300 = vadd.f32 0.0, %v299
  %301 = vmatmul.f32.gmra.mxu0 %v244
  %v302 = vpop.f32.mrf.mxu0
  %v303 = vadd.f32 0.0, %v302
  %304 = vdwg.mxu0
  %v306 = vsel %vm236, %v168, 0
  %v309 = vsel %vm236, %v171, 0
  %v312 = vsel %vm236, %v174, 0
  %v315 = vsel %vm246, %v184, 0
  %v318 = vsel %vm246, %v185, 0
  %320 = vmatpush.msra.mxu0 0.0
  %321 = vmatpush.msra.mxu0 0.0
  %322 = vmatpush.msra.mxu0 0.0
  %323 = vmatpush.msra.mxu0 0.0
  %324 = vmatpush.msra.mxu0 0.0
  %325 = vmatpush.msra.mxu0 0.0
  %326 = vmatpush.msra.mxu0 0.0
  %327 = vmatpush.msra.mxu0 0.0
  %328 = vmatpush.msra.mxu0 0.0
  %329 = vmatpush.msra.mxu0 0.0
  %330 = vmatpush.msra.mxu0 0.0
  %331 = vmatpush.msra.mxu0 %v315
  %332 = vmatpush.msra.mxu0 %v182
  %333 = vmatpush.msra.mxu0 %v180
  %334 = vmatpush.msra.mxu0 %v178
  %335 = vmatpush.msra.mxu0 %v176
  %336 = vmatmul.f32.gmra.mxu0 %v306
  %v337 = vpop.f32.mrf.mxu0
  %v338 = vadd.f32 %v271, %v337
  %339 = vmatmul.f32.gmra.mxu0 %v309
  %v340 = vpop.f32.mrf.mxu0
  %v341 = vadd.f32 %v274, %v340
  %342 = vmatmul.f32.gmra.mxu0 %v312
  %v343 = vpop.f32.mrf.mxu0
  %v344 = vadd.f32 %v277, %v343
  %345 = vdwg.mxu0
  %346 = vmatpush.msra.mxu0 0.0
  %347 = vmatpush.msra.mxu0 0.0
  %348 = vmatpush.msra.mxu0 0.0
  %349 = vmatpush.msra.mxu0 0.0
  %350 = vmatpush.msra.mxu0 0.0
  %351 = vmatpush.msra.mxu0 0.0
  %352 = vmatpush.msra.mxu0 0.0
  %353 = vmatpush.msra.mxu0 0.0
  %354 = vmatpush.msra.mxu0 0.0
  %355 = vmatpush.msra.mxu0 0.0
  %356 = vmatpush.msra.mxu0 0.0
  %357 = vmatpush.msra.mxu0 %v318
  %358 = vmatpush.msra.mxu0 %v183
  %359 = vmatpush.msra.mxu0 %v181
  %360 = vmatpush.msra.mxu0 %v179
  %361 = vmatpush.msra.mxu0 %v177
  %362 = vmatmul.f32.gmra.mxu0 %v306
  %v363 = vpop.f32.mrf.mxu0
  %v364 = vadd.f32 %v297, %v363
  %365 = vmatmul.f32.gmra.mxu0 %v309
  %v366 = vpop.f32.mrf.mxu0
  %v367 = vadd.f32 %v300, %v366
  %368 = vmatmul.f32.gmra.mxu0 %v312
  %v369 = vpop.f32.mrf.mxu0
  %v370 = vadd.f32 %v303, %v369
  %371 = vdwg.mxu0
  %s372 = scalar_lea.vmem %s3, 48
  %v373 = vld [vmem:[%s372] sm:$0xff]
  %v374 = vld [vmem:[%s372 + $0x8] sm:$0xff]
  %v375 = vld [vmem:[%s372 + $0x10] sm:$0x3]
  %v377 = vsel %vm136, %v373, 0
  %v380 = vsel %vm136, %v374, 0
  %v383 = vsel %vm136, %v375, 0
  %385 = vmatpush.msra.mxu0 0.0
  %386 = vmatpush.msra.mxu0 0.0
  %387 = vmatpush.msra.mxu0 0.0
  %388 = vmatpush.msra.mxu0 0.0
  %389 = vmatpush.msra.mxu0 0.0
  %390 = vmatpush.msra.mxu0 0.0
  %391 = vmatpush.msra.mxu0 0.0
  %392 = vmatpush.msra.mxu0 0.0
  %393 = vmatpush.msra.mxu0 0.0
  %394 = vmatpush.msra.mxu0 0.0
  %395 = vmatpush.msra.mxu0 0.0
  %396 = vmatpush.msra.mxu0 0.0
  %397 = vmatpush.msra.mxu0 0.0
  %398 = vmatpush.msra.mxu0 %v148
  %399 = vmatpush.msra.mxu0 %v131
  %400 = vmatpush.msra.mxu0 %v130
  %401 = vmatmul.f32.gmra.mxu0 %v377
  %v402 = vpop.f32.mrf.mxu0
  %v403 = vadd.f32 0.0, %v402
  %404 = vmatmul.f32.gmra.mxu0 %v380
  %v405 = vpop.f32.mrf.mxu0
  %v406 = vadd.f32 0.0, %v405
  %407 = vmatmul.f32.gmra.mxu0 %v383
  %v408 = vpop.f32.mrf.mxu0
  %v409 = vadd.f32 0.0, %v408
  %410 = vdwg.mxu0
  %s411 = scalar_lea.vmem %s5, 160
  %v412 = vld [vmem:[%s411] sm:$0xff]
  %v413 = vld [vmem:[%s411 + $0x8] sm:$0xff]
  %v414 = vld [vmem:[%s411 + $0x10] sm:$0xff]
  %v415 = vld [vmem:[%s411 + $0x18] sm:$0xff]
  %v416 = vld [vmem:[%s411 + $0x20] sm:$0xff]
  %v417 = vld [vmem:[%s411 + $0x28] sm:$0xff]
  %v418 = vld [vmem:[%s411 + $0x30] sm:$0xff]
  %v419 = vld [vmem:[%s411 + $0x38] sm:$0xff]
  %v420 = vld [vmem:[%s411 + $0x40] sm:$0xf]
  %v421 = vld [vmem:[%s411 + $0x48] sm:$0xf]
  %v423 = vsel %vm236, %v403, 0
  %v426 = vsel %vm236, %v406, 0
  %v429 = vsel %vm236, %v409, 0
  %v432 = vsel %vm246, %v420, 0
  %v435 = vsel %vm246, %v421, 0
  %437 = vmatpush.msra.mxu0 0.0
  %438 = vmatpush.msra.mxu0 0.0
  %439 = vmatpush.msra.mxu0 0.0
  %440 = vmatpush.msra.mxu0 0.0
  %441 = vmatpush.msra.mxu0 0.0
  %442 = vmatpush.msra.mxu0 0.0
  %443 = vmatpush.msra.mxu0 0.0
  %444 = vmatpush.msra.mxu0 0.0
  %445 = vmatpush.msra.mxu0 0.0
  %446 = vmatpush.msra.mxu0 0.0
  %447 = vmatpush.msra.mxu0 0.0
  %448 = vmatpush.msra.mxu0 %v432
  %449 = vmatpush.msra.mxu0 %v418
  %450 = vmatpush.msra.mxu0 %v416
  %451 = vmatpush.msra.mxu0 %v414
  %452 = vmatpush.msra.mxu0 %v412
  %453 = vmatmul.f32.gmra.mxu0 %v423
  %v454 = vpop.f32.mrf.mxu0
  %v455 = vadd.f32 0.0, %v454
  %456 = vmatmul.f32.gmra.mxu0 %v426
  %v457 = vpop.f32.mrf.mxu0
  %v458 = vadd.f32 0.0, %v457
  %459 = vmatmul.f32.gmra.mxu0 %v429
  %v460 = vpop.f32.mrf.mxu0
  %v461 = vadd.f32 0.0, %v460
  %462 = vdwg.mxu0
  %463 = vmatpush.msra.mxu0 0.0
  %464 = vmatpush.msra.mxu0 0.0
  %465 = vmatpush.msra.mxu0 0.0
  %466 = vmatpush.msra.mxu0 0.0
  %467 = vmatpush.msra.mxu0 0.0
  %468 = vmatpush.msra.mxu0 0.0
  %469 = vmatpush.msra.mxu0 0.0
  %470 = vmatpush.msra.mxu0 0.0
  %471 = vmatpush.msra.mxu0 0.0
  %472 = vmatpush.msra.mxu0 0.0
  %473 = vmatpush.msra.mxu0 0.0
  %474 = vmatpush.msra.mxu0 %v435
  %475 = vmatpush.msra.mxu0 %v419
  %476 = vmatpush.msra.mxu0 %v417
  %477 = vmatpush.msra.mxu0 %v415
  %478 = vmatpush.msra.mxu0 %v413
  %479 = vmatmul.f32.gmra.mxu0 %v423
  %v480 = vpop.f32.mrf.mxu0
  %v481 = vadd.f32 0.0, %v480
  %482 = vmatmul.f32.gmra.mxu0 %v426
  %v483 = vpop.f32.mrf.mxu0
  %v484 = vadd.f32 0.0, %v483
  %485 = vmatmul.f32.gmra.mxu0 %v429
  %v486 = vpop.f32.mrf.mxu0
  %v487 = vadd.f32 0.0, %v486
  %488 = vdwg.mxu0
  %v489 = vadd.f32 %v338, %v455
  %v490 = vadd.f32 %v364, %v481
  %v491 = vadd.f32 %v341, %v458
  %v492 = vadd.f32 %v367, %v484
  %v493 = vadd.f32 %v344, %v461
  %v494 = vadd.f32 %v370, %v487
  %v495 = vld [vmem:[%s7] sm:$0x3]
  %v497 = vperm.slane %v495, 0
  %v498 = vperm.slane %v495, 1
  %v501 = vadd.f32 %v489, %v497
  %v502 = vadd.f32 %v490, %v498
  %v503 = vadd.f32 %v491, %v497
  %v504 = vadd.f32 %v492, %v498
  %v505 = vadd.f32 %v493, %v497
  %v506 = vadd.f32 %v494, %v498
  %v507 = vld [vmem:[%s9] sm:$0xff]
  %v508 = vld [vmem:[%s9 + $0x8] sm:$0x3]
  %v510 = vsel %vm136, %v507, 0
  %v513 = vsel %vm136, %v508, 0
  %v516 = vsel %vm146, %v505, 0
  %v519 = vsel %vm146, %v506, 0
  %521 = vmatpush.msra.mxu0 0.0
  %522 = vmatpush.msra.mxu0 0.0
  %523 = vmatpush.msra.mxu0 0.0
  %524 = vmatpush.msra.mxu0 0.0
  %525 = vmatpush.msra.mxu0 0.0
  %526 = vmatpush.msra.mxu0 0.0
  %527 = vmatpush.msra.mxu0 0.0
  %528 = vmatpush.msra.mxu0 0.0
  %529 = vmatpush.msra.mxu0 0.0
  %530 = vmatpush.msra.mxu0 0.0
  %531 = vmatpush.msra.mxu0 0.0
  %532 = vmatpush.msra.mxu0 0.0
  %533 = vmatpush.msra.mxu0 0.0
  %534 = vmatpush.msra.mxu0 %v516
  %535 = vmatpush.msra.mxu0 %v503
  %536 = vmatpush.msra.mxu0 %v501
  %537 = vmatmul.f32.gmra.mxu0 %v510
  %v538 = vpop.f32.mrf.mxu0
  %v539 = vadd.f32 0.0, %v538
  %540 = vmatmul.f32.gmra.mxu0 %v513
  %v541 = vpop.f32.mrf.mxu0
  %v542 = vadd.f32 0.0, %v541
  %543 = vdwg.mxu0
  %544 = vmatpush.msra.mxu0 0.0
  %545 = vmatpush.msra.mxu0 0.0
  %546 = vmatpush.msra.mxu0 0.0
  %547 = vmatpush.msra.mxu0 0.0
  %548 = vmatpush.msra.mxu0 0.0
  %549 = vmatpush.msra.mxu0 0.0
  %550 = vmatpush.msra.mxu0 0.0
  %551 = vmatpush.msra.mxu0 0.0
  %552 = vmatpush.msra.mxu0 0.0
  %553 = vmatpush.msra.mxu0 0.0
  %554 = vmatpush.msra.mxu0 0.0
  %555 = vmatpush.msra.mxu0 0.0
  %556 = vmatpush.msra.mxu0 0.0
  %557 = vmatpush.msra.mxu0 %v519
  %558 = vmatpush.msra.mxu0 %v504
  %559 = vmatpush.msra.mxu0 %v502
  %560 = vmatmul.f32.gmra.mxu0 %v510
  %v561 = vpop.f32.mrf.mxu0
  %v562 = vadd.f32 0.0, %v561
  %563 = vmatmul.f32.gmra.mxu0 %v513
  %v564 = vpop.f32.mrf.mxu0
  %v565 = vadd.f32 0.0, %v564
  %566 = vdwg.mxu0
  %v567 = vld [vmem:[%s11] sm:$0xff]
  %v568 = vld [vmem:[%s11 + $0x8] sm:$0xff]
  %v569 = vld [vmem:[%s11 + $0x10] sm:$0xff]
  %v570 = vld [vmem:[%s11 + $0x18] sm:$0xff]
  %v571 = vld [vmem:[%s11 + $0x20] sm:$0xff]
  %v572 = vld [vmem:[%s11 + $0x28] sm:$0xff]
  %v573 = vld [vmem:[%s11 + $0x30] sm:$0xff]
  %v574 = vld [vmem:[%s11 + $0x38] sm:$0xff]
  %v575 = vld [vmem:[%s11 + $0x40] sm:$0xff]
  %v576 = vld [vmem:[%s11 + $0x48] sm:$0xff]
  %v577 = vld [vmem:[%s11 + $0x50] sm:$0xff]
  %v578 = vld [vmem:[%s11 + $0x58] sm:$0xff]
  %v579 = vld [vmem:[%s11 + $0x60] sm:$0xff]
  %v580 = vld [vmem:[%s11 + $0x68] sm:$0xff]
  %v581 = vld [vmem:[%s11 + $0x70] sm:$0xff]
  %v582 = vld [vmem:[%s11 + $0x78] sm:$0xff]
  %v583 = vld [vmem:[%s11 + $0x80] sm:$0xff]
  %v584 = vld [vmem:[%s11 + $0x88] sm:$0xff]
  %s585 = scalar_lea.vmem %s9, 16
  %v586 = vld [vmem:[%s585] sm:$0xff]
  %v587 = vld [vmem:[%s585 + $0x8] sm:$0x3]
  %v589 = vsel %vm136, %v586, 0
  %v592 = vsel %vm136, %v587, 0
  %594 = vmatpush.msra.mxu0 0.0
  %595 = vmatpush.msra.mxu0 0.0
  %596 = vmatpush.msra.mxu0 0.0
  %597 = vmatpush.msra.mxu0 0.0
  %598 = vmatpush.msra.mxu0 0.0
  %599 = vmatpush.msra.mxu0 0.0
  %600 = vmatpush.msra.mxu0 0.0
  %601 = vmatpush.msra.mxu0 0.0
  %602 = vmatpush.msra.mxu0 0.0
  %603 = vmatpush.msra.mxu0 0.0
  %604 = vmatpush.msra.mxu0 0.0
  %605 = vmatpush.msra.mxu0 0.0
  %606 = vmatpush.msra.mxu0 0.0
  %607 = vmatpush.msra.mxu0 %v516
  %608 = vmatpush.msra.mxu0 %v503
  %609 = vmatpush.msra.mxu0 %v501
  %610 = vmatmul.f32.gmra.mxu0 %v589
  %v611 = vpop.f32.mrf.mxu0
  %v612 = vadd.f32 0.0, %v611
  %613 = vmatmul.f32.gmra.mxu0 %v592
  %v614 = vpop.f32.mrf.mxu0
  %v615 = vadd.f32 0.0, %v614
  %616 = vdwg.mxu0
  %617 = vmatpush.msra.mxu0 0.0
  %618 = vmatpush.msra.mxu0 0.0
  %619 = vmatpush.msra.mxu0 0.0
  %620 = vmatpush.msra.mxu0 0.0
  %621 = vmatpush.msra.mxu0 0.0
  %622 = vmatpush.msra.mxu0 0.0
  %623 = vmatpush.msra.mxu0 0.0
  %624 = vmatpush.msra.mxu0 0.0
  %625 = vmatpush.msra.mxu0 0.0
  %626 = vmatpush.msra.mxu0 0.0
  %627 = vmatpush.msra.mxu0 0.0
  %628 = vmatpush.msra.mxu0 0.0
  %629 = vmatpush.msra.mxu0 0.0
  %630 = vmatpush.msra.mxu0 %v519
  %631 = vmatpush.msra.mxu0 %v504
  %632 = vmatpush.msra.mxu0 %v502
  %633 = vmatmul.f32.gmra.mxu0 %v589
  %v634 = vpop.f32.mrf.mxu0
  %v635 = vadd.f32 0.0, %v634
  %636 = vmatmul.f32.gmra.mxu0 %v592
  %v637 = vpop.f32.mrf.mxu0
  %v638 = vadd.f32 0.0, %v637
  %639 = vdwg.mxu0
  %s640 = scalar_lea.vmem %s11, 144
  %v641 = vld [vmem:[%s640] sm:$0xff]
  %v642 = vld [vmem:[%s640 + $0x8] sm:$0xff]
  %v643 = vld [vmem:[%s640 + $0x10] sm:$0xff]
  %v644 = vld [vmem:[%s640 + $0x18] sm:$0xff]
  %v645 = vld [vmem:[%s640 + $0x20] sm:$0xff]
  %v646 = vld [vmem:[%s640 + $0x28] sm:$0xff]
  %v647 = vld [vmem:[%s640 + $0x30] sm:$0xff]
  %v648 = vld [vmem:[%s640 + $0x38] sm:$0xff]
  %v649 = vld [vmem:[%s640 + $0x40] sm:$0xff]
  %v650 = vld [vmem:[%s640 + $0x48] sm:$0xff]
  %v651 = vld [vmem:[%s640 + $0x50] sm:$0xff]
  %v652 = vld [vmem:[%s640 + $0x58] sm:$0xff]
  %v653 = vld [vmem:[%s640 + $0x60] sm:$0xff]
  %v654 = vld [vmem:[%s640 + $0x68] sm:$0xff]
  %v655 = vld [vmem:[%s640 + $0x70] sm:$0xff]
  %v656 = vld [vmem:[%s640 + $0x78] sm:$0xff]
  %v657 = vld [vmem:[%s640 + $0x80] sm:$0xff]
  %v658 = vld [vmem:[%s640 + $0x88] sm:$0xff]
  %vm659 = vcmask 130048
  %v661 = vsel %vm659, %v635, 0
  %v664 = vsel %vm659, %v638, 0
  %666 = vmatpush.msra.mxu0 %v656
  %667 = vmatpush.msra.mxu0 %v655
  %668 = vmatpush.msra.mxu0 %v654
  %669 = vmatpush.msra.mxu0 %v653
  %670 = vmatpush.msra.mxu0 %v652
  %671 = vmatpush.msra.mxu0 %v651
  %672 = vmatpush.msra.mxu0 %v650
  %673 = vmatpush.msra.mxu0 %v649
  %674 = vmatpush.msra.mxu0 %v648
  %675 = vmatpush.msra.mxu0 %v647
  %676 = vmatpush.msra.mxu0 %v646
  %677 = vmatpush.msra.mxu0 %v645
  %678 = vmatpush.msra.mxu0 %v644
  %679 = vmatpush.msra.mxu0 %v643
  %680 = vmatpush.msra.mxu0 %v642
  %681 = vmatpush.msra.mxu0 %v641
  %682 = vmatmul.f32.gmra.mxu0 %v612
  %v683 = vpop.f32.mrf.mxu0
  %v684 = vadd.f32 0.0, %v683
  %685 = vmatmul.f32.gmra.mxu0 %v615
  %v686 = vpop.f32.mrf.mxu0
  %v687 = vadd.f32 0.0, %v686
  %688 = vdwg.mxu0
  %689 = vmatpush.msra.mxu0 0.0
  %690 = vmatpush.msra.mxu0 0.0
  %691 = vmatpush.msra.mxu0 0.0
  %692 = vmatpush.msra.mxu0 0.0
  %693 = vmatpush.msra.mxu0 0.0
  %694 = vmatpush.msra.mxu0 0.0
  %695 = vmatpush.msra.mxu0 0.0
  %696 = vmatpush.msra.mxu0 0.0
  %697 = vmatpush.msra.mxu0 0.0
  %698 = vmatpush.msra.mxu0 0.0
  %699 = vmatpush.msra.mxu0 0.0
  %700 = vmatpush.msra.mxu0 0.0
  %701 = vmatpush.msra.mxu0 0.0
  %702 = vmatpush.msra.mxu0 0.0
  %703 = vmatpush.msra.mxu0 %v658
  %704 = vmatpush.msra.mxu0 %v657
  %705 = vmatmul.f32.gmra.mxu0 %v661
  %v706 = vpop.f32.mrf.mxu0
  %v707 = vadd.f32 %v684, %v706
  %708 = vmatmul.f32.gmra.mxu0 %v664
  %v709 = vpop.f32.mrf.mxu0
  %v710 = vadd.f32 %v687, %v709
  %711 = vdwg.mxu0
  %v713 = vsel %vm659, %v562, 0
  %v716 = vsel %vm659, %v565, 0
  %718 = vmatpush.msra.mxu0 %v582
  %719 = vmatpush.msra.mxu0 %v581
  %720 = vmatpush.msra.mxu0 %v580
  %721 = vmatpush.msra.mxu0 %v579
  %722 = vmatpush.msra.mxu0 %v578
  %723 = vmatpush.msra.mxu0 %v577
  %724 = vmatpush.msra.mxu0 %v576
  %725 = vmatpush.msra.mxu0 %v575
  %726 = vmatpush.msra.mxu0 %v574
  %727 = vmatpush.msra.mxu0 %v573
  %728 = vmatpush.msra.mxu0 %v572
  %729 = vmatpush.msra.mxu0 %v571
  %730 = vmatpush.msra.mxu0 %v570
  %731 = vmatpush.msra.mxu0 %v569
  %732 = vmatpush.msra.mxu0 %v568
  %733 = vmatpush.msra.mxu0 %v567
  %734 = vmatmul.f32.gmra.mxu0 %v539
  %v735 = vpop.f32.mrf.mxu0
  %v736 = vadd.f32 %v707, %v735
  %737 = vmatmul.f32.gmra.mxu0 %v542
  %v738 = vpop.f32.mrf.mxu0
  %v739 = vadd.f32 %v710, %v738
  %740 = vdwg.mxu0
  %741 = vmatpush.msra.mxu0 0.0
  %742 = vmatpush.msra.mxu0 0.0
  %743 = vmatpush.msra.mxu0 0.0
  %744 = vmatpush.msra.mxu0 0.0
  %745 = vmatpush.msra.mxu0 0.0
  %746 = vmatpush.msra.mxu0 0.0
  %747 = vmatpush.msra.mxu0 0.0
  %748 = vmatpush.msra.mxu0 0.0
  %749 = vmatpush.msra.mxu0 0.0
  %750 = vmatpush.msra.mxu0 0.0
  %751 = vmatpush.msra.mxu0 0.0
  %752 = vmatpush.msra.mxu0 0.0
  %753 = vmatpush.msra.mxu0 0.0
  %754 = vmatpush.msra.mxu0 0.0
  %755 = vmatpush.msra.mxu0 %v584
  %756 = vmatpush.msra.mxu0 %v583
  %757 = vmatmul.f32.gmra.mxu0 %v713
  %v758 = vpop.f32.mrf.mxu0
  %v759 = vadd.f32 %v736, %v758
  %760 = vmatmul.f32.gmra.mxu0 %v716
  %v761 = vpop.f32.mrf.mxu0
  %v762 = vadd.f32 %v739, %v761
  %763 = vdwg.mxu0
  %s764 = scalar_lea.vmem %s9, 32
  %v765 = vld [vmem:[%s764] sm:$0xff]
  %v766 = vld [vmem:[%s764 + $0x8] sm:$0x3]
  %v768 = vsel %vm136, %v765, 0
  %v771 = vsel %vm136, %v766, 0
  %773 = vmatpush.msra.mxu0 0.0
  %774 = vmatpush.msra.mxu0 0.0
  %775 = vmatpush.msra.mxu0 0.0
  %776 = vmatpush.msra.mxu0 0.0
  %777 = vmatpush.msra.mxu0 0.0
  %778 = vmatpush.msra.mxu0 0.0
  %779 = vmatpush.msra.mxu0 0.0
  %780 = vmatpush.msra.mxu0 0.0
  %781 = vmatpush.msra.mxu0 0.0
  %782 = vmatpush.msra.mxu0 0.0
  %783 = vmatpush.msra.mxu0 0.0
  %784 = vmatpush.msra.mxu0 0.0
  %785 = vmatpush.msra.mxu0 0.0
  %786 = vmatpush.msra.mxu0 %v516
  %787 = vmatpush.msra.mxu0 %v503
  %788 = vmatpush.msra.mxu0 %v501
  %789 = vmatmul.f32.gmra.mxu0 %v768
  %v790 = vpop.f32.mrf.mxu0
  %v791 = vadd.f32 0.0, %v790
  %792 = vmatmul.f32.gmra.mxu0 %v771
  %v793 = vpop.f32.mrf.mxu0
  %v794 = vadd.f32 0.0, %v793
  %795 = vdwg.mxu0
  %796 = vmatpush.msra.mxu0 0.0
  %797 = vmatpush.msra.mxu0 0.0
  %798 = vmatpush.msra.mxu0 0.0
  %799 = vmatpush.msra.mxu0 0.0
  %800 = vmatpush.msra.mxu0 0.0
  %801 = vmatpush.msra.mxu0 0.0
  %802 = vmatpush.msra.mxu0 0.0
  %803 = vmatpush.msra.mxu0 0.0
  %804 = vmatpush.msra.mxu0 0.0
  %805 = vmatpush.msra.mxu0 0.0
  %806 = vmatpush.msra.mxu0 0.0
  %807 = vmatpush.msra.mxu0 0.0
  %808 = vmatpush.msra.mxu0 0.0
  %809 = vmatpush.msra.mxu0 %v519
  %810 = vmatpush.msra.mxu0 %v504
  %811 = vmatpush.msra.mxu0 %v502
  %812 = vmatmul.f32.gmra.mxu0 %v768
  %v813 = vpop.f32.mrf.mxu0
  %v814 = vadd.f32 0.0, %v813
  %815 = vmatmul.f32.gmra.mxu0 %v771
  %v816 = vpop.f32.mrf.mxu0
  %v817 = vadd.f32 0.0, %v816
  %818 = vdwg.mxu0
  %s819 = scalar_lea.vmem %s11, 288
  %v820 = vld [vmem:[%s819] sm:$0xff]
  %v821 = vld [vmem:[%s819 + $0x8] sm:$0xff]
  %v822 = vld [vmem:[%s819 + $0x10] sm:$0xff]
  %v823 = vld [vmem:[%s819 + $0x18] sm:$0xff]
  %v824 = vld [vmem:[%s819 + $0x20] sm:$0xff]
  %v825 = vld [vmem:[%s819 + $0x28] sm:$0xff]
  %v826 = vld [vmem:[%s819 + $0x30] sm:$0xff]
  %v827 = vld [vmem:[%s819 + $0x38] sm:$0xff]
  %v828 = vld [vmem:[%s819 + $0x40] sm:$0xff]
  %v829 = vld [vmem:[%s819 + $0x48] sm:$0xff]
  %v830 = vld [vmem:[%s819 + $0x50] sm:$0xff]
  %v831 = vld [vmem:[%s819 + $0x58] sm:$0xff]
  %v832 = vld [vmem:[%s819 + $0x60] sm:$0xff]
  %v833 = vld [vmem:[%s819 + $0x68] sm:$0xff]
  %v834 = vld [vmem:[%s819 + $0x70] sm:$0xff]
  %v835 = vld [vmem:[%s819 + $0x78] sm:$0xff]
  %v836 = vld [vmem:[%s819 + $0x80] sm:$0xff]
  %v837 = vld [vmem:[%s819 + $0x88] sm:$0xff]
  %v839 = vsel %vm659, %v814, 0
  %v842 = vsel %vm659, %v817, 0
  %844 = vmatpush.msra.mxu0 %v835
  %845 = vmatpush.msra.mxu0 %v834
  %846 = vmatpush.msra.mxu0 %v833
  %847 = vmatpush.msra.mxu0 %v832
  %848 = vmatpush.msra.mxu0 %v831
  %849 = vmatpush.msra.mxu0 %v830
  %850 = vmatpush.msra.mxu0 %v829
  %851 = vmatpush.msra.mxu0 %v828
  %852 = vmatpush.msra.mxu0 %v827
  %853 = vmatpush.msra.mxu0 %v826
  %854 = vmatpush.msra.mxu0 %v825
  %855 = vmatpush.msra.mxu0 %v824
  %856 = vmatpush.msra.mxu0 %v823
  %857 = vmatpush.msra.mxu0 %v822
  %858 = vmatpush.msra.mxu0 %v821
  %859 = vmatpush.msra.mxu0 %v820
  %860 = vmatmul.f32.gmra.mxu0 %v791
  %v861 = vpop.f32.mrf.mxu0
  %v862 = vadd.f32 0.0, %v861
  %863 = vmatmul.f32.gmra.mxu0 %v794
  %v864 = vpop.f32.mrf.mxu0
  %v865 = vadd.f32 0.0, %v864
  %866 = vdwg.mxu0
  %867 = vmatpush.msra.mxu0 0.0
  %868 = vmatpush.msra.mxu0 0.0
  %869 = vmatpush.msra.mxu0 0.0
  %870 = vmatpush.msra.mxu0 0.0
  %871 = vmatpush.msra.mxu0 0.0
  %872 = vmatpush.msra.mxu0 0.0
  %873 = vmatpush.msra.mxu0 0.0
  %874 = vmatpush.msra.mxu0 0.0
  %875 = vmatpush.msra.mxu0 0.0
  %876 = vmatpush.msra.mxu0 0.0
  %877 = vmatpush.msra.mxu0 0.0
  %878 = vmatpush.msra.mxu0 0.0
  %879 = vmatpush.msra.mxu0 0.0
  %880 = vmatpush.msra.mxu0 0.0
  %881 = vmatpush.msra.mxu0 %v837
  %882 = vmatpush.msra.mxu0 %v836
  %883 = vmatmul.f32.gmra.mxu0 %v839
  %v884 = vpop.f32.mrf.mxu0
  %v885 = vadd.f32 %v862, %v884
  %886 = vmatmul.f32.gmra.mxu0 %v842
  %v887 = vpop.f32.mrf.mxu0
  %v888 = vadd.f32 %v865, %v887
  %889 = vdwg.mxu0
  %v890 = vadd.f32 %v759, %v885
  %v891 = vadd.f32 %v762, %v888
  %v892 = vld [vmem:[%s13] sm:$0x1]
  %v894 = vperm.slane %v892, 0
  %v896 = vadd.f32 %v890, %v894
  %v897 = vadd.f32 %v891, %v894
  %v898 = vmax.f32 %v896, 0.0
  %v899 = vmax.f32 %v897, 0.0
  %v900 = vld [vmem:[%s15] sm:$0x3f]
  %vm901 = vcmask 80896
  %v903 = vsel %vm901, %v900, 0
  %v906 = vsel %vm146, %v899, 0
  %908 = vmatpush.msra.mxu0 0.0
  %909 = vmatpush.msra.mxu0 0.0
  %910 = vmatpush.msra.mxu0 0.0
  %911 = vmatpush.msra.mxu0 0.0
  %912 = vmatpush.msra.mxu0 0.0
  %913 = vmatpush.msra.mxu0 0.0
  %914 = vmatpush.msra.mxu0 0.0
  %915 = vmatpush.msra.mxu0 0.0
  %916 = vmatpush.msra.mxu0 0.0
  %917 = vmatpush.msra.mxu0 0.0
  %918 = vmatpush.msra.mxu0 0.0
  %919 = vmatpush.msra.mxu0 0.0
  %920 = vmatpush.msra.mxu0 0.0
  %921 = vmatpush.msra.mxu0 0.0
  %922 = vmatpush.msra.mxu0 %v906
  %923 = vmatpush.msra.mxu0 %v898
  %924 = vmatmul.f32.gmra.mxu0 %v903
  %v925 = vpop.f32.mrf.mxu0
  %v926 = vadd.f32 0.0, %v925
  %927 = vdwg.mxu0
  %v928 = vld [vmem:[%s17] sm:$0xff]
  %v929 = vld [vmem:[%s17 + $0x8] sm:$0xff]
  %v930 = vld [vmem:[%s17 + $0x10] sm:$0xff]
  %v931 = vld [vmem:[%s17 + $0x18] sm:$0xff]
  %v932 = vld [vmem:[%s17 + $0x20] sm:$0xff]
  %v933 = vld [vmem:[%s17 + $0x28] sm:$0xff]
  %v934 = vld [vmem:[%s17 + $0x30] sm:$0xff]
  %v935 = vld [vmem:[%s17 + $0x38] sm:$0xff]
  %v936 = vld [vmem:[%s17 + $0x40] sm:$0xff]
  %v937 = vld [vmem:[%s17 + $0x48] sm:$0xff]
  %s938 = scalar_lea.vmem %s15, 8
  %v939 = vld [vmem:[%s938] sm:$0x3f]
  %v941 = vsel %vm901, %v939, 0
  %943 = vmatpush.msra.mxu0 0.0
  %944 = vmatpush.msra.mxu0 0.0
  %945 = vmatpush.msra.mxu0 0.0
  %946 = vmatpush.msra.mxu0 0.0
  %947 = vmatpush.msra.mxu0 0.0
  %948 = vmatpush.msra.mxu0 0.0
  %949 = vmatpush.msra.mxu0 0.0
  %950 = vmatpush.msra.mxu0 0.0
  %951 = vmatpush.msra.mxu0 0.0
  %952 = vmatpush.msra.mxu0 0.0
  %953 = vmatpush.msra.mxu0 0.0
  %954 = vmatpush.msra.mxu0 0.0
  %955 = vmatpush.msra.mxu0 0.0
  %956 = vmatpush.msra.mxu0 0.0
  %957 = vmatpush.msra.mxu0 %v906
  %958 = vmatpush.msra.mxu0 %v898
  %959 = vmatmul.f32.gmra.mxu0 %v941
  %v960 = vpop.f32.mrf.mxu0
  %v961 = vadd.f32 0.0, %v960
  %962 = vdwg.mxu0
  %s963 = scalar_lea.vmem %s17, 80
  %v964 = vld [vmem:[%s963] sm:$0xff]
  %v965 = vld [vmem:[%s963 + $0x8] sm:$0xff]
  %v966 = vld [vmem:[%s963 + $0x10] sm:$0xff]
  %v967 = vld [vmem:[%s963 + $0x18] sm:$0xff]
  %v968 = vld [vmem:[%s963 + $0x20] sm:$0xff]
  %v969 = vld [vmem:[%s963 + $0x28] sm:$0xff]
  %v970 = vld [vmem:[%s963 + $0x30] sm:$0xff]
  %v971 = vld [vmem:[%s963 + $0x38] sm:$0xff]
  %v972 = vld [vmem:[%s963 + $0x40] sm:$0xff]
  %v973 = vld [vmem:[%s963 + $0x48] sm:$0xff]
  %vm974 = vcmask 654336
  %v976 = vsel %vm974, %v961, 0
  %978 = vmatpush.msra.mxu0 0.0
  %979 = vmatpush.msra.mxu0 0.0
  %980 = vmatpush.msra.mxu0 0.0
  %981 = vmatpush.msra.mxu0 0.0
  %982 = vmatpush.msra.mxu0 0.0
  %983 = vmatpush.msra.mxu0 0.0
  %984 = vmatpush.msra.mxu0 %v973
  %985 = vmatpush.msra.mxu0 %v972
  %986 = vmatpush.msra.mxu0 %v971
  %987 = vmatpush.msra.mxu0 %v970
  %988 = vmatpush.msra.mxu0 %v969
  %989 = vmatpush.msra.mxu0 %v968
  %990 = vmatpush.msra.mxu0 %v967
  %991 = vmatpush.msra.mxu0 %v966
  %992 = vmatpush.msra.mxu0 %v965
  %993 = vmatpush.msra.mxu0 %v964
  %994 = vmatmul.f32.gmra.mxu0 %v976
  %v995 = vpop.f32.mrf.mxu0
  %v996 = vadd.f32 0.0, %v995
  %997 = vdwg.mxu0
  %v999 = vsel %vm974, %v926, 0
  %1001 = vmatpush.msra.mxu0 0.0
  %1002 = vmatpush.msra.mxu0 0.0
  %1003 = vmatpush.msra.mxu0 0.0
  %1004 = vmatpush.msra.mxu0 0.0
  %1005 = vmatpush.msra.mxu0 0.0
  %1006 = vmatpush.msra.mxu0 0.0
  %1007 = vmatpush.msra.mxu0 %v937
  %1008 = vmatpush.msra.mxu0 %v936
  %1009 = vmatpush.msra.mxu0 %v935
  %1010 = vmatpush.msra.mxu0 %v934
  %1011 = vmatpush.msra.mxu0 %v933
  %1012 = vmatpush.msra.mxu0 %v932
  %1013 = vmatpush.msra.mxu0 %v931
  %1014 = vmatpush.msra.mxu0 %v930
  %1015 = vmatpush.msra.mxu0 %v929
  %1016 = vmatpush.msra.mxu0 %v928
  %1017 = vmatmul.f32.gmra.mxu0 %v999
  %v1018 = vpop.f32.mrf.mxu0
  %v1019 = vadd.f32 %v996, %v1018
  %1020 = vdwg.mxu0
  %s1021 = scalar_lea.vmem %s15, 16
  %v1022 = vld [vmem:[%s1021] sm:$0x3f]
  %v1024 = vsel %vm901, %v1022, 0
  %1026 = vmatpush.msra.mxu0 0.0
  %1027 = vmatpush.msra.mxu0 0.0
  %1028 = vmatpush.msra.mxu0 0.0
  %1029 = vmatpush.msra.mxu0 0.0
  %1030 = vmatpush.msra.mxu0 0.0
  %1031 = vmatpush.msra.mxu0 0.0
  %1032 = vmatpush.msra.mxu0 0.0
  %1033 = vmatpush.msra.mxu0 0.0
  %1034 = vmatpush.msra.mxu0 0.0
  %1035 = vmatpush.msra.mxu0 0.0
  %1036 = vmatpush.msra.mxu0 0.0
  %1037 = vmatpush.msra.mxu0 0.0
  %1038 = vmatpush.msra.mxu0 0.0
  %1039 = vmatpush.msra.mxu0 0.0
  %1040 = vmatpush.msra.mxu0 %v906
  %1041 = vmatpush.msra.mxu0 %v898
  %1042 = vmatmul.f32.gmra.mxu0 %v1024
  %v1043 = vpop.f32.mrf.mxu0
  %v1044 = vadd.f32 0.0, %v1043
  %1045 = vdwg.mxu0
  %s1046 = scalar_lea.vmem %s17, 160
  %v1047 = vld [vmem:[%s1046] sm:$0xff]
  %v1048 = vld [vmem:[%s1046 + $0x8] sm:$0xff]
  %v1049 = vld [vmem:[%s1046 + $0x10] sm:$0xff]
  %v1050 = vld [vmem:[%s1046 + $0x18] sm:$0xff]
  %v1051 = vld [vmem:[%s1046 + $0x20] sm:$0xff]
  %v1052 = vld [vmem:[%s1046 + $0x28] sm:$0xff]
  %v1053 = vld [vmem:[%s1046 + $0x30] sm:$0xff]
  %v1054 = vld [vmem:[%s1046 + $0x38] sm:$0xff]
  %v1055 = vld [vmem:[%s1046 + $0x40] sm:$0xff]
  %v1056 = vld [vmem:[%s1046 + $0x48] sm:$0xff]
  %v1058 = vsel %vm974, %v1044, 0
  %1060 = vmatpush.msra.mxu0 0.0
  %1061 = vmatpush.msra.mxu0 0.0
  %1062 = vmatpush.msra.mxu0 0.0
  %1063 = vmatpush.msra.mxu0 0.0
  %1064 = vmatpush.msra.mxu0 0.0
  %1065 = vmatpush.msra.mxu0 0.0
  %1066 = vmatpush.msra.mxu0 %v1056
  %1067 = vmatpush.msra.mxu0 %v1055
  %1068 = vmatpush.msra.mxu0 %v1054
  %1069 = vmatpush.msra.mxu0 %v1053
  %1070 = vmatpush.msra.mxu0 %v1052
  %1071 = vmatpush.msra.mxu0 %v1051
  %1072 = vmatpush.msra.mxu0 %v1050
  %1073 = vmatpush.msra.mxu0 %v1049
  %1074 = vmatpush.msra.mxu0 %v1048
  %1075 = vmatpush.msra.mxu0 %v1047
  %1076 = vmatmul.f32.gmra.mxu0 %v1058
  %v1077 = vpop.f32.mrf.mxu0
  %v1078 = vadd.f32 0.0, %v1077
  %1079 = vdwg.mxu0
  %v1080 = vadd.f32 %v1019, %v1078
  %v1081 = vld [vmem:[%s19] sm:$0x1]
  %v1083 = vperm.slane %v1081, 0
  %v1085 = vadd.f32 %v1080, %v1083
  %v1086 = vmax.f32 %v1085, 0.0
  %v1087 = vld [vmem:[%s21] sm:$0xf]
  %vm1088 = vcmask 48128
  %v1090 = vsel %vm1088, %v1087, 0
  %vm1092 = vcmask 1045504
  %v1094 = vsel %vm1092, %v1086, 0
  %1096 = vmatpush.msra.mxu0 0.0
  %1097 = vmatpush.msra.mxu0 0.0
  %1098 = vmatpush.msra.mxu0 0.0
  %1099 = vmatpush.msra.mxu0 0.0
  %1100 = vmatpush.msra.mxu0 0.0
  %1101 = vmatpush.msra.mxu0 0.0
  %1102 = vmatpush.msra.mxu0 0.0
  %1103 = vmatpush.msra.mxu0 0.0
  %1104 = vmatpush.msra.mxu0 0.0
  %1105 = vmatpush.msra.mxu0 0.0
  %1106 = vmatpush.msra.mxu0 0.0
  %1107 = vmatpush.msra.mxu0 0.0
  %1108 = vmatpush.msra.mxu0 0.0
  %1109 = vmatpush.msra.mxu0 0.0
  %1110 = vmatpush.msra.mxu0 0.0
  %1111 = vmatpush.msra.mxu0 %v1094
  %1112 = vmatmul.f32.gmra.mxu0 %v1090
  %v1113 = vpop.f32.mrf.mxu0
  %v1114 = vadd.f32 0.0, %v1113
  %1115 = vdwg.mxu0
  %v1116 = vld [vmem:[%s23] sm:$0xff]
  %v1117 = vld [vmem:[%s23 + $0x8] sm:$0xff]
  %v1118 = vld [vmem:[%s23 + $0x10] sm:$0xff]
  %v1119 = vld [vmem:[%s23 + $0x18] sm:$0xff]
  %v1120 = vld [vmem:[%s23 + $0x20] sm:$0xff]
  %v1121 = vld [vmem:[%s23 + $0x28] sm:$0xff]
  %s1122 = scalar_lea.vmem %s21, 4
  %v1123 = vld [vmem:[%s1122] sm:$0xf]
  %v1125 = vsel %vm1088, %v1123, 0
  %1127 = vmatpush.msra.mxu0 0.0
  %1128 = vmatpush.msra.mxu0 0.0
  %1129 = vmatpush.msra.mxu0 0.0
  %1130 = vmatpush.msra.mxu0 0.0
  %1131 = vmatpush.msra.mxu0 0.0
  %1132 = vmatpush.msra.mxu0 0.0
  %1133 = vmatpush.msra.mxu0 0.0
  %1134 = vmatpush.msra.mxu0 0.0
  %1135 = vmatpush.msra.mxu0 0.0
  %1136 = vmatpush.msra.mxu0 0.0
  %1137 = vmatpush.msra.mxu0 0.0
  %1138 = vmatpush.msra.mxu0 0.0
  %1139 = vmatpush.msra.mxu0 0.0
  %1140 = vmatpush.msra.mxu0 0.0
  %1141 = vmatpush.msra.mxu0 0.0
  %1142 = vmatpush.msra.mxu0 %v1094
  %1143 = vmatmul.f32.gmra.mxu0 %v1125
  %v1144 = vpop.f32.mrf.mxu0
  %v1145 = vadd.f32 0.0, %v1144
  %1146 = vdwg.mxu0
  %s1147 = scalar_lea.vmem %s23, 48
  %v1148 = vld [vmem:[%s1147] sm:$0xff]
  %v1149 = vld [vmem:[%s1147 + $0x8] sm:$0xff]
  %v1150 = vld [vmem:[%s1147 + $0x10] sm:$0xff]
  %v1151 = vld [vmem:[%s1147 + $0x18] sm:$0xff]
  %v1152 = vld [vmem:[%s1147 + $0x20] sm:$0xff]
  %v1153 = vld [vmem:[%s1147 + $0x28] sm:$0xff]
  %vm1154 = vcmask 392192
  %v1156 = vsel %vm1154, %v1145, 0
  %1158 = vmatpush.msra.mxu0 0.0
  %1159 = vmatpush.msra.mxu0 0.0
  %1160 = vmatpush.msra.mxu0 0.0
  %1161 = vmatpush.msra.mxu0 0.0
  %1162 = vmatpush.msra.mxu0 0.0
  %1163 = vmatpush.msra.mxu0 0.0
  %1164 = vmatpush.msra.mxu0 0.0
  %1165 = vmatpush.msra.mxu0 0.0
  %1166 = vmatpush.msra.mxu0 0.0
  %1167 = vmatpush.msra.mxu0 0.0
  %1168 = vmatpush.msra.mxu0 %v1153
  %1169 = vmatpush.msra.mxu0 %v1152
  %1170 = vmatpush.msra.mxu0 %v1151
  %1171 = vmatpush.msra.mxu0 %v1150
  %1172 = vmatpush.msra.mxu0 %v1149
  %1173 = vmatpush.msra.mxu0 %v1148
  %1174 = vmatmul.f32.gmra.mxu0 %v1156
  %v1175 = vpop.f32.mrf.mxu0
  %v1176 = vadd.f32 0.0, %v1175
  %1177 = vdwg.mxu0
  %v1179 = vsel %vm1154, %v1114, 0
  %1181 = vmatpush.msra.mxu0 0.0
  %1182 = vmatpush.msra.mxu0 0.0
  %1183 = vmatpush.msra.mxu0 0.0
  %1184 = vmatpush.msra.mxu0 0.0
  %1185 = vmatpush.msra.mxu0 0.0
  %1186 = vmatpush.msra.mxu0 0.0
  %1187 = vmatpush.msra.mxu0 0.0
  %1188 = vmatpush.msra.mxu0 0.0
  %1189 = vmatpush.msra.mxu0 0.0
  %1190 = vmatpush.msra.mxu0 0.0
  %1191 = vmatpush.msra.mxu0 %v1121
  %1192 = vmatpush.msra.mxu0 %v1120
  %1193 = vmatpush.msra.mxu0 %v1119
  %1194 = vmatpush.msra.mxu0 %v1118
  %1195 = vmatpush.msra.mxu0 %v1117
  %1196 = vmatpush.msra.mxu0 %v1116
  %1197 = vmatmul.f32.gmra.mxu0 %v1179
  %v1198 = vpop.f32.mrf.mxu0
  %v1199 = vadd.f32 %v1176, %v1198
  %1200 = vdwg.mxu0
  %s1201 = scalar_lea.vmem %s21, 8
  %v1202 = vld [vmem:[%s1201] sm:$0xf]
  %v1204 = vsel %vm1088, %v1202, 0
  %1206 = vmatpush.msra.mxu0 0.0
  %1207 = vmatpush.msra.mxu0 0.0
  %1208 = vmatpush.msra.mxu0 0.0
  %1209 = vmatpush.msra.mxu0 0.0
  %1210 = vmatpush.msra.mxu0 0.0
  %1211 = vmatpush.msra.mxu0 0.0
  %1212 = vmatpush.msra.mxu0 0.0
  %1213 = vmatpush.msra.mxu0 0.0
  %1214 = vmatpush.msra.mxu0 0.0
  %1215 = vmatpush.msra.mxu0 0.0
  %1216 = vmatpush.msra.mxu0 0.0
  %1217 = vmatpush.msra.mxu0 0.0
  %1218 = vmatpush.msra.mxu0 0.0
  %1219 = vmatpush.msra.mxu0 0.0
  %1220 = vmatpush.msra.mxu0 0.0
  %1221 = vmatpush.msra.mxu0 %v1094
  %1222 = vmatmul.f32.gmra.mxu0 %v1204
  %v1223 = vpop.f32.mrf.mxu0
  %v1224 = vadd.f32 0.0, %v1223
  %1225 = vdwg.mxu0
  %s1226 = scalar_lea.vmem %s23, 96
  %v1227 = vld [vmem:[%s1226] sm:$0xff]
  %v1228 = vld [vmem:[%s1226 + $0x8] sm:$0xff]
  %v1229 = vld [vmem:[%s1226 + $0x10] sm:$0xff]
  %v1230 = vld [vmem:[%s1226 + $0x18] sm:$0xff]
  %v1231 = vld [vmem:[%s1226 + $0x20] sm:$0xff]
  %v1232 = vld [vmem:[%s1226 + $0x28] sm:$0xff]
  %v1234 = vsel %vm1154, %v1224, 0
  %1236 = vmatpush.msra.mxu0 0.0
  %1237 = vmatpush.msra.mxu0 0.0
  %1238 = vmatpush.msra.mxu0 0.0
  %1239 = vmatpush.msra.mxu0 0.0
  %1240 = vmatpush.msra.mxu0 0.0
  %1241 = vmatpush.msra.mxu0 0.0
  %1242 = vmatpush.msra.mxu0 0.0
  %1243 = vmatpush.msra.mxu0 0.0
  %1244 = vmatpush.msra.mxu0 0.0
  %1245 = vmatpush.msra.mxu0 0.0
  %1246 = vmatpush.msra.mxu0 %v1232
  %1247 = vmatpush.msra.mxu0 %v1231
  %1248 = vmatpush.msra.mxu0 %v1230
  %1249 = vmatpush.msra.mxu0 %v1229
  %1250 = vmatpush.msra.mxu0 %v1228
  %1251 = vmatpush.msra.mxu0 %v1227
  %1252 = vmatmul.f32.gmra.mxu0 %v1234
  %v1253 = vpop.f32.mrf.mxu0
  %v1254 = vadd.f32 0.0, %v1253
  %1255 = vdwg.mxu0
  %v1256 = vadd.f32 %v1199, %v1254
  %v1257 = vld [vmem:[%s25] sm:$0x1]
  %v1259 = vperm.slane %v1257, 0
  %v1261 = vadd.f32 %v1256, %v1259
  %v1262 = vmax.f32 %v1261, 0.0
  %v1263 = vld [vmem:[%s27] sm:$0x3f]
  %vm1264 = vcmask 31744
  %v1266 = vsel %vm1264, %v1263, 0
  %v1269 = vsel %vm246, %v1262, 0
  %1271 = vmatpush.msra.mxu0 0.0
  %1272 = vmatpush.msra.mxu0 0.0
  %1273 = vmatpush.msra.mxu0 0.0
  %1274 = vmatpush.msra.mxu0 0.0
  %1275 = vmatpush.msra.mxu0 0.0
  %1276 = vmatpush.msra.mxu0 0.0
  %1277 = vmatpush.msra.mxu0 0.0
  %1278 = vmatpush.msra.mxu0 0.0
  %1279 = vmatpush.msra.mxu0 0.0
  %1280 = vmatpush.msra.mxu0 0.0
  %1281 = vmatpush.msra.mxu0 0.0
  %1282 = vmatpush.msra.mxu0 0.0
  %1283 = vmatpush.msra.mxu0 0.0
  %1284 = vmatpush.msra.mxu0 0.0
  %1285 = vmatpush.msra.mxu0 0.0
  %1286 = vmatpush.msra.mxu0 %v1269
  %1287 = vmatmul.f32.gmra.mxu0 %v1266
  %v1288 = vpop.f32.mrf.mxu0
  %v1289 = vadd.f32 0.0, %v1288
  %1290 = vdwg.mxu0
  %v1291 = vld [vmem:[%s29] sm:$0xff]
  %v1292 = vld [vmem:[%s29 + $0x8] sm:$0xff]
  %v1293 = vld [vmem:[%s29 + $0x10] sm:$0xff]
  %v1294 = vld [vmem:[%s29 + $0x18] sm:$0xff]
  %s1295 = scalar_lea.vmem %s27, 8
  %v1296 = vld [vmem:[%s1295] sm:$0x3f]
  %v1298 = vsel %vm1264, %v1296, 0
  %1300 = vmatpush.msra.mxu0 0.0
  %1301 = vmatpush.msra.mxu0 0.0
  %1302 = vmatpush.msra.mxu0 0.0
  %1303 = vmatpush.msra.mxu0 0.0
  %1304 = vmatpush.msra.mxu0 0.0
  %1305 = vmatpush.msra.mxu0 0.0
  %1306 = vmatpush.msra.mxu0 0.0
  %1307 = vmatpush.msra.mxu0 0.0
  %1308 = vmatpush.msra.mxu0 0.0
  %1309 = vmatpush.msra.mxu0 0.0
  %1310 = vmatpush.msra.mxu0 0.0
  %1311 = vmatpush.msra.mxu0 0.0
  %1312 = vmatpush.msra.mxu0 0.0
  %1313 = vmatpush.msra.mxu0 0.0
  %1314 = vmatpush.msra.mxu0 0.0
  %1315 = vmatpush.msra.mxu0 %v1269
  %1316 = vmatmul.f32.gmra.mxu0 %v1298
  %v1317 = vpop.f32.mrf.mxu0
  %v1318 = vadd.f32 0.0, %v1317
  %1319 = vdwg.mxu0
  %s1320 = scalar_lea.vmem %s29, 32
  %v1321 = vld [vmem:[%s1320] sm:$0xff]
  %v1322 = vld [vmem:[%s1320 + $0x8] sm:$0xff]
  %v1323 = vld [vmem:[%s1320 + $0x10] sm:$0xff]
  %v1324 = vld [vmem:[%s1320 + $0x18] sm:$0xff]
  %vm1325 = vcmask 261120
  %v1327 = vsel %vm1325, %v1318, 0
  %1329 = vmatpush.msra.mxu0 0.0
  %1330 = vmatpush.msra.mxu0 0.0
  %1331 = vmatpush.msra.mxu0 0.0
  %1332 = vmatpush.msra.mxu0 0.0
  %1333 = vmatpush.msra.mxu0 0.0
  %1334 = vmatpush.msra.mxu0 0.0
  %1335 = vmatpush.msra.mxu0 0.0
  %1336 = vmatpush.msra.mxu0 0.0
  %1337 = vmatpush.msra.mxu0 0.0
  %1338 = vmatpush.msra.mxu0 0.0
  %1339 = vmatpush.msra.mxu0 0.0
  %1340 = vmatpush.msra.mxu0 0.0
  %1341 = vmatpush.msra.mxu0 %v1324
  %1342 = vmatpush.msra.mxu0 %v1323
  %1343 = vmatpush.msra.mxu0 %v1322
  %1344 = vmatpush.msra.mxu0 %v1321
  %1345 = vmatmul.f32.gmra.mxu0 %v1327
  %v1346 = vpop.f32.mrf.mxu0
  %v1347 = vadd.f32 0.0, %v1346
  %1348 = vdwg.mxu0
  %v1350 = vsel %vm1325, %v1289, 0
  %1352 = vmatpush.msra.mxu0 0.0
  %1353 = vmatpush.msra.mxu0 0.0
  %1354 = vmatpush.msra.mxu0 0.0
  %1355 = vmatpush.msra.mxu0 0.0
  %1356 = vmatpush.msra.mxu0 0.0
  %1357 = vmatpush.msra.mxu0 0.0
  %1358 = vmatpush.msra.mxu0 0.0
  %1359 = vmatpush.msra.mxu0 0.0
  %1360 = vmatpush.msra.mxu0 0.0
  %1361 = vmatpush.msra.mxu0 0.0
  %1362 = vmatpush.msra.mxu0 0.0
  %1363 = vmatpush.msra.mxu0 0.0
  %1364 = vmatpush.msra.mxu0 %v1294
  %1365 = vmatpush.msra.mxu0 %v1293
  %1366 = vmatpush.msra.mxu0 %v1292
  %1367 = vmatpush.msra.mxu0 %v1291
  %1368 = vmatmul.f32.gmra.mxu0 %v1350
  %v1369 = vpop.f32.mrf.mxu0
  %v1370 = vadd.f32 %v1347, %v1369
  %1371 = vdwg.mxu0
  %s1372 = scalar_lea.vmem %s27, 16
  %v1373 = vld [vmem:[%s1372] sm:$0x3f]
  %v1375 = vsel %vm1264, %v1373, 0
  %1377 = vmatpush.msra.mxu0 0.0
  %1378 = vmatpush.msra.mxu0 0.0
  %1379 = vmatpush.msra.mxu0 0.0
  %1380 = vmatpush.msra.mxu0 0.0
  %1381 = vmatpush.msra.mxu0 0.0
  %1382 = vmatpush.msra.mxu0 0.0
  %1383 = vmatpush.msra.mxu0 0.0
  %1384 = vmatpush.msra.mxu0 0.0
  %1385 = vmatpush.msra.mxu0 0.0
  %1386 = vmatpush.msra.mxu0 0.0
  %1387 = vmatpush.msra.mxu0 0.0
  %1388 = vmatpush.msra.mxu0 0.0
  %1389 = vmatpush.msra.mxu0 0.0
  %1390 = vmatpush.msra.mxu0 0.0
  %1391 = vmatpush.msra.mxu0 0.0
  %1392 = vmatpush.msra.mxu0 %v1269
  %1393 = vmatmul.f32.gmra.mxu0 %v1375
  %v1394 = vpop.f32.mrf.mxu0
  %v1395 = vadd.f32 0.0, %v1394
  %1396 = vdwg.mxu0
  %s1397 = scalar_lea.vmem %s29, 64
  %v1398 = vld [vmem:[%s1397] sm:$0xff]
  %v1399 = vld [vmem:[%s1397 + $0x8] sm:$0xff]
  %v1400 = vld [vmem:[%s1397 + $0x10] sm:$0xff]
  %v1401 = vld [vmem:[%s1397 + $0x18] sm:$0xff]
  %v1403 = vsel %vm1325, %v1395, 0
  %1405 = vmatpush.msra.mxu0 0.0
  %1406 = vmatpush.msra.mxu0 0.0
  %1407 = vmatpush.msra.mxu0 0.0
  %1408 = vmatpush.msra.mxu0 0.0
  %1409 = vmatpush.msra.mxu0 0.0
  %1410 = vmatpush.msra.mxu0 0.0
  %1411 = vmatpush.msra.mxu0 0.0
  %1412 = vmatpush.msra.mxu0 0.0
  %1413 = vmatpush.msra.mxu0 0.0
  %1414 = vmatpush.msra.mxu0 0.0
  %1415 = vmatpush.msra.mxu0 0.0
  %1416 = vmatpush.msra.mxu0 0.0
  %1417 = vmatpush.msra.mxu0 %v1401
  %1418 = vmatpush.msra.mxu0 %v1400
  %1419 = vmatpush.msra.mxu0 %v1399
  %1420 = vmatpush.msra.mxu0 %v1398
  %1421 = vmatmul.f32.gmra.mxu0 %v1403
  %v1422 = vpop.f32.mrf.mxu0
  %v1423 = vadd.f32 0.0, %v1422
  %1424 = vdwg.mxu0
  %v1425 = vadd.f32 %v1370, %v1423
  %v1426 = vld [vmem:[%s31] sm:$0x1]
  %v1428 = vperm.slane %v1426, 0
  %v1430 = vadd.f32 %v1425, %v1428
  %v1431 = vmax.f32 %v1430, 0.0
  %v1432 = vadd.f32 %v1431, %v1086
  %v1433 = vld [vmem:[%s33] sm:$0xff]
  %v1434 = vld [vmem:[%s33 + $0x8] sm:$0x3]
  %v1436 = vsel %vm1088, %v1433, 0
  %v1439 = vsel %vm1088, %v1434, 0
  %v1442 = vsel %vm1092, %v1432, 0
  %1444 = vmatpush.msra.mxu0 0.0
  %1445 = vmatpush.msra.mxu0 0.0
  %1446 = vmatpush.msra.mxu0 0.0
  %1447 = vmatpush.msra.mxu0 0.0
  %1448 = vmatpush.msra.mxu0 0.0
  %1449 = vmatpush.msra.mxu0 0.0
  %1450 = vmatpush.msra.mxu0 0.0
  %1451 = vmatpush.msra.mxu0 0.0
  %1452 = vmatpush.msra.mxu0 0.0
  %1453 = vmatpush.msra.mxu0 0.0
  %1454 = vmatpush.msra.mxu0 0.0
  %1455 = vmatpush.msra.mxu0 0.0
  %1456 = vmatpush.msra.mxu0 0.0
  %1457 = vmatpush.msra.mxu0 0.0
  %1458 = vmatpush.msra.mxu0 0.0
  %1459 = vmatpush.msra.mxu0 %v1442
  %1460 = vmatmul.f32.gmra.mxu0 %v1436
  %v1461 = vpop.f32.mrf.mxu0
  %v1462 = vadd.f32 0.0, %v1461
  %1463 = vmatmul.f32.gmra.mxu0 %v1439
  %v1464 = vpop.f32.mrf.mxu0
  %v1465 = vadd.f32 0.0, %v1464
  %1466 = vdwg.mxu0
  %v1467 = vld [vmem:[%s35] sm:$0xff]
  %v1468 = vld [vmem:[%s35 + $0x8] sm:$0xff]
  %v1469 = vld [vmem:[%s35 + $0x10] sm:$0xff]
  %v1470 = vld [vmem:[%s35 + $0x18] sm:$0xff]
  %v1471 = vld [vmem:[%s35 + $0x20] sm:$0xff]
  %v1472 = vld [vmem:[%s35 + $0x28] sm:$0xff]
  %s1473 = scalar_lea.vmem %s33, 16
  %v1474 = vld [vmem:[%s1473] sm:$0xff]
  %v1475 = vld [vmem:[%s1473 + $0x8] sm:$0x3]
  %v1477 = vsel %vm1088, %v1474, 0
  %v1480 = vsel %vm1088, %v1475, 0
  %1482 = vmatpush.msra.mxu0 0.0
  %1483 = vmatpush.msra.mxu0 0.0
  %1484 = vmatpush.msra.mxu0 0.0
  %1485 = vmatpush.msra.mxu0 0.0
  %1486 = vmatpush.msra.mxu0 0.0
  %1487 = vmatpush.msra.mxu0 0.0
  %1488 = vmatpush.msra.mxu0 0.0
  %1489 = vmatpush.msra.mxu0 0.0
  %1490 = vmatpush.msra.mxu0 0.0
  %1491 = vmatpush.msra.mxu0 0.0
  %1492 = vmatpush.msra.mxu0 0.0
  %1493 = vmatpush.msra.mxu0 0.0
  %1494 = vmatpush.msra.mxu0 0.0
  %1495 = vmatpush.msra.mxu0 0.0
  %1496 = vmatpush.msra.mxu0 0.0
  %1497 = vmatpush.msra.mxu0 %v1442
  %1498 = vmatmul.f32.gmra.mxu0 %v1477
  %v1499 = vpop.f32.mrf.mxu0
  %v1500 = vadd.f32 0.0, %v1499
  %1501 = vmatmul.f32.gmra.mxu0 %v1480
  %v1502 = vpop.f32.mrf.mxu0
  %v1503 = vadd.f32 0.0, %v1502
  %1504 = vdwg.mxu0
  %s1505 = scalar_lea.vmem %s35, 48
  %v1506 = vld [vmem:[%s1505] sm:$0xff]
  %v1507 = vld [vmem:[%s1505 + $0x8] sm:$0xff]
  %v1508 = vld [vmem:[%s1505 + $0x10] sm:$0xff]
  %v1509 = vld [vmem:[%s1505 + $0x18] sm:$0xff]
  %v1510 = vld [vmem:[%s1505 + $0x20] sm:$0xff]
  %v1511 = vld [vmem:[%s1505 + $0x28] sm:$0xff]
  %v1513 = vsel %vm1154, %v1500, 0
  %v1516 = vsel %vm1154, %v1503, 0
  %1518 = vmatpush.msra.mxu0 0.0
  %1519 = vmatpush.msra.mxu0 0.0
  %1520 = vmatpush.msra.mxu0 0.0
  %1521 = vmatpush.msra.mxu0 0.0
  %1522 = vmatpush.msra.mxu0 0.0
  %1523 = vmatpush.msra.mxu0 0.0
  %1524 = vmatpush.msra.mxu0 0.0
  %1525 = vmatpush.msra.mxu0 0.0
  %1526 = vmatpush.msra.mxu0 0.0
  %1527 = vmatpush.msra.mxu0 0.0
  %1528 = vmatpush.msra.mxu0 %v1511
  %1529 = vmatpush.msra.mxu0 %v1510
  %1530 = vmatpush.msra.mxu0 %v1509
  %1531 = vmatpush.msra.mxu0 %v1508
  %1532 = vmatpush.msra.mxu0 %v1507
  %1533 = vmatpush.msra.mxu0 %v1506
  %1534 = vmatmul.f32.gmra.mxu0 %v1513
  %v1535 = vpop.f32.mrf.mxu0
  %v1536 = vadd.f32 0.0, %v1535
  %1537 = vmatmul.f32.gmra.mxu0 %v1516
  %v1538 = vpop.f32.mrf.mxu0
  %v1539 = vadd.f32 0.0, %v1538
  %1540 = vdwg.mxu0
  %v1542 = vsel %vm1154, %v1462, 0
  %v1545 = vsel %vm1154, %v1465, 0
  %1547 = vmatpush.msra.mxu0 0.0
  %1548 = vmatpush.msra.mxu0 0.0
  %1549 = vmatpush.msra.mxu0 0.0
  %1550 = vmatpush.msra.mxu0 0.0
  %1551 = vmatpush.msra.mxu0 0.0
  %1552 = vmatpush.msra.mxu0 0.0
  %1553 = vmatpush.msra.mxu0 0.0
  %1554 = vmatpush.msra.mxu0 0.0
  %1555 = vmatpush.msra.mxu0 0.0
  %1556 = vmatpush.msra.mxu0 0.0
  %1557 = vmatpush.msra.mxu0 %v1472
  %1558 = vmatpush.msra.mxu0 %v1471
  %1559 = vmatpush.msra.mxu0 %v1470
  %1560 = vmatpush.msra.mxu0 %v1469
  %1561 = vmatpush.msra.mxu0 %v1468
  %1562 = vmatpush.msra.mxu0 %v1467
  %1563 = vmatmul.f32.gmra.mxu0 %v1542
  %v1564 = vpop.f32.mrf.mxu0
  %v1565 = vadd.f32 %v1536, %v1564
  %1566 = vmatmul.f32.gmra.mxu0 %v1545
  %v1567 = vpop.f32.mrf.mxu0
  %v1568 = vadd.f32 %v1539, %v1567
  %1569 = vdwg.mxu0
  %s1570 = scalar_lea.vmem %s33, 32
  %v1571 = vld [vmem:[%s1570] sm:$0xff]
  %v1572 = vld [vmem:[%s1570 + $0x8] sm:$0x3]
  %v1574 = vsel %vm1088, %v1571, 0
  %v1577 = vsel %vm1088, %v1572, 0
  %1579 = vmatpush.msra.mxu0 0.0
  %1580 = vmatpush.msra.mxu0 0.0
  %1581 = vmatpush.msra.mxu0 0.0
  %1582 = vmatpush.msra.mxu0 0.0
  %1583 = vmatpush.msra.mxu0 0.0
  %1584 = vmatpush.msra.mxu0 0.0
  %1585 = vmatpush.msra.mxu0 0.0
  %1586 = vmatpush.msra.mxu0 0.0
  %1587 = vmatpush.msra.mxu0 0.0
  %1588 = vmatpush.msra.mxu0 0.0
  %1589 = vmatpush.msra.mxu0 0.0
  %1590 = vmatpush.msra.mxu0 0.0
  %1591 = vmatpush.msra.mxu0 0.0
  %1592 = vmatpush.msra.mxu0 0.0
  %1593 = vmatpush.msra.mxu0 0.0
  %1594 = vmatpush.msra.mxu0 %v1442
  %1595 = vmatmul.f32.gmra.mxu0 %v1574
  %v1596 = vpop.f32.mrf.mxu0
  %v1597 = vadd.f32 0.0, %v1596
  %1598 = vmatmul.f32.gmra.mxu0 %v1577
  %v1599 = vpop.f32.mrf.mxu0
  %v1600 = vadd.f32 0.0, %v1599
  %1601 = vdwg.mxu0
  %s1602 = scalar_lea.vmem %s35, 96
  %v1603 = vld [vmem:[%s1602] sm:$0xff]
  %v1604 = vld [vmem:[%s1602 + $0x8] sm:$0xff]
  %v1605 = vld [vmem:[%s1602 + $0x10] sm:$0xff]
  %v1606 = vld [vmem:[%s1602 + $0x18] sm:$0xff]
  %v1607 = vld [vmem:[%s1602 + $0x20] sm:$0xff]
  %v1608 = vld [vmem:[%s1602 + $0x28] sm:$0xff]
  %v1610 = vsel %vm1154, %v1597, 0
  %v1613 = vsel %vm1154, %v1600, 0
  %1615 = vmatpush.msra.mxu0 0.0
  %1616 = vmatpush.msra.mxu0 0.0
  %1617 = vmatpush.msra.mxu0 0.0
  %1618 = vmatpush.msra.mxu0 0.0
  %1619 = vmatpush.msra.mxu0 0.0
  %1620 = vmatpush.msra.mxu0 0.0
  %1621 = vmatpush.msra.mxu0 0.0
  %1622 = vmatpush.msra.mxu0 0.0
  %1623 = vmatpush.msra.mxu0 0.0
  %1624 = vmatpush.msra.mxu0 0.0
  %1625 = vmatpush.msra.mxu0 %v1608
  %1626 = vmatpush.msra.mxu0 %v1607
  %1627 = vmatpush.msra.mxu0 %v1606
  %1628 = vmatpush.msra.mxu0 %v1605
  %1629 = vmatpush.msra.mxu0 %v1604
  %1630 = vmatpush.msra.mxu0 %v1603
  %1631 = vmatmul.f32.gmra.mxu0 %v1610
  %v1632 = vpop.f32.mrf.mxu0
  %v1633 = vadd.f32 0.0, %v1632
  %1634 = vmatmul.f32.gmra.mxu0 %v1613
  %v1635 = vpop.f32.mrf.mxu0
  %v1636 = vadd.f32 0.0, %v1635
  %1637 = vdwg.mxu0
  %v1638 = vadd.f32 %v1565, %v1633
  %v1639 = vadd.f32 %v1568, %v1636
  %v1640 = vld [vmem:[%s37] sm:$0x1]
  %v1642 = vperm.slane %v1640, 0
  %v1644 = vadd.f32 %v1638, %v1642
  %v1645 = vadd.f32 %v1639, %v1642
  %v1646 = vmax.f32 %v1644, 0.0
  %v1647 = vmax.f32 %v1645, 0.0
  %v1648 = vadd.f32 %v1646, %v898
  %v1649 = vadd.f32 %v1647, %v899
  %v1650 = vld [vmem:[%s39] sm:$0xff]
  %v1651 = vld [vmem:[%s39 + $0x8] sm:$0xff]
  %v1652 = vld [vmem:[%s39 + $0x10] sm:$0x3]
  %v1654 = vsel %vm901, %v1650, 0
  %v1657 = vsel %vm901, %v1651, 0
  %v1660 = vsel %vm901, %v1652, 0
  %v1663 = vsel %vm146, %v1649, 0
  %1665 = vmatpush.msra.mxu0 0.0
  %1666 = vmatpush.msra.mxu0 0.0
  %1667 = vmatpush.msra.mxu0 0.0
  %1668 = vmatpush.msra.mxu0 0.0
  %1669 = vmatpush.msra.mxu0 0.0
  %1670 = vmatpush.msra.mxu0 0.0
  %1671 = vmatpush.msra.mxu0 0.0
  %1672 = vmatpush.msra.mxu0 0.0
  %1673 = vmatpush.msra.mxu0 0.0
  %1674 = vmatpush.msra.mxu0 0.0
  %1675 = vmatpush.msra.mxu0 0.0
  %1676 = vmatpush.msra.mxu0 0.0
  %1677 = vmatpush.msra.mxu0 0.0
  %1678 = vmatpush.msra.mxu0 0.0
  %1679 = vmatpush.msra.mxu0 %v1663
  %1680 = vmatpush.msra.mxu0 %v1648
  %1681 = vmatmul.f32.gmra.mxu0 %v1654
  %v1682 = vpop.f32.mrf.mxu0
  %v1683 = vadd.f32 0.0, %v1682
  %1684 = vmatmul.f32.gmra.mxu0 %v1657
  %v1685 = vpop.f32.mrf.mxu0
  %v1686 = vadd.f32 0.0, %v1685
  %1687 = vmatmul.f32.gmra.mxu0 %v1660
  %v1688 = vpop.f32.mrf.mxu0
  %v1689 = vadd.f32 0.0, %v1688
  %1690 = vdwg.mxu0
  %v1691 = vld [vmem:[%s41] sm:$0xff]
  %v1692 = vld [vmem:[%s41 + $0x8] sm:$0xff]
  %v1693 = vld [vmem:[%s41 + $0x10] sm:$0xff]
  %v1694 = vld [vmem:[%s41 + $0x18] sm:$0xff]
  %v1695 = vld [vmem:[%s41 + $0x20] sm:$0xff]
  %v1696 = vld [vmem:[%s41 + $0x28] sm:$0xff]
  %v1697 = vld [vmem:[%s41 + $0x30] sm:$0xff]
  %v1698 = vld [vmem:[%s41 + $0x38] sm:$0xff]
  %v1699 = vld [vmem:[%s41 + $0x40] sm:$0xff]
  %v1700 = vld [vmem:[%s41 + $0x48] sm:$0xff]
  %v1701 = vld [vmem:[%s41 + $0x50] sm:$0xff]
  %v1702 = vld [vmem:[%s41 + $0x58] sm:$0xff]
  %v1703 = vld [vmem:[%s41 + $0x60] sm:$0xff]
  %v1704 = vld [vmem:[%s41 + $0x68] sm:$0xff]
  %v1705 = vld [vmem:[%s41 + $0x70] sm:$0xff]
  %v1706 = vld [vmem:[%s41 + $0x78] sm:$0xff]
  %v1707 = vld [vmem:[%s41 + $0x80] sm:$0xff]
  %v1708 = vld [vmem:[%s41 + $0x88] sm:$0xff]
  %v1709 = vld [vmem:[%s41 + $0x90] sm:$0xff]
  %v1710 = vld [vmem:[%s41 + $0x98] sm:$0xff]
  %s1711 = scalar_lea.vmem %s39, 24
  %v1712 = vld [vmem:[%s1711] sm:$0xff]
  %v1713 = vld [vmem:[%s1711 + $0x8] sm:$0xff]
  %v1714 = vld [vmem:[%s1711 + $0x10] sm:$0x3]
  %v1716 = vsel %vm901, %v1712, 0
  %v1719 = vsel %vm901, %v1713, 0
  %v1722 = vsel %vm901, %v1714, 0
  %1724 = vmatpush.msra.mxu0 0.0
  %1725 = vmatpush.msra.mxu0 0.0
  %1726 = vmatpush.msra.mxu0 0.0
  %1727 = vmatpush.msra.mxu0 0.0
  %1728 = vmatpush.msra.mxu0 0.0
  %1729 = vmatpush.msra.mxu0 0.0
  %1730 = vmatpush.msra.mxu0 0.0
  %1731 = vmatpush.msra.mxu0 0.0
  %1732 = vmatpush.msra.mxu0 0.0
  %1733 = vmatpush.msra.mxu0 0.0
  %1734 = vmatpush.msra.mxu0 0.0
  %1735 = vmatpush.msra.mxu0 0.0
  %1736 = vmatpush.msra.mxu0 0.0
  %1737 = vmatpush.msra.mxu0 0.0
  %1738 = vmatpush.msra.mxu0 %v1663
  %1739 = vmatpush.msra.mxu0 %v1648
  %1740 = vmatmul.f32.gmra.mxu0 %v1716
  %v1741 = vpop.f32.mrf.mxu0
  %v1742 = vadd.f32 0.0, %v1741
  %1743 = vmatmul.f32.gmra.mxu0 %v1719
  %v1744 = vpop.f32.mrf.mxu0
  %v1745 = vadd.f32 0.0, %v1744
  %1746 = vmatmul.f32.gmra.mxu0 %v1722
  %v1747 = vpop.f32.mrf.mxu0
  %v1748 = vadd.f32 0.0, %v1747
  %1749 = vdwg.mxu0
  %s1750 = scalar_lea.vmem %s41, 160
  %v1751 = vld [vmem:[%s1750] sm:$0xff]
  %v1752 = vld [vmem:[%s1750 + $0x8] sm:$0xff]
  %v1753 = vld [vmem:[%s1750 + $0x10] sm:$0xff]
  %v1754 = vld [vmem:[%s1750 + $0x18] sm:$0xff]
  %v1755 = vld [vmem:[%s1750 + $0x20] sm:$0xff]
  %v1756 = vld [vmem:[%s1750 + $0x28] sm:$0xff]
  %v1757 = vld [vmem:[%s1750 + $0x30] sm:$0xff]
  %v1758 = vld [vmem:[%s1750 + $0x38] sm:$0xff]
  %v1759 = vld [vmem:[%s1750 + $0x40] sm:$0xff]
  %v1760 = vld [vmem:[%s1750 + $0x48] sm:$0xff]
  %v1761 = vld [vmem:[%s1750 + $0x50] sm:$0xff]
  %v1762 = vld [vmem:[%s1750 + $0x58] sm:$0xff]
  %v1763 = vld [vmem:[%s1750 + $0x60] sm:$0xff]
  %v1764 = vld [vmem:[%s1750 + $0x68] sm:$0xff]
  %v1765 = vld [vmem:[%s1750 + $0x70] sm:$0xff]
  %v1766 = vld [vmem:[%s1750 + $0x78] sm:$0xff]
  %v1767 = vld [vmem:[%s1750 + $0x80] sm:$0xff]
  %v1768 = vld [vmem:[%s1750 + $0x88] sm:$0xff]
  %v1769 = vld [vmem:[%s1750 + $0x90] sm:$0xff]
  %v1770 = vld [vmem:[%s1750 + $0x98] sm:$0xff]
  %v1772 = vsel %vm974, %v1742, 0
  %v1775 = vsel %vm974, %v1745, 0
  %v1778 = vsel %vm974, %v1748, 0
  %1780 = vmatpush.msra.mxu0 0.0
  %1781 = vmatpush.msra.mxu0 0.0
  %1782 = vmatpush.msra.mxu0 0.0
  %1783 = vmatpush.msra.mxu0 0.0
  %1784 = vmatpush.msra.mxu0 0.0
  %1785 = vmatpush.msra.mxu0 0.0
  %1786 = vmatpush.msra.mxu0 %v1769
  %1787 = vmatpush.msra.mxu0 %v1767
  %1788 = vmatpush.msra.mxu0 %v1765
  %1789 = vmatpush.msra.mxu0 %v1763
  %1790 = vmatpush.msra.mxu0 %v1761
  %1791 = vmatpush.msra.mxu0 %v1759
  %1792 = vmatpush.msra.mxu0 %v1757
  %1793 = vmatpush.msra.mxu0 %v1755
  %1794 = vmatpush.msra.mxu0 %v1753
  %1795 = vmatpush.msra.mxu0 %v1751
  %1796 = vmatmul.f32.gmra.mxu0 %v1772
  %v1797 = vpop.f32.mrf.mxu0
  %v1798 = vadd.f32 0.0, %v1797
  %1799 = vmatmul.f32.gmra.mxu0 %v1775
  %v1800 = vpop.f32.mrf.mxu0
  %v1801 = vadd.f32 0.0, %v1800
  %1802 = vmatmul.f32.gmra.mxu0 %v1778
  %v1803 = vpop.f32.mrf.mxu0
  %v1804 = vadd.f32 0.0, %v1803
  %1805 = vdwg.mxu0
  %1806 = vmatpush.msra.mxu0 0.0
  %1807 = vmatpush.msra.mxu0 0.0
  %1808 = vmatpush.msra.mxu0 0.0
  %1809 = vmatpush.msra.mxu0 0.0
  %1810 = vmatpush.msra.mxu0 0.0
  %1811 = vmatpush.msra.mxu0 0.0
  %1812 = vmatpush.msra.mxu0 %v1770
  %1813 = vmatpush.msra.mxu0 %v1768
  %1814 = vmatpush.msra.mxu0 %v1766
  %1815 = vmatpush.msra.mxu0 %v1764
  %1816 = vmatpush.msra.mxu0 %v1762
  %1817 = vmatpush.msra.mxu0 %v1760
  %1818 = vmatpush.msra.mxu0 %v1758
  %1819 = vmatpush.msra.mxu0 %v1756
  %1820 = vmatpush.msra.mxu0 %v1754
  %1821 = vmatpush.msra.mxu0 %v1752
  %1822 = vmatmul.f32.gmra.mxu0 %v1772
  %v1823 = vpop.f32.mrf.mxu0
  %v1824 = vadd.f32 0.0, %v1823
  %1825 = vmatmul.f32.gmra.mxu0 %v1775
  %v1826 = vpop.f32.mrf.mxu0
  %v1827 = vadd.f32 0.0, %v1826
  %1828 = vmatmul.f32.gmra.mxu0 %v1778
  %v1829 = vpop.f32.mrf.mxu0
  %v1830 = vadd.f32 0.0, %v1829
  %1831 = vdwg.mxu0
  %v1833 = vsel %vm974, %v1683, 0
  %v1836 = vsel %vm974, %v1686, 0
  %v1839 = vsel %vm974, %v1689, 0
  %1841 = vmatpush.msra.mxu0 0.0
  %1842 = vmatpush.msra.mxu0 0.0
  %1843 = vmatpush.msra.mxu0 0.0
  %1844 = vmatpush.msra.mxu0 0.0
  %1845 = vmatpush.msra.mxu0 0.0
  %1846 = vmatpush.msra.mxu0 0.0
  %1847 = vmatpush.msra.mxu0 %v1709
  %1848 = vmatpush.msra.mxu0 %v1707
  %1849 = vmatpush.msra.mxu0 %v1705
  %1850 = vmatpush.msra.mxu0 %v1703
  %1851 = vmatpush.msra.mxu0 %v1701
  %1852 = vmatpush.msra.mxu0 %v1699
  %1853 = vmatpush.msra.mxu0 %v1697
  %1854 = vmatpush.msra.mxu0 %v1695
  %1855 = vmatpush.msra.mxu0 %v1693
  %1856 = vmatpush.msra.mxu0 %v1691
  %1857 = vmatmul.f32.gmra.mxu0 %v1833
  %v1858 = vpop.f32.mrf.mxu0
  %v1859 = vadd.f32 %v1798, %v1858
  %1860 = vmatmul.f32.gmra.mxu0 %v1836
  %v1861 = vpop.f32.mrf.mxu0
  %v1862 = vadd.f32 %v1801, %v1861
  %1863 = vmatmul.f32.gmra.mxu0 %v1839
  %v1864 = vpop.f32.mrf.mxu0
  %v1865 = vadd.f32 %v1804, %v1864
  %1866 = vdwg.mxu0
  %1867 = vmatpush.msra.mxu0 0.0
  %1868 = vmatpush.msra.mxu0 0.0
  %1869 = vmatpush.msra.mxu0 0.0
  %1870 = vmatpush.msra.mxu0 0.0
  %1871 = vmatpush.msra.mxu0 0.0
  %1872 = vmatpush.msra.mxu0 0.0
  %1873 = vmatpush.msra.mxu0 %v1710
  %1874 = vmatpush.msra.mxu0 %v1708
  %1875 = vmatpush.msra.mxu0 %v1706
  %1876 = vmatpush.msra.mxu0 %v1704
  %1877 = vmatpush.msra.mxu0 %v1702
  %1878 = vmatpush.msra.mxu0 %v1700
  %1879 = vmatpush.msra.mxu0 %v1698
  %1880 = vmatpush.msra.mxu0 %v1696
  %1881 = vmatpush.msra.mxu0 %v1694
  %1882 = vmatpush.msra.mxu0 %v1692
  %1883 = vmatmul.f32.gmra.mxu0 %v1833
  %v1884 = vpop.f32.mrf.mxu0
  %v1885 = vadd.f32 %v1824, %v1884
  %1886 = vmatmul.f32.gmra.mxu0 %v1836
  %v1887 = vpop.f32.mrf.mxu0
  %v1888 = vadd.f32 %v1827, %v1887
  %1889 = vmatmul.f32.gmra.mxu0 %v1839
  %v1890 = vpop.f32.mrf.mxu0
  %v1891 = vadd.f32 %v1830, %v1890
  %1892 = vdwg.mxu0
  %s1893 = scalar_lea.vmem %s39, 48
  %v1894 = vld [vmem:[%s1893] sm:$0xff]
  %v1895 = vld [vmem:[%s1893 + $0x8] sm:$0xff]
  %v1896 = vld [vmem:[%s1893 + $0x10] sm:$0x3]
  %v1898 = vsel %vm901, %v1894, 0
  %v1901 = vsel %vm901, %v1895, 0
  %v1904 = vsel %vm901, %v1896, 0
  %1906 = vmatpush.msra.mxu0 0.0
  %1907 = vmatpush.msra.mxu0 0.0
  %1908 = vmatpush.msra.mxu0 0.0
  %1909 = vmatpush.msra.mxu0 0.0
  %1910 = vmatpush.msra.mxu0 0.0
  %1911 = vmatpush.msra.mxu0 0.0
  %1912 = vmatpush.msra.mxu0 0.0
  %1913 = vmatpush.msra.mxu0 0.0
  %1914 = vmatpush.msra.mxu0 0.0
  %1915 = vmatpush.msra.mxu0 0.0
  %1916 = vmatpush.msra.mxu0 0.0
  %1917 = vmatpush.msra.mxu0 0.0
  %1918 = vmatpush.msra.mxu0 0.0
  %1919 = vmatpush.msra.mxu0 0.0
  %1920 = vmatpush.msra.mxu0 %v1663
  %1921 = vmatpush.msra.mxu0 %v1648
  %1922 = vmatmul.f32.gmra.mxu0 %v1898
  %v1923 = vpop.f32.mrf.mxu0
  %v1924 = vadd.f32 0.0, %v1923
  %1925 = vmatmul.f32.gmra.mxu0 %v1901
  %v1926 = vpop.f32.mrf.mxu0
  %v1927 = vadd.f32 0.0, %v1926
  %1928 = vmatmul.f32.gmra.mxu0 %v1904
  %v1929 = vpop.f32.mrf.mxu0
  %v1930 = vadd.f32 0.0, %v1929
  %1931 = vdwg.mxu0
  %s1932 = scalar_lea.vmem %s41, 320
  %v1933 = vld [vmem:[%s1932] sm:$0xff]
  %v1934 = vld [vmem:[%s1932 + $0x8] sm:$0xff]
  %v1935 = vld [vmem:[%s1932 + $0x10] sm:$0xff]
  %v1936 = vld [vmem:[%s1932 + $0x18] sm:$0xff]
  %v1937 = vld [vmem:[%s1932 + $0x20] sm:$0xff]
  %v1938 = vld [vmem:[%s1932 + $0x28] sm:$0xff]
  %v1939 = vld [vmem:[%s1932 + $0x30] sm:$0xff]
  %v1940 = vld [vmem:[%s1932 + $0x38] sm:$0xff]
  %v1941 = vld [vmem:[%s1932 + $0x40] sm:$0xff]
  %v1942 = vld [vmem:[%s1932 + $0x48] sm:$0xff]
  %v1943 = vld [vmem:[%s1932 + $0x50] sm:$0xff]
  %v1944 = vld [vmem:[%s1932 + $0x58] sm:$0xff]
  %v1945 = vld [vmem:[%s1932 + $0x60] sm:$0xff]
  %v1946 = vld [vmem:[%s1932 + $0x68] sm:$0xff]
  %v1947 = vld [vmem:[%s1932 + $0x70] sm:$0xff]
  %v1948 = vld [vmem:[%s1932 + $0x78] sm:$0xff]
  %v1949 = vld [vmem:[%s1932 + $0x80] sm:$0xff]
  %v1950 = vld [vmem:[%s1932 + $0x88] sm:$0xff]
  %v1951 = vld [vmem:[%s1932 + $0x90] sm:$0xff]
  %v1952 = vld [vmem:[%s1932 + $0x98] sm:$0xff]
  %v1954 = vsel %vm974, %v1924, 0
  %v1957 = vsel %vm974, %v1927, 0
  %v1960 = vsel %vm974, %v1930, 0
  %1962 = vmatpush.msra.mxu0 0.0
  %1963 = vmatpush.msra.mxu0 0.0
  %1964 = vmatpush.msra.mxu0 0.0
  %1965 = vmatpush.msra.mxu0 0.0
  %1966 = vmatpush.msra.mxu0 0.0
  %1967 = vmatpush.msra.mxu0 0.0
  %1968 = vmatpush.msra.mxu0 %v1951
  %1969 = vmatpush.msra.mxu0 %v1949
  %1970 = vmatpush.msra.mxu0 %v1947
  %1971 = vmatpush.msra.mxu0 %v1945
  %1972 = vmatpush.msra.mxu0 %v1943
  %1973 = vmatpush.msra.mxu0 %v1941
  %1974 = vmatpush.msra.mxu0 %v1939
  %1975 = vmatpush.msra.mxu0 %v1937
  %1976 = vmatpush.msra.mxu0 %v1935
  %1977 = vmatpush.msra.mxu0 %v1933
  %1978 = vmatmul.f32.gmra.mxu0 %v1954
  %v1979 = vpop.f32.mrf.mxu0
  %v1980 = vadd.f32 0.0, %v1979
  %1981 = vmatmul.f32.gmra.mxu0 %v1957
  %v1982 = vpop.f32.mrf.mxu0
  %v1983 = vadd.f32 0.0, %v1982
  %1984 = vmatmul.f32.gmra.mxu0 %v1960
  %v1985 = vpop.f32.mrf.mxu0
  %v1986 = vadd.f32 0.0, %v1985
  %1987 = vdwg.mxu0
  %1988 = vmatpush.msra.mxu0 0.0
  %1989 = vmatpush.msra.mxu0 0.0
  %1990 = vmatpush.msra.mxu0 0.0
  %1991 = vmatpush.msra.mxu0 0.0
  %1992 = vmatpush.msra.mxu0 0.0
  %1993 = vmatpush.msra.mxu0 0.0
  %1994 = vmatpush.msra.mxu0 %v1952
  %1995 = vmatpush.msra.mxu0 %v1950
  %1996 = vmatpush.msra.mxu0 %v1948
  %1997 = vmatpush.msra.mxu0 %v1946
  %1998 = vmatpush.msra.mxu0 %v1944
  %1999 = vmatpush.msra.mxu0 %v1942
  %2000 = vmatpush.msra.mxu0 %v1940
  %2001 = vmatpush.msra.mxu0 %v1938
  %2002 = vmatpush.msra.mxu0 %v1936
  %2003 = vmatpush.msra.mxu0 %v1934
  %2004 = vmatmul.f32.gmra.mxu0 %v1954
  %v2005 = vpop.f32.mrf.mxu0
  %v2006 = vadd.f32 0.0, %v2005
  %2007 = vmatmul.f32.gmra.mxu0 %v1957
  %v2008 = vpop.f32.mrf.mxu0
  %v2009 = vadd.f32 0.0, %v2008
  %2010 = vmatmul.f32.gmra.mxu0 %v1960
  %v2011 = vpop.f32.mrf.mxu0
  %v2012 = vadd.f32 0.0, %v2011
  %2013 = vdwg.mxu0
  %v2014 = vadd.f32 %v1859, %v1980
  %v2015 = vadd.f32 %v1885, %v2006
  %v2016 = vadd.f32 %v1862, %v1983
  %v2017 = vadd.f32 %v1888, %v2009
  %v2018 = vadd.f32 %v1865, %v1986
  %v2019 = vadd.f32 %v1891, %v2012
  %v2020 = vld [vmem:[%s43] sm:$0x3]
  %v2022 = vperm.slane %v2020, 0
  %v2023 = vperm.slane %v2020, 1
  %v2026 = vadd.f32 %v2014, %v2022
  %v2027 = vadd.f32 %v2015, %v2023
  %v2028 = vadd.f32 %v2016, %v2022
  %v2029 = vadd.f32 %v2017, %v2023
  %v2030 = vadd.f32 %v2018, %v2022
  %v2031 = vadd.f32 %v2019, %v2023
  %v2032 = vmax.f32 %v2026, 0.0
  %v2033 = vmax.f32 %v2027, 0.0
  %v2034 = vmax.f32 %v2028, 0.0
  %v2035 = vmax.f32 %v2029, 0.0
  %v2036 = vmax.f32 %v2030, 0.0
  %v2037 = vmax.f32 %v2031, 0.0
  %v2038 = vadd.f32 %v2032, %v501
  %v2039 = vadd.f32 %v2033, %v502
  %v2040 = vadd.f32 %v2034, %v503
  %v2041 = vadd.f32 %v2035, %v504
  %v2042 = vadd.f32 %v2036, %v505
  %v2043 = vadd.f32 %v2037, %v506
  %v2044 = vld [vmem:[%s45] sm:$0xff]
  %v2045 = vld [vmem:[%s45 + $0x8] sm:$0xff]
  %v2046 = vld [vmem:[%s45 + $0x10] sm:$0x3]
  %v2048 = vsel %vm1088, %v2044, 0
  %v2051 = vsel %vm1088, %v2045, 0
  %v2054 = vsel %vm1088, %v2046, 0
  %2056 = vmatpush.msra.mxu0 0.0
  %2057 = vmatpush.msra.mxu0 0.0
  %2058 = vmatpush.msra.mxu0 0.0
  %2059 = vmatpush.msra.mxu0 0.0
  %2060 = vmatpush.msra.mxu0 0.0
  %2061 = vmatpush.msra.mxu0 0.0
  %2062 = vmatpush.msra.mxu0 0.0
  %2063 = vmatpush.msra.mxu0 0.0
  %2064 = vmatpush.msra.mxu0 0.0
  %2065 = vmatpush.msra.mxu0 0.0
  %2066 = vmatpush.msra.mxu0 0.0
  %2067 = vmatpush.msra.mxu0 0.0
  %2068 = vmatpush.msra.mxu0 0.0
  %2069 = vmatpush.msra.mxu0 0.0
  %2070 = vmatpush.msra.mxu0 0.0
  %2071 = vmatpush.msra.mxu0 %v1442
  %2072 = vmatmul.f32.gmra.mxu0 %v2048
  %v2073 = vpop.f32.mrf.mxu0
  %v2074 = vadd.f32 0.0, %v2073
  %2075 = vmatmul.f32.gmra.mxu0 %v2051
  %v2076 = vpop.f32.mrf.mxu0
  %v2077 = vadd.f32 0.0, %v2076
  %2078 = vmatmul.f32.gmra.mxu0 %v2054
  %v2079 = vpop.f32.mrf.mxu0
  %v2080 = vadd.f32 0.0, %v2079
  %2081 = vdwg.mxu0
  %v2082 = vld [vmem:[%s47] sm:$0xff]
  %v2083 = vld [vmem:[%s47 + $0x8] sm:$0xff]
  %v2084 = vld [vmem:[%s47 + $0x10] sm:$0xff]
  %v2085 = vld [vmem:[%s47 + $0x18] sm:$0xff]
  %v2086 = vld [vmem:[%s47 + $0x20] sm:$0xff]
  %v2087 = vld [vmem:[%s47 + $0x28] sm:$0xff]
  %v2088 = vld [vmem:[%s47 + $0x30] sm:$0xff]
  %v2089 = vld [vmem:[%s47 + $0x38] sm:$0xff]
  %v2090 = vld [vmem:[%s47 + $0x40] sm:$0xff]
  %v2091 = vld [vmem:[%s47 + $0x48] sm:$0xff]
  %v2092 = vld [vmem:[%s47 + $0x50] sm:$0xff]
  %v2093 = vld [vmem:[%s47 + $0x58] sm:$0xff]
  %v2095 = vsel %vm1154, %v2074, 0
  %v2098 = vsel %vm1154, %v2077, 0
  %v2101 = vsel %vm1154, %v2080, 0
  %2103 = vmatpush.msra.mxu0 0.0
  %2104 = vmatpush.msra.mxu0 0.0
  %2105 = vmatpush.msra.mxu0 0.0
  %2106 = vmatpush.msra.mxu0 0.0
  %2107 = vmatpush.msra.mxu0 0.0
  %2108 = vmatpush.msra.mxu0 0.0
  %2109 = vmatpush.msra.mxu0 0.0
  %2110 = vmatpush.msra.mxu0 0.0
  %2111 = vmatpush.msra.mxu0 0.0
  %2112 = vmatpush.msra.mxu0 0.0
  %2113 = vmatpush.msra.mxu0 %v2092
  %2114 = vmatpush.msra.mxu0 %v2090
  %2115 = vmatpush.msra.mxu0 %v2088
  %2116 = vmatpush.msra.mxu0 %v2086
  %2117 = vmatpush.msra.mxu0 %v2084
  %2118 = vmatpush.msra.mxu0 %v2082
  %2119 = vmatmul.f32.gmra.mxu0 %v2095
  %v2120 = vpop.f32.mrf.mxu0
  %v2121 = vadd.f32 0.0, %v2120
  %2122 = vmatmul.f32.gmra.mxu0 %v2098
  %v2123 = vpop.f32.mrf.mxu0
  %v2124 = vadd.f32 0.0, %v2123
  %2125 = vmatmul.f32.gmra.mxu0 %v2101
  %v2126 = vpop.f32.mrf.mxu0
  %v2127 = vadd.f32 0.0, %v2126
  %2128 = vdwg.mxu0
  %2129 = vmatpush.msra.mxu0 0.0
  %2130 = vmatpush.msra.mxu0 0.0
  %2131 = vmatpush.msra.mxu0 0.0
  %2132 = vmatpush.msra.mxu0 0.0
  %2133 = vmatpush.msra.mxu0 0.0
  %2134 = vmatpush.msra.mxu0 0.0
  %2135 = vmatpush.msra.mxu0 0.0
  %2136 = vmatpush.msra.mxu0 0.0
  %2137 = vmatpush.msra.mxu0 0.0
  %2138 = vmatpush.msra.mxu0 0.0
  %2139 = vmatpush.msra.mxu0 %v2093
  %2140 = vmatpush.msra.mxu0 %v2091
  %2141 = vmatpush.msra.mxu0 %v2089
  %2142 = vmatpush.msra.mxu0 %v2087
  %2143 = vmatpush.msra.mxu0 %v2085
  %2144 = vmatpush.msra.mxu0 %v2083
  %2145 = vmatmul.f32.gmra.mxu0 %v2095
  %v2146 = vpop.f32.mrf.mxu0
  %v2147 = vadd.f32 0.0, %v2146
  %2148 = vmatmul.f32.gmra.mxu0 %v2098
  %v2149 = vpop.f32.mrf.mxu0
  %v2150 = vadd.f32 0.0, %v2149
  %2151 = vmatmul.f32.gmra.mxu0 %v2101
  %v2152 = vpop.f32.mrf.mxu0
  %v2153 = vadd.f32 0.0, %v2152
  %2154 = vdwg.mxu0
  %v2155 = vld [vmem:[%s49] sm:$0xff]
  %v2156 = vld [vmem:[%s49 + $0x8] sm:$0xff]
  %v2157 = vld [vmem:[%s49 + $0x10] sm:$0x3]
  %v2159 = vsel %vm901, %v2155, 0
  %v2162 = vsel %vm901, %v2156, 0
  %v2165 = vsel %vm901, %v2157, 0
  %2167 = vmatpush.msra.mxu0 0.0
  %2168 = vmatpush.msra.mxu0 0.0
  %2169 = vmatpush.msra.mxu0 0.0
  %2170 = vmatpush.msra.mxu0 0.0
  %2171 = vmatpush.msra.mxu0 0.0
  %2172 = vmatpush.msra.mxu0 0.0
  %2173 = vmatpush.msra.mxu0 0.0
  %2174 = vmatpush.msra.mxu0 0.0
  %2175 = vmatpush.msra.mxu0 0.0
  %2176 = vmatpush.msra.mxu0 0.0
  %2177 = vmatpush.msra.mxu0 0.0
  %2178 = vmatpush.msra.mxu0 0.0
  %2179 = vmatpush.msra.mxu0 0.0
  %2180 = vmatpush.msra.mxu0 0.0
  %2181 = vmatpush.msra.mxu0 %v1663
  %2182 = vmatpush.msra.mxu0 %v1648
  %2183 = vmatmul.f32.gmra.mxu0 %v2159
  %v2184 = vpop.f32.mrf.mxu0
  %v2185 = vadd.f32 0.0, %v2184
  %2186 = vmatmul.f32.gmra.mxu0 %v2162
  %v2187 = vpop.f32.mrf.mxu0
  %v2188 = vadd.f32 0.0, %v2187
  %2189 = vmatmul.f32.gmra.mxu0 %v2165
  %v2190 = vpop.f32.mrf.mxu0
  %v2191 = vadd.f32 0.0, %v2190
  %2192 = vdwg.mxu0
  %v2193 = vld [vmem:[%s51] sm:$0xff]
  %v2194 = vld [vmem:[%s51 + $0x8] sm:$0xff]
  %v2195 = vld [vmem:[%s51 + $0x10] sm:$0xff]
  %v2196 = vld [vmem:[%s51 + $0x18] sm:$0xff]
  %v2197 = vld [vmem:[%s51 + $0x20] sm:$0xff]
  %v2198 = vld [vmem:[%s51 + $0x28] sm:$0xff]
  %v2199 = vld [vmem:[%s51 + $0x30] sm:$0xff]
  %v2200 = vld [vmem:[%s51 + $0x38] sm:$0xff]
  %v2201 = vld [vmem:[%s51 + $0x40] sm:$0xff]
  %v2202 = vld [vmem:[%s51 + $0x48] sm:$0xff]
  %v2203 = vld [vmem:[%s51 + $0x50] sm:$0xff]
  %v2204 = vld [vmem:[%s51 + $0x58] sm:$0xff]
  %v2205 = vld [vmem:[%s51 + $0x60] sm:$0xff]
  %v2206 = vld [vmem:[%s51 + $0x68] sm:$0xff]
  %v2207 = vld [vmem:[%s51 + $0x70] sm:$0xff]
  %v2208 = vld [vmem:[%s51 + $0x78] sm:$0xff]
  %v2209 = vld [vmem:[%s51 + $0x80] sm:$0xff]
  %v2210 = vld [vmem:[%s51 + $0x88] sm:$0xff]
  %v2211 = vld [vmem:[%s51 + $0x90] sm:$0xff]
  %v2212 = vld [vmem:[%s51 + $0x98] sm:$0xff]
  %v2214 = vsel %vm974, %v2185, 0
  %v2217 = vsel %vm974, %v2188, 0
  %v2220 = vsel %vm974, %v2191, 0
  %2222 = vmatpush.msra.mxu0 0.0
  %2223 = vmatpush.msra.mxu0 0.0
  %2224 = vmatpush.msra.mxu0 0.0
  %2225 = vmatpush.msra.mxu0 0.0
  %2226 = vmatpush.msra.mxu0 0.0
  %2227 = vmatpush.msra.mxu0 0.0
  %2228 = vmatpush.msra.mxu0 %v2211
  %2229 = vmatpush.msra.mxu0 %v2209
  %2230 = vmatpush.msra.mxu0 %v2207
  %2231 = vmatpush.msra.mxu0 %v2205
  %2232 = vmatpush.msra.mxu0 %v2203
  %2233 = vmatpush.msra.mxu0 %v2201
  %2234 = vmatpush.msra.mxu0 %v2199
  %2235 = vmatpush.msra.mxu0 %v2197
  %2236 = vmatpush.msra.mxu0 %v2195
  %2237 = vmatpush.msra.mxu0 %v2193
  %2238 = vmatmul.f32.gmra.mxu0 %v2214
  %v2239 = vpop.f32.mrf.mxu0
  %v2240 = vadd.f32 0.0, %v2239
  %2241 = vmatmul.f32.gmra.mxu0 %v2217
  %v2242 = vpop.f32.mrf.mxu0
  %v2243 = vadd.f32 0.0, %v2242
  %2244 = vmatmul.f32.gmra.mxu0 %v2220
  %v2245 = vpop.f32.mrf.mxu0
  %v2246 = vadd.f32 0.0, %v2245
  %2247 = vdwg.mxu0
  %2248 = vmatpush.msra.mxu0 0.0
  %2249 = vmatpush.msra.mxu0 0.0
  %2250 = vmatpush.msra.mxu0 0.0
  %2251 = vmatpush.msra.mxu0 0.0
  %2252 = vmatpush.msra.mxu0 0.0
  %2253 = vmatpush.msra.mxu0 0.0
  %2254 = vmatpush.msra.mxu0 %v2212
  %2255 = vmatpush.msra.mxu0 %v2210
  %2256 = vmatpush.msra.mxu0 %v2208
  %2257 = vmatpush.msra.mxu0 %v2206
  %2258 = vmatpush.msra.mxu0 %v2204
  %2259 = vmatpush.msra.mxu0 %v2202
  %2260 = vmatpush.msra.mxu0 %v2200
  %2261 = vmatpush.msra.mxu0 %v2198
  %2262 = vmatpush.msra.mxu0 %v2196
  %2263 = vmatpush.msra.mxu0 %v2194
  %2264 = vmatmul.f32.gmra.mxu0 %v2214
  %v2265 = vpop.f32.mrf.mxu0
  %v2266 = vadd.f32 0.0, %v2265
  %2267 = vmatmul.f32.gmra.mxu0 %v2217
  %v2268 = vpop.f32.mrf.mxu0
  %v2269 = vadd.f32 0.0, %v2268
  %2270 = vmatmul.f32.gmra.mxu0 %v2220
  %v2271 = vpop.f32.mrf.mxu0
  %v2272 = vadd.f32 0.0, %v2271
  %2273 = vdwg.mxu0
  %v2274 = vld [vmem:[%s53] sm:$0xff]
  %v2275 = vld [vmem:[%s53 + $0x8] sm:$0xff]
  %v2276 = vld [vmem:[%s53 + $0x10] sm:$0xff]
  %v2277 = vld [vmem:[%s53 + $0x18] sm:$0xff]
  %v2278 = vld [vmem:[%s53 + $0x20] sm:$0xff]
  %v2279 = vld [vmem:[%s53 + $0x28] sm:$0xff]
  %v2280 = vld [vmem:[%s53 + $0x30] sm:$0xff]
  %v2281 = vld [vmem:[%s53 + $0x38] sm:$0xff]
  %v2282 = vld [vmem:[%s53 + $0x40] sm:$0xff]
  %v2283 = vld [vmem:[%s53 + $0x48] sm:$0xff]
  %v2284 = vld [vmem:[%s53 + $0x50] sm:$0xff]
  %v2285 = vld [vmem:[%s53 + $0x58] sm:$0xff]
  %v2286 = vld [vmem:[%s53 + $0x60] sm:$0xff]
  %v2287 = vld [vmem:[%s53 + $0x68] sm:$0xff]
  %v2288 = vld [vmem:[%s53 + $0x70] sm:$0xff]
  %v2289 = vld [vmem:[%s53 + $0x78] sm:$0xff]
  %v2290 = vld [vmem:[%s53 + $0x80] sm:$0xff]
  %v2291 = vld [vmem:[%s53 + $0x88] sm:$0xff]
  %v2292 = vld [vmem:[%s53 + $0x90] sm:$0xff]
  %v2293 = vld [vmem:[%s53 + $0x98] sm:$0xff]
  %v2294 = vld [vmem:[%s53 + $0xa0] sm:$0xff]
  %v2295 = vld [vmem:[%s53 + $0xa8] sm:$0xff]
  %v2296 = vld [vmem:[%s53 + $0xb0] sm:$0xff]
  %v2297 = vld [vmem:[%s53 + $0xb8] sm:$0xff]
  %v2298 = vld [vmem:[%s53 + $0xc0] sm:$0xff]
  %v2299 = vld [vmem:[%s53 + $0xc8] sm:$0xff]
  %v2300 = vld [vmem:[%s53 + $0xd0] sm:$0xff]
  %v2301 = vld [vmem:[%s53 + $0xd8] sm:$0xff]
  %v2302 = vld [vmem:[%s53 + $0xe0] sm:$0xff]
  %v2303 = vld [vmem:[%s53 + $0xe8] sm:$0xff]
  %v2304 = vld [vmem:[%s53 + $0xf0] sm:$0xff]
  %v2305 = vld [vmem:[%s53 + $0xf8] sm:$0xff]
  %v2306 = vld [vmem:[%s53 + $0x100] sm:$0xff]
  %v2307 = vld [vmem:[%s53 + $0x108] sm:$0xff]
  %v2308 = vld [vmem:[%s53 + $0x110] sm:$0xff]
  %v2309 = vld [vmem:[%s53 + $0x118] sm:$0xff]
  %s2310 = scalar_lea.vmem %s53, 288
  %v2311 = vld [vmem:[%s2310] sm:$0xff]
  %v2312 = vld [vmem:[%s2310 + $0x8] sm:$0xff]
  %v2313 = vld [vmem:[%s2310 + $0x10] sm:$0xff]
  %v2314 = vld [vmem:[%s2310 + $0x18] sm:$0xff]
  %v2315 = vld [vmem:[%s2310 + $0x20] sm:$0xff]
  %v2316 = vld [vmem:[%s2310 + $0x28] sm:$0xff]
  %v2317 = vld [vmem:[%s2310 + $0x30] sm:$0xff]
  %v2318 = vld [vmem:[%s2310 + $0x38] sm:$0xff]
  %v2319 = vld [vmem:[%s2310 + $0x40] sm:$0xff]
  %v2320 = vld [vmem:[%s2310 + $0x48] sm:$0xff]
  %v2321 = vld [vmem:[%s2310 + $0x50] sm:$0xff]
  %v2322 = vld [vmem:[%s2310 + $0x58] sm:$0xff]
  %v2323 = vld [vmem:[%s2310 + $0x60] sm:$0xff]
  %v2324 = vld [vmem:[%s2310 + $0x68] sm:$0xff]
  %v2325 = vld [vmem:[%s2310 + $0x70] sm:$0xff]
  %v2326 = vld [vmem:[%s2310 + $0x78] sm:$0xff]
  %v2327 = vld [vmem:[%s2310 + $0x80] sm:$0xff]
  %v2328 = vld [vmem:[%s2310 + $0x88] sm:$0xff]
  %v2329 = vld [vmem:[%s2310 + $0x90] sm:$0xff]
  %v2330 = vld [vmem:[%s2310 + $0x98] sm:$0xff]
  %v2331 = vld [vmem:[%s2310 + $0xa0] sm:$0xff]
  %v2332 = vld [vmem:[%s2310 + $0xa8] sm:$0xff]
  %v2333 = vld [vmem:[%s2310 + $0xb0] sm:$0xff]
  %v2334 = vld [vmem:[%s2310 + $0xb8] sm:$0xff]
  %v2335 = vld [vmem:[%s2310 + $0xc0] sm:$0xff]
  %v2336 = vld [vmem:[%s2310 + $0xc8] sm:$0xff]
  %v2337 = vld [vmem:[%s2310 + $0xd0] sm:$0xff]
  %v2338 = vld [vmem:[%s2310 + $0xd8] sm:$0xff]
  %v2339 = vld [vmem:[%s2310 + $0xe0] sm:$0xff]
  %v2340 = vld [vmem:[%s2310 + $0xe8] sm:$0xff]
  %v2341 = vld [vmem:[%s2310 + $0xf0] sm:$0xff]
  %v2342 = vld [vmem:[%s2310 + $0xf8] sm:$0xff]
  %v2343 = vld [vmem:[%s2310 + $0x100] sm:$0xff]
  %v2344 = vld [vmem:[%s2310 + $0x108] sm:$0xff]
  %v2345 = vld [vmem:[%s2310 + $0x110] sm:$0xff]
  %v2346 = vld [vmem:[%s2310 + $0x118] sm:$0xff]
  %v2348 = vsel %vm659, %v2147, 0
  %v2351 = vsel %vm659, %v2150, 0
  %v2354 = vsel %vm659, %v2153, 0
  %2356 = vmatpush.msra.mxu0 %v2341
  %2357 = vmatpush.msra.mxu0 %v2339
  %2358 = vmatpush.msra.mxu0 %v2337
  %2359 = vmatpush.msra.mxu0 %v2335
  %2360 = vmatpush.msra.mxu0 %v2333
  %2361 = vmatpush.msra.mxu0 %v2331
  %2362 = vmatpush.msra.mxu0 %v2329
  %2363 = vmatpush.msra.mxu0 %v2327
  %2364 = vmatpush.msra.mxu0 %v2325
  %2365 = vmatpush.msra.mxu0 %v2323
  %2366 = vmatpush.msra.mxu0 %v2321
  %2367 = vmatpush.msra.mxu0 %v2319
  %2368 = vmatpush.msra.mxu0 %v2317
  %2369 = vmatpush.msra.mxu0 %v2315
  %2370 = vmatpush.msra.mxu0 %v2313
  %2371 = vmatpush.msra.mxu0 %v2311
  %2372 = vmatmul.f32.gmra.mxu0 %v2121
  %v2373 = vpop.f32.mrf.mxu0
  %v2374 = vadd.f32 0.0, %v2373
  %2375 = vmatmul.f32.gmra.mxu0 %v2124
  %v2376 = vpop.f32.mrf.mxu0
  %v2377 = vadd.f32 0.0, %v2376
  %2378 = vmatmul.f32.gmra.mxu0 %v2127
  %v2379 = vpop.f32.mrf.mxu0
  %v2380 = vadd.f32 0.0, %v2379
  %2381 = vdwg.mxu0
  %2382 = vmatpush.msra.mxu0 0.0
  %2383 = vmatpush.msra.mxu0 0.0
  %2384 = vmatpush.msra.mxu0 0.0
  %2385 = vmatpush.msra.mxu0 0.0
  %2386 = vmatpush.msra.mxu0 0.0
  %2387 = vmatpush.msra.mxu0 0.0
  %2388 = vmatpush.msra.mxu0 0.0
  %2389 = vmatpush.msra.mxu0 0.0
  %2390 = vmatpush.msra.mxu0 0.0
  %2391 = vmatpush.msra.mxu0 0.0
  %2392 = vmatpush.msra.mxu0 0.0
  %2393 = vmatpush.msra.mxu0 0.0
  %2394 = vmatpush.msra.mxu0 0.0
  %2395 = vmatpush.msra.mxu0 0.0
  %2396 = vmatpush.msra.mxu0 %v2345
  %2397 = vmatpush.msra.mxu0 %v2343
  %2398 = vmatmul.f32.gmra.mxu0 %v2348
  %v2399 = vpop.f32.mrf.mxu0
  %v2400 = vadd.f32 %v2374, %v2399
  %2401 = vmatmul.f32.gmra.mxu0 %v2351
  %v2402 = vpop.f32.mrf.mxu0
  %v2403 = vadd.f32 %v2377, %v2402
  %2404 = vmatmul.f32.gmra.mxu0 %v2354
  %v2405 = vpop.f32.mrf.mxu0
  %v2406 = vadd.f32 %v2380, %v2405
  %2407 = vdwg.mxu0
  %2408 = vmatpush.msra.mxu0 %v2342
  %2409 = vmatpush.msra.mxu0 %v2340
  %2410 = vmatpush.msra.mxu0 %v2338
  %2411 = vmatpush.msra.mxu0 %v2336
  %2412 = vmatpush.msra.mxu0 %v2334
  %2413 = vmatpush.msra.mxu0 %v2332
  %2414 = vmatpush.msra.mxu0 %v2330
  %2415 = vmatpush.msra.mxu0 %v2328
  %2416 = vmatpush.msra.mxu0 %v2326
  %2417 = vmatpush.msra.mxu0 %v2324
  %2418 = vmatpush.msra.mxu0 %v2322
  %2419 = vmatpush.msra.mxu0 %v2320
  %2420 = vmatpush.msra.mxu0 %v2318
  %2421 = vmatpush.msra.mxu0 %v2316
  %2422 = vmatpush.msra.mxu0 %v2314
  %2423 = vmatpush.msra.mxu0 %v2312
  %2424 = vmatmul.f32.gmra.mxu0 %v2121
  %v2425 = vpop.f32.mrf.mxu0
  %v2426 = vadd.f32 0.0, %v2425
  %2427 = vmatmul.f32.gmra.mxu0 %v2124
  %v2428 = vpop.f32.mrf.mxu0
  %v2429 = vadd.f32 0.0, %v2428
  %2430 = vmatmul.f32.gmra.mxu0 %v2127
  %v2431 = vpop.f32.mrf.mxu0
  %v2432 = vadd.f32 0.0, %v2431
  %2433 = vdwg.mxu0
  %2434 = vmatpush.msra.mxu0 0.0
  %2435 = vmatpush.msra.mxu0 0.0
  %2436 = vmatpush.msra.mxu0 0.0
  %2437 = vmatpush.msra.mxu0 0.0
  %2438 = vmatpush.msra.mxu0 0.0
  %2439 = vmatpush.msra.mxu0 0.0
  %2440 = vmatpush.msra.mxu0 0.0
  %2441 = vmatpush.msra.mxu0 0.0
  %2442 = vmatpush.msra.mxu0 0.0
  %2443 = vmatpush.msra.mxu0 0.0
  %2444 = vmatpush.msra.mxu0 0.0
  %2445 = vmatpush.msra.mxu0 0.0
  %2446 = vmatpush.msra.mxu0 0.0
  %2447 = vmatpush.msra.mxu0 0.0
  %2448 = vmatpush.msra.mxu0 %v2346
  %2449 = vmatpush.msra.mxu0 %v2344
  %2450 = vmatmul.f32.gmra.mxu0 %v2348
  %v2451 = vpop.f32.mrf.mxu0
  %v2452 = vadd.f32 %v2426, %v2451
  %2453 = vmatmul.f32.gmra.mxu0 %v2351
  %v2454 = vpop.f32.mrf.mxu0
  %v2455 = vadd.f32 %v2429, %v2454
  %2456 = vmatmul.f32.gmra.mxu0 %v2354
  %v2457 = vpop.f32.mrf.mxu0
  %v2458 = vadd.f32 %v2432, %v2457
  %2459 = vdwg.mxu0
  %v2461 = vsel %vm659, %v2039, 0
  %v2464 = vsel %vm659, %v2041, 0
  %v2467 = vsel %vm659, %v2043, 0
  %2469 = vmatpush.msra.mxu0 %v2304
  %2470 = vmatpush.msra.mxu0 %v2302
  %2471 = vmatpush.msra.mxu0 %v2300
  %2472 = vmatpush.msra.mxu0 %v2298
  %2473 = vmatpush.msra.mxu0 %v2296
  %2474 = vmatpush.msra.mxu0 %v2294
  %2475 = vmatpush.msra.mxu0 %v2292
  %2476 = vmatpush.msra.mxu0 %v2290
  %2477 = vmatpush.msra.mxu0 %v2288
  %2478 = vmatpush.msra.mxu0 %v2286
  %2479 = vmatpush.msra.mxu0 %v2284
  %2480 = vmatpush.msra.mxu0 %v2282
  %2481 = vmatpush.msra.mxu0 %v2280
  %2482 = vmatpush.msra.mxu0 %v2278
  %2483 = vmatpush.msra.mxu0 %v2276
  %2484 = vmatpush.msra.mxu0 %v2274
  %2485 = vmatmul.f32.gmra.mxu0 %v2038
  %v2486 = vpop.f32.mrf.mxu0
  %v2487 = vadd.f32 %v2400, %v2486
  %2488 = vmatmul.f32.gmra.mxu0 %v2040
  %v2489 = vpop.f32.mrf.mxu0
  %v2490 = vadd.f32 %v2403, %v2489
  %2491 = vmatmul.f32.gmra.mxu0 %v2042
  %v2492 = vpop.f32.mrf.mxu0
  %v2493 = vadd.f32 %v2406, %v2492
  %2494 = vdwg.mxu0
  %2495 = vmatpush.msra.mxu0 0.0
  %2496 = vmatpush.msra.mxu0 0.0
  %2497 = vmatpush.msra.mxu0 0.0
  %2498 = vmatpush.msra.mxu0 0.0
  %2499 = vmatpush.msra.mxu0 0.0
  %2500 = vmatpush.msra.mxu0 0.0
  %2501 = vmatpush.msra.mxu0 0.0
  %2502 = vmatpush.msra.mxu0 0.0
  %2503 = vmatpush.msra.mxu0 0.0
  %2504 = vmatpush.msra.mxu0 0.0
  %2505 = vmatpush.msra.mxu0 0.0
  %2506 = vmatpush.msra.mxu0 0.0
  %2507 = vmatpush.msra.mxu0 0.0
  %2508 = vmatpush.msra.mxu0 0.0
  %2509 = vmatpush.msra.mxu0 %v2308
  %2510 = vmatpush.msra.mxu0 %v2306
  %2511 = vmatmul.f32.gmra.mxu0 %v2461
  %v2512 = vpop.f32.mrf.mxu0
  %v2513 = vadd.f32 %v2487, %v2512
  %2514 = vmatmul.f32.gmra.mxu0 %v2464
  %v2515 = vpop.f32.mrf.mxu0
  %v2516 = vadd.f32 %v2490, %v2515
  %2517 = vmatmul.f32.gmra.mxu0 %v2467
  %v2518 = vpop.f32.mrf.mxu0
  %v2519 = vadd.f32 %v2493, %v2518
  %2520 = vdwg.mxu0
  %2521 = vmatpush.msra.mxu0 %v2305
  %2522 = vmatpush.msra.mxu0 %v2303
  %2523 = vmatpush.msra.mxu0 %v2301
  %2524 = vmatpush.msra.mxu0 %v2299
  %2525 = vmatpush.msra.mxu0 %v2297
  %2526 = vmatpush.msra.mxu0 %v2295
  %2527 = vmatpush.msra.mxu0 %v2293
  %2528 = vmatpush.msra.mxu0 %v2291
  %2529 = vmatpush.msra.mxu0 %v2289
  %2530 = vmatpush.msra.mxu0 %v2287
  %2531 = vmatpush.msra.mxu0 %v2285
  %2532 = vmatpush.msra.mxu0 %v2283
  %2533 = vmatpush.msra.mxu0 %v2281
  %2534 = vmatpush.msra.mxu0 %v2279
  %2535 = vmatpush.msra.mxu0 %v2277
  %2536 = vmatpush.msra.mxu0 %v2275
  %2537 = vmatmul.f32.gmra.mxu0 %v2038
  %v2538 = vpop.f32.mrf.mxu0
  %v2539 = vadd.f32 %v2452, %v2538
  %2540 = vmatmul.f32.gmra.mxu0 %v2040
  %v2541 = vpop.f32.mrf.mxu0
  %v2542 = vadd.f32 %v2455, %v2541
  %2543 = vmatmul.f32.gmra.mxu0 %v2042
  %v2544 = vpop.f32.mrf.mxu0
  %v2545 = vadd.f32 %v2458, %v2544
  %2546 = vdwg.mxu0
  %2547 = vmatpush.msra.mxu0 0.0
  %2548 = vmatpush.msra.mxu0 0.0
  %2549 = vmatpush.msra.mxu0 0.0
  %2550 = vmatpush.msra.mxu0 0.0
  %2551 = vmatpush.msra.mxu0 0.0
  %2552 = vmatpush.msra.mxu0 0.0
  %2553 = vmatpush.msra.mxu0 0.0
  %2554 = vmatpush.msra.mxu0 0.0
  %2555 = vmatpush.msra.mxu0 0.0
  %2556 = vmatpush.msra.mxu0 0.0
  %2557 = vmatpush.msra.mxu0 0.0
  %2558 = vmatpush.msra.mxu0 0.0
  %2559 = vmatpush.msra.mxu0 0.0
  %2560 = vmatpush.msra.mxu0 0.0
  %2561 = vmatpush.msra.mxu0 %v2309
  %2562 = vmatpush.msra.mxu0 %v2307
  %2563 = vmatmul.f32.gmra.mxu0 %v2461
  %v2564 = vpop.f32.mrf.mxu0
  %v2565 = vadd.f32 %v2539, %v2564
  %2566 = vmatmul.f32.gmra.mxu0 %v2464
  %v2567 = vpop.f32.mrf.mxu0
  %v2568 = vadd.f32 %v2542, %v2567
  %2569 = vmatmul.f32.gmra.mxu0 %v2467
  %v2570 = vpop.f32.mrf.mxu0
  %v2571 = vadd.f32 %v2545, %v2570
  %2572 = vdwg.mxu0
  %s2573 = scalar_lea.vmem %s53, 576
  %v2574 = vld [vmem:[%s2573] sm:$0xff]
  %v2575 = vld [vmem:[%s2573 + $0x8] sm:$0xff]
  %v2576 = vld [vmem:[%s2573 + $0x10] sm:$0xff]
  %v2577 = vld [vmem:[%s2573 + $0x18] sm:$0xff]
  %v2578 = vld [vmem:[%s2573 + $0x20] sm:$0xff]
  %v2579 = vld [vmem:[%s2573 + $0x28] sm:$0xff]
  %v2580 = vld [vmem:[%s2573 + $0x30] sm:$0xff]
  %v2581 = vld [vmem:[%s2573 + $0x38] sm:$0xff]
  %v2582 = vld [vmem:[%s2573 + $0x40] sm:$0xff]
  %v2583 = vld [vmem:[%s2573 + $0x48] sm:$0xff]
  %v2584 = vld [vmem:[%s2573 + $0x50] sm:$0xff]
  %v2585 = vld [vmem:[%s2573 + $0x58] sm:$0xff]
  %v2586 = vld [vmem:[%s2573 + $0x60] sm:$0xff]
  %v2587 = vld [vmem:[%s2573 + $0x68] sm:$0xff]
  %v2588 = vld [vmem:[%s2573 + $0x70] sm:$0xff]
  %v2589 = vld [vmem:[%s2573 + $0x78] sm:$0xff]
  %v2590 = vld [vmem:[%s2573 + $0x80] sm:$0xff]
  %v2591 = vld [vmem:[%s2573 + $0x88] sm:$0xff]
  %v2592 = vld [vmem:[%s2573 + $0x90] sm:$0xff]
  %v2593 = vld [vmem:[%s2573 + $0x98] sm:$0xff]
  %v2594 = vld [vmem:[%s2573 + $0xa0] sm:$0xff]
  %v2595 = vld [vmem:[%s2573 + $0xa8] sm:$0xff]
  %v2596 = vld [vmem:[%s2573 + $0xb0] sm:$0xff]
  %v2597 = vld [vmem:[%s2573 + $0xb8] sm:$0xff]
  %v2598 = vld [vmem:[%s2573 + $0xc0] sm:$0xff]
  %v2599 = vld [vmem:[%s2573 + $0xc8] sm:$0xff]
  %v2600 = vld [vmem:[%s2573 + $0xd0] sm:$0xff]
  %v2601 = vld [vmem:[%s2573 + $0xd8] sm:$0xff]
  %v2602 = vld [vmem:[%s2573 + $0xe0] sm:$0xff]
  %v2603 = vld [vmem:[%s2573 + $0xe8] sm:$0xff]
  %v2604 = vld [vmem:[%s2573 + $0xf0] sm:$0xff]
  %v2605 = vld [vmem:[%s2573 + $0xf8] sm:$0xff]
  %v2606 = vld [vmem:[%s2573 + $0x100] sm:$0xff]
  %v2607 = vld [vmem:[%s2573 + $0x108] sm:$0xff]
  %v2608 = vld [vmem:[%s2573 + $0x110] sm:$0xff]
  %v2609 = vld [vmem:[%s2573 + $0x118] sm:$0xff]
  %v2611 = vsel %vm659, %v2266, 0
  %v2614 = vsel %vm659, %v2269, 0
  %v2617 = vsel %vm659, %v2272, 0
  %2619 = vmatpush.msra.mxu0 %v2604
  %2620 = vmatpush.msra.mxu0 %v2602
  %2621 = vmatpush.msra.mxu0 %v2600
  %2622 = vmatpush.msra.mxu0 %v2598
  %2623 = vmatpush.msra.mxu0 %v2596
  %2624 = vmatpush.msra.mxu0 %v2594
  %2625 = vmatpush.msra.mxu0 %v2592
  %2626 = vmatpush.msra.mxu0 %v2590
  %2627 = vmatpush.msra.mxu0 %v2588
  %2628 = vmatpush.msra.mxu0 %v2586
  %2629 = vmatpush.msra.mxu0 %v2584
  %2630 = vmatpush.msra.mxu0 %v2582
  %2631 = vmatpush.msra.mxu0 %v2580
  %2632 = vmatpush.msra.mxu0 %v2578
  %2633 = vmatpush.msra.mxu0 %v2576
  %2634 = vmatpush.msra.mxu0 %v2574
  %2635 = vmatmul.f32.gmra.mxu0 %v2240
  %v2636 = vpop.f32.mrf.mxu0
  %v2637 = vadd.f32 0.0, %v2636
  %2638 = vmatmul.f32.gmra.mxu0 %v2243
  %v2639 = vpop.f32.mrf.mxu0
  %v2640 = vadd.f32 0.0, %v2639
  %2641 = vmatmul.f32.gmra.mxu0 %v2246
  %v2642 = vpop.f32.mrf.mxu0
  %v2643 = vadd.f32 0.0, %v2642
  %2644 = vdwg.mxu0
  %2645 = vmatpush.msra.mxu0 0.0
  %2646 = vmatpush.msra.mxu0 0.0
  %2647 = vmatpush.msra.mxu0 0.0
  %2648 = vmatpush.msra.mxu0 0.0
  %2649 = vmatpush.msra.mxu0 0.0
  %2650 = vmatpush.msra.mxu0 0.0
  %2651 = vmatpush.msra.mxu0 0.0
  %2652 = vmatpush.msra.mxu0 0.0
  %2653 = vmatpush.msra.mxu0 0.0
  %2654 = vmatpush.msra.mxu0 0.0
  %2655 = vmatpush.msra.mxu0 0.0
  %2656 = vmatpush.msra.mxu0 0.0
  %2657 = vmatpush.msra.mxu0 0.0
  %2658 = vmatpush.msra.mxu0 0.0
  %2659 = vmatpush.msra.mxu0 %v2608
  %2660 = vmatpush.msra.mxu0 %v2606
  %2661 = vmatmul.f32.gmra.mxu0 %v2611
  %v2662 = vpop.f32.mrf.mxu0
  %v2663 = vadd.f32 %v2637, %v2662
  %2664 = vmatmul.f32.gmra.mxu0 %v2614
  %v2665 = vpop.f32.mrf.mxu0
  %v2666 = vadd.f32 %v2640, %v2665
  %2667 = vmatmul.f32.gmra.mxu0 %v2617
  %v2668 = vpop.f32.mrf.mxu0
  %v2669 = vadd.f32 %v2643, %v2668
  %2670 = vdwg.mxu0
  %2671 = vmatpush.msra.mxu0 %v2605
  %2672 = vmatpush.msra.mxu0 %v2603
  %2673 = vmatpush.msra.mxu0 %v2601
  %2674 = vmatpush.msra.mxu0 %v2599
  %2675 = vmatpush.msra.mxu0 %v2597
  %2676 = vmatpush.msra.mxu0 %v2595
  %2677 = vmatpush.msra.mxu0 %v2593
  %2678 = vmatpush.msra.mxu0 %v2591
  %2679 = vmatpush.msra.mxu0 %v2589
  %2680 = vmatpush.msra.mxu0 %v2587
  %2681 = vmatpush.msra.mxu0 %v2585
  %2682 = vmatpush.msra.mxu0 %v2583
  %2683 = vmatpush.msra.mxu0 %v2581
  %2684 = vmatpush.msra.mxu0 %v2579
  %2685 = vmatpush.msra.mxu0 %v2577
  %2686 = vmatpush.msra.mxu0 %v2575
  %2687 = vmatmul.f32.gmra.mxu0 %v2240
  %v2688 = vpop.f32.mrf.mxu0
  %v2689 = vadd.f32 0.0, %v2688
  %2690 = vmatmul.f32.gmra.mxu0 %v2243
  %v2691 = vpop.f32.mrf.mxu0
  %v2692 = vadd.f32 0.0, %v2691
  %2693 = vmatmul.f32.gmra.mxu0 %v2246
  %v2694 = vpop.f32.mrf.mxu0
  %v2695 = vadd.f32 0.0, %v2694
  %2696 = vdwg.mxu0
  %2697 = vmatpush.msra.mxu0 0.0
  %2698 = vmatpush.msra.mxu0 0.0
  %2699 = vmatpush.msra.mxu0 0.0
  %2700 = vmatpush.msra.mxu0 0.0
  %2701 = vmatpush.msra.mxu0 0.0
  %2702 = vmatpush.msra.mxu0 0.0
  %2703 = vmatpush.msra.mxu0 0.0
  %2704 = vmatpush.msra.mxu0 0.0
  %2705 = vmatpush.msra.mxu0 0.0
  %2706 = vmatpush.msra.mxu0 0.0
  %2707 = vmatpush.msra.mxu0 0.0
  %2708 = vmatpush.msra.mxu0 0.0
  %2709 = vmatpush.msra.mxu0 0.0
  %2710 = vmatpush.msra.mxu0 0.0
  %2711 = vmatpush.msra.mxu0 %v2609
  %2712 = vmatpush.msra.mxu0 %v2607
  %2713 = vmatmul.f32.gmra.mxu0 %v2611
  %v2714 = vpop.f32.mrf.mxu0
  %v2715 = vadd.f32 %v2689, %v2714
  %2716 = vmatmul.f32.gmra.mxu0 %v2614
  %v2717 = vpop.f32.mrf.mxu0
  %v2718 = vadd.f32 %v2692, %v2717
  %2719 = vmatmul.f32.gmra.mxu0 %v2617
  %v2720 = vpop.f32.mrf.mxu0
  %v2721 = vadd.f32 %v2695, %v2720
  %2722 = vdwg.mxu0
  %v2723 = vadd.f32 %v2513, %v2663
  %v2724 = vadd.f32 %v2565, %v2715
  %v2725 = vadd.f32 %v2516, %v2666
  %v2726 = vadd.f32 %v2568, %v2718
  %v2727 = vadd.f32 %v2519, %v2669
  %v2728 = vadd.f32 %v2571, %v2721
  %v2729 = vld [vmem:[%s55] sm:$0x3]
  %v2731 = vperm.slane %v2729, 0
  %v2732 = vperm.slane %v2729, 1
  %v2735 = vadd.f32 %v2723, %v2731
  %v2736 = vadd.f32 %v2724, %v2732
  %v2737 = vadd.f32 %v2725, %v2731
  %v2738 = vadd.f32 %v2726, %v2732
  %v2739 = vadd.f32 %v2727, %v2731
  %v2740 = vadd.f32 %v2728, %v2732
  %v2741 = vld [vmem:[%s57] sm:$0xff]
  %v2742 = vld [vmem:[%s57 + $0x8] sm:$0xff]
  %v2743 = vld [vmem:[%s57 + $0x10] sm:$0x3]
  %v2745 = vsel %vm136, %v2741, 0
  %v2748 = vsel %vm136, %v2742, 0
  %v2751 = vsel %vm136, %v2743, 0
  %v2754 = vsel %vm146, %v2739, 0
  %v2757 = vsel %vm146, %v2740, 0
  %2759 = vmatpush.msra.mxu0 0.0
  %2760 = vmatpush.msra.mxu0 0.0
  %2761 = vmatpush.msra.mxu0 0.0
  %2762 = vmatpush.msra.mxu0 0.0
  %2763 = vmatpush.msra.mxu0 0.0
  %2764 = vmatpush.msra.mxu0 0.0
  %2765 = vmatpush.msra.mxu0 0.0
  %2766 = vmatpush.msra.mxu0 0.0
  %2767 = vmatpush.msra.mxu0 0.0
  %2768 = vmatpush.msra.mxu0 0.0
  %2769 = vmatpush.msra.mxu0 0.0
  %2770 = vmatpush.msra.mxu0 0.0
  %2771 = vmatpush.msra.mxu0 0.0
  %2772 = vmatpush.msra.mxu0 %v2754
  %2773 = vmatpush.msra.mxu0 %v2737
  %2774 = vmatpush.msra.mxu0 %v2735
  %2775 = vmatmul.f32.gmra.mxu0 %v2745
  %v2776 = vpop.f32.mrf.mxu0
  %v2777 = vadd.f32 0.0, %v2776
  %2778 = vmatmul.f32.gmra.mxu0 %v2748
  %v2779 = vpop.f32.mrf.mxu0
  %v2780 = vadd.f32 0.0, %v2779
  %2781 = vmatmul.f32.gmra.mxu0 %v2751
  %v2782 = vpop.f32.mrf.mxu0
  %v2783 = vadd.f32 0.0, %v2782
  %2784 = vdwg.mxu0
  %2785 = vmatpush.msra.mxu0 0.0
  %2786 = vmatpush.msra.mxu0 0.0
  %2787 = vmatpush.msra.mxu0 0.0
  %2788 = vmatpush.msra.mxu0 0.0
  %2789 = vmatpush.msra.mxu0 0.0
  %2790 = vmatpush.msra.mxu0 0.0
  %2791 = vmatpush.msra.mxu0 0.0
  %2792 = vmatpush.msra.mxu0 0.0
  %2793 = vmatpush.msra.mxu0 0.0
  %2794 = vmatpush.msra.mxu0 0.0
  %2795 = vmatpush.msra.mxu0 0.0
  %2796 = vmatpush.msra.mxu0 0.0
  %2797 = vmatpush.msra.mxu0 0.0
  %2798 = vmatpush.msra.mxu0 %v2757
  %2799 = vmatpush.msra.mxu0 %v2738
  %2800 = vmatpush.msra.mxu0 %v2736
  %2801 = vmatmul.f32.gmra.mxu0 %v2745
  %v2802 = vpop.f32.mrf.mxu0
  %v2803 = vadd.f32 0.0, %v2802
  %2804 = vmatmul.f32.gmra.mxu0 %v2748
  %v2805 = vpop.f32.mrf.mxu0
  %v2806 = vadd.f32 0.0, %v2805
  %2807 = vmatmul.f32.gmra.mxu0 %v2751
  %v2808 = vpop.f32.mrf.mxu0
  %v2809 = vadd.f32 0.0, %v2808
  %2810 = vdwg.mxu0
  %v2811 = vld [vmem:[%s59] sm:$0xff]
  %v2812 = vld [vmem:[%s59 + $0x8] sm:$0xff]
  %v2813 = vld [vmem:[%s59 + $0x10] sm:$0xff]
  %v2814 = vld [vmem:[%s59 + $0x18] sm:$0xff]
  %v2815 = vld [vmem:[%s59 + $0x20] sm:$0xff]
  %v2816 = vld [vmem:[%s59 + $0x28] sm:$0xff]
  %v2817 = vld [vmem:[%s59 + $0x30] sm:$0xff]
  %v2818 = vld [vmem:[%s59 + $0x38] sm:$0xff]
  %v2819 = vld [vmem:[%s59 + $0x40] sm:$0xff]
  %v2820 = vld [vmem:[%s59 + $0x48] sm:$0xff]
  %v2821 = vld [vmem:[%s59 + $0x50] sm:$0xff]
  %v2822 = vld [vmem:[%s59 + $0x58] sm:$0xff]
  %v2823 = vld [vmem:[%s59 + $0x60] sm:$0xff]
  %v2824 = vld [vmem:[%s59 + $0x68] sm:$0xff]
  %v2825 = vld [vmem:[%s59 + $0x70] sm:$0xff]
  %v2826 = vld [vmem:[%s59 + $0x78] sm:$0xff]
  %v2827 = vld [vmem:[%s59 + $0x80] sm:$0xff]
  %v2828 = vld [vmem:[%s59 + $0x88] sm:$0xff]
  %s2829 = scalar_lea.vmem %s57, 24
  %v2830 = vld [vmem:[%s2829] sm:$0xff]
  %v2831 = vld [vmem:[%s2829 + $0x8] sm:$0xff]
  %v2832 = vld [vmem:[%s2829 + $0x10] sm:$0x3]
  %v2834 = vsel %vm136, %v2830, 0
  %v2837 = vsel %vm136, %v2831, 0
  %v2840 = vsel %vm136, %v2832, 0
  %2842 = vmatpush.msra.mxu0 0.0
  %2843 = vmatpush.msra.mxu0 0.0
  %2844 = vmatpush.msra.mxu0 0.0
  %2845 = vmatpush.msra.mxu0 0.0
  %2846 = vmatpush.msra.mxu0 0.0
  %2847 = vmatpush.msra.mxu0 0.0
  %2848 = vmatpush.msra.mxu0 0.0
  %2849 = vmatpush.msra.mxu0 0.0
  %2850 = vmatpush.msra.mxu0 0.0
  %2851 = vmatpush.msra.mxu0 0.0
  %2852 = vmatpush.msra.mxu0 0.0
  %2853 = vmatpush.msra.mxu0 0.0
  %2854 = vmatpush.msra.mxu0 0.0
  %2855 = vmatpush.msra.mxu0 %v2754
  %2856 = vmatpush.msra.mxu0 %v2737
  %2857 = vmatpush.msra.mxu0 %v2735
  %2858 = vmatmul.f32.gmra.mxu0 %v2834
  %v2859 = vpop.f32.mrf.mxu0
  %v2860 = vadd.f32 0.0, %v2859
  %2861 = vmatmul.f32.gmra.mxu0 %v2837
  %v2862 = vpop.f32.mrf.mxu0
  %v2863 = vadd.f32 0.0, %v2862
  %2864 = vmatmul.f32.gmra.mxu0 %v2840
  %v2865 = vpop.f32.mrf.mxu0
  %v2866 = vadd.f32 0.0, %v2865
  %2867 = vdwg.mxu0
  %2868 = vmatpush.msra.mxu0 0.0
  %2869 = vmatpush.msra.mxu0 0.0
  %2870 = vmatpush.msra.mxu0 0.0
  %2871 = vmatpush.msra.mxu0 0.0
  %2872 = vmatpush.msra.mxu0 0.0
  %2873 = vmatpush.msra.mxu0 0.0
  %2874 = vmatpush.msra.mxu0 0.0
  %2875 = vmatpush.msra.mxu0 0.0
  %2876 = vmatpush.msra.mxu0 0.0
  %2877 = vmatpush.msra.mxu0 0.0
  %2878 = vmatpush.msra.mxu0 0.0
  %2879 = vmatpush.msra.mxu0 0.0
  %2880 = vmatpush.msra.mxu0 0.0
  %2881 = vmatpush.msra.mxu0 %v2757
  %2882 = vmatpush.msra.mxu0 %v2738
  %2883 = vmatpush.msra.mxu0 %v2736
  %2884 = vmatmul.f32.gmra.mxu0 %v2834
  %v2885 = vpop.f32.mrf.mxu0
  %v2886 = vadd.f32 0.0, %v2885
  %2887 = vmatmul.f32.gmra.mxu0 %v2837
  %v2888 = vpop.f32.mrf.mxu0
  %v2889 = vadd.f32 0.0, %v2888
  %2890 = vmatmul.f32.gmra.mxu0 %v2840
  %v2891 = vpop.f32.mrf.mxu0
  %v2892 = vadd.f32 0.0, %v2891
  %2893 = vdwg.mxu0
  %s2894 = scalar_lea.vmem %s59, 144
  %v2895 = vld [vmem:[%s2894] sm:$0xff]
  %v2896 = vld [vmem:[%s2894 + $0x8] sm:$0xff]
  %v2897 = vld [vmem:[%s2894 + $0x10] sm:$0xff]
  %v2898 = vld [vmem:[%s2894 + $0x18] sm:$0xff]
  %v2899 = vld [vmem:[%s2894 + $0x20] sm:$0xff]
  %v2900 = vld [vmem:[%s2894 + $0x28] sm:$0xff]
  %v2901 = vld [vmem:[%s2894 + $0x30] sm:$0xff]
  %v2902 = vld [vmem:[%s2894 + $0x38] sm:$0xff]
  %v2903 = vld [vmem:[%s2894 + $0x40] sm:$0xff]
  %v2904 = vld [vmem:[%s2894 + $0x48] sm:$0xff]
  %v2905 = vld [vmem:[%s2894 + $0x50] sm:$0xff]
  %v2906 = vld [vmem:[%s2894 + $0x58] sm:$0xff]
  %v2907 = vld [vmem:[%s2894 + $0x60] sm:$0xff]
  %v2908 = vld [vmem:[%s2894 + $0x68] sm:$0xff]
  %v2909 = vld [vmem:[%s2894 + $0x70] sm:$0xff]
  %v2910 = vld [vmem:[%s2894 + $0x78] sm:$0xff]
  %v2911 = vld [vmem:[%s2894 + $0x80] sm:$0xff]
  %v2912 = vld [vmem:[%s2894 + $0x88] sm:$0xff]
  %v2914 = vsel %vm659, %v2886, 0
  %v2917 = vsel %vm659, %v2889, 0
  %v2920 = vsel %vm659, %v2892, 0
  %2922 = vmatpush.msra.mxu0 %v2910
  %2923 = vmatpush.msra.mxu0 %v2909
  %2924 = vmatpush.msra.mxu0 %v2908
  %2925 = vmatpush.msra.mxu0 %v2907
  %2926 = vmatpush.msra.mxu0 %v2906
  %2927 = vmatpush.msra.mxu0 %v2905
  %2928 = vmatpush.msra.mxu0 %v2904
  %2929 = vmatpush.msra.mxu0 %v2903
  %2930 = vmatpush.msra.mxu0 %v2902
  %2931 = vmatpush.msra.mxu0 %v2901
  %2932 = vmatpush.msra.mxu0 %v2900
  %2933 = vmatpush.msra.mxu0 %v2899
  %2934 = vmatpush.msra.mxu0 %v2898
  %2935 = vmatpush.msra.mxu0 %v2897
  %2936 = vmatpush.msra.mxu0 %v2896
  %2937 = vmatpush.msra.mxu0 %v2895
  %2938 = vmatmul.f32.gmra.mxu0 %v2860
  %v2939 = vpop.f32.mrf.mxu0
  %v2940 = vadd.f32 0.0, %v2939
  %2941 = vmatmul.f32.gmra.mxu0 %v2863
  %v2942 = vpop.f32.mrf.mxu0
  %v2943 = vadd.f32 0.0, %v2942
  %2944 = vmatmul.f32.gmra.mxu0 %v2866
  %v2945 = vpop.f32.mrf.mxu0
  %v2946 = vadd.f32 0.0, %v2945
  %2947 = vdwg.mxu0
  %2948 = vmatpush.msra.mxu0 0.0
  %2949 = vmatpush.msra.mxu0 0.0
  %2950 = vmatpush.msra.mxu0 0.0
  %2951 = vmatpush.msra.mxu0 0.0
  %2952 = vmatpush.msra.mxu0 0.0
  %2953 = vmatpush.msra.mxu0 0.0
  %2954 = vmatpush.msra.mxu0 0.0
  %2955 = vmatpush.msra.mxu0 0.0
  %2956 = vmatpush.msra.mxu0 0.0
  %2957 = vmatpush.msra.mxu0 0.0
  %2958 = vmatpush.msra.mxu0 0.0
  %2959 = vmatpush.msra.mxu0 0.0
  %2960 = vmatpush.msra.mxu0 0.0
  %2961 = vmatpush.msra.mxu0 0.0
  %2962 = vmatpush.msra.mxu0 %v2912
  %2963 = vmatpush.msra.mxu0 %v2911
  %2964 = vmatmul.f32.gmra.mxu0 %v2914
  %v2965 = vpop.f32.mrf.mxu0
  %v2966 = vadd.f32 %v2940, %v2965
  %2967 = vmatmul.f32.gmra.mxu0 %v2917
  %v2968 = vpop.f32.mrf.mxu0
  %v2969 = vadd.f32 %v2943, %v2968
  %2970 = vmatmul.f32.gmra.mxu0 %v2920
  %v2971 = vpop.f32.mrf.mxu0
  %v2972 = vadd.f32 %v2946, %v2971
  %2973 = vdwg.mxu0
  %v2975 = vsel %vm659, %v2803, 0
  %v2978 = vsel %vm659, %v2806, 0
  %v2981 = vsel %vm659, %v2809, 0
  %2983 = vmatpush.msra.mxu0 %v2826
  %2984 = vmatpush.msra.mxu0 %v2825
  %2985 = vmatpush.msra.mxu0 %v2824
  %2986 = vmatpush.msra.mxu0 %v2823
  %2987 = vmatpush.msra.mxu0 %v2822
  %2988 = vmatpush.msra.mxu0 %v2821
  %2989 = vmatpush.msra.mxu0 %v2820
  %2990 = vmatpush.msra.mxu0 %v2819
  %2991 = vmatpush.msra.mxu0 %v2818
  %2992 = vmatpush.msra.mxu0 %v2817
  %2993 = vmatpush.msra.mxu0 %v2816
  %2994 = vmatpush.msra.mxu0 %v2815
  %2995 = vmatpush.msra.mxu0 %v2814
  %2996 = vmatpush.msra.mxu0 %v2813
  %2997 = vmatpush.msra.mxu0 %v2812
  %2998 = vmatpush.msra.mxu0 %v2811
  %2999 = vmatmul.f32.gmra.mxu0 %v2777
  %v3000 = vpop.f32.mrf.mxu0
  %v3001 = vadd.f32 %v2966, %v3000
  %3002 = vmatmul.f32.gmra.mxu0 %v2780
  %v3003 = vpop.f32.mrf.mxu0
  %v3004 = vadd.f32 %v2969, %v3003
  %3005 = vmatmul.f32.gmra.mxu0 %v2783
  %v3006 = vpop.f32.mrf.mxu0
  %v3007 = vadd.f32 %v2972, %v3006
  %3008 = vdwg.mxu0
  %3009 = vmatpush.msra.mxu0 0.0
  %3010 = vmatpush.msra.mxu0 0.0
  %3011 = vmatpush.msra.mxu0 0.0
  %3012 = vmatpush.msra.mxu0 0.0
  %3013 = vmatpush.msra.mxu0 0.0
  %3014 = vmatpush.msra.mxu0 0.0
  %3015 = vmatpush.msra.mxu0 0.0
  %3016 = vmatpush.msra.mxu0 0.0
  %3017 = vmatpush.msra.mxu0 0.0
  %3018 = vmatpush.msra.mxu0 0.0
  %3019 = vmatpush.msra.mxu0 0.0
  %3020 = vmatpush.msra.mxu0 0.0
  %3021 = vmatpush.msra.mxu0 0.0
  %3022 = vmatpush.msra.mxu0 0.0
  %3023 = vmatpush.msra.mxu0 %v2828
  %3024 = vmatpush.msra.mxu0 %v2827
  %3025 = vmatmul.f32.gmra.mxu0 %v2975
  %v3026 = vpop.f32.mrf.mxu0
  %v3027 = vadd.f32 %v3001, %v3026
  %3028 = vmatmul.f32.gmra.mxu0 %v2978
  %v3029 = vpop.f32.mrf.mxu0
  %v3030 = vadd.f32 %v3004, %v3029
  %3031 = vmatmul.f32.gmra.mxu0 %v2981
  %v3032 = vpop.f32.mrf.mxu0
  %v3033 = vadd.f32 %v3007, %v3032
  %3034 = vdwg.mxu0
  %s3035 = scalar_lea.vmem %s57, 48
  %v3036 = vld [vmem:[%s3035] sm:$0xff]
  %v3037 = vld [vmem:[%s3035 + $0x8] sm:$0xff]
  %v3038 = vld [vmem:[%s3035 + $0x10] sm:$0x3]
  %v3040 = vsel %vm136, %v3036, 0
  %v3043 = vsel %vm136, %v3037, 0
  %v3046 = vsel %vm136, %v3038, 0
  %3048 = vmatpush.msra.mxu0 0.0
  %3049 = vmatpush.msra.mxu0 0.0
  %3050 = vmatpush.msra.mxu0 0.0
  %3051 = vmatpush.msra.mxu0 0.0
  %3052 = vmatpush.msra.mxu0 0.0
  %3053 = vmatpush.msra.mxu0 0.0
  %3054 = vmatpush.msra.mxu0 0.0
  %3055 = vmatpush.msra.mxu0 0.0
  %3056 = vmatpush.msra.mxu0 0.0
  %3057 = vmatpush.msra.mxu0 0.0
  %3058 = vmatpush.msra.mxu0 0.0
  %3059 = vmatpush.msra.mxu0 0.0
  %3060 = vmatpush.msra.mxu0 0.0
  %3061 = vmatpush.msra.mxu0 %v2754
  %3062 = vmatpush.msra.mxu0 %v2737
  %3063 = vmatpush.msra.mxu0 %v2735
  %3064 = vmatmul.f32.gmra.mxu0 %v3040
  %v3065 = vpop.f32.mrf.mxu0
  %v3066 = vadd.f32 0.0, %v3065
  %3067 = vmatmul.f32.gmra.mxu0 %v3043
  %v3068 = vpop.f32.mrf.mxu0
  %v3069 = vadd.f32 0.0, %v3068
  %3070 = vmatmul.f32.gmra.mxu0 %v3046
  %v3071 = vpop.f32.mrf.mxu0
  %v3072 = vadd.f32 0.0, %v3071
  %3073 = vdwg.mxu0
  %3074 = vmatpush.msra.mxu0 0.0
  %3075 = vmatpush.msra.mxu0 0.0
  %3076 = vmatpush.msra.mxu0 0.0
  %3077 = vmatpush.msra.mxu0 0.0
  %3078 = vmatpush.msra.mxu0 0.0
  %3079 = vmatpush.msra.mxu0 0.0
  %3080 = vmatpush.msra.mxu0 0.0
  %3081 = vmatpush.msra.mxu0 0.0
  %3082 = vmatpush.msra.mxu0 0.0
  %3083 = vmatpush.msra.mxu0 0.0
  %3084 = vmatpush.msra.mxu0 0.0
  %3085 = vmatpush.msra.mxu0 0.0
  %3086 = vmatpush.msra.mxu0 0.0
  %3087 = vmatpush.msra.mxu0 %v2757
  %3088 = vmatpush.msra.mxu0 %v2738
  %3089 = vmatpush.msra.mxu0 %v2736
  %3090 = vmatmul.f32.gmra.mxu0 %v3040
  %v3091 = vpop.f32.mrf.mxu0
  %v3092 = vadd.f32 0.0, %v3091
  %3093 = vmatmul.f32.gmra.mxu0 %v3043
  %v3094 = vpop.f32.mrf.mxu0
  %v3095 = vadd.f32 0.0, %v3094
  %3096 = vmatmul.f32.gmra.mxu0 %v3046
  %v3097 = vpop.f32.mrf.mxu0
  %v3098 = vadd.f32 0.0, %v3097
  %3099 = vdwg.mxu0
  %s3100 = scalar_lea.vmem %s59, 288
  %v3101 = vld [vmem:[%s3100] sm:$0xff]
  %v3102 = vld [vmem:[%s3100 + $0x8] sm:$0xff]
  %v3103 = vld [vmem:[%s3100 + $0x10] sm:$0xff]
  %v3104 = vld [vmem:[%s3100 + $0x18] sm:$0xff]
  %v3105 = vld [vmem:[%s3100 + $0x20] sm:$0xff]
  %v3106 = vld [vmem:[%s3100 + $0x28] sm:$0xff]
  %v3107 = vld [vmem:[%s3100 + $0x30] sm:$0xff]
  %v3108 = vld [vmem:[%s3100 + $0x38] sm:$0xff]
  %v3109 = vld [vmem:[%s3100 + $0x40] sm:$0xff]
  %v3110 = vld [vmem:[%s3100 + $0x48] sm:$0xff]
  %v3111 = vld [vmem:[%s3100 + $0x50] sm:$0xff]
  %v3112 = vld [vmem:[%s3100 + $0x58] sm:$0xff]
  %v3113 = vld [vmem:[%s3100 + $0x60] sm:$0xff]
  %v3114 = vld [vmem:[%s3100 + $0x68] sm:$0xff]
  %v3115 = vld [vmem:[%s3100 + $0x70] sm:$0xff]
  %v3116 = vld [vmem:[%s3100 + $0x78] sm:$0xff]
  %v3117 = vld [vmem:[%s3100 + $0x80] sm:$0xff]
  %v3118 = vld [vmem:[%s3100 + $0x88] sm:$0xff]
  %v3120 = vsel %vm659, %v3092, 0
  %v3123 = vsel %vm659, %v3095, 0
  %v3126 = vsel %vm659, %v3098, 0
  %3128 = vmatpush.msra.mxu0 %v3116
  %3129 = vmatpush.msra.mxu0 %v3115
  %3130 = vmatpush.msra.mxu0 %v3114
  %3131 = vmatpush.msra.mxu0 %v3113
  %3132 = vmatpush.msra.mxu0 %v3112
  %3133 = vmatpush.msra.mxu0 %v3111
  %3134 = vmatpush.msra.mxu0 %v3110
  %3135 = vmatpush.msra.mxu0 %v3109
  %3136 = vmatpush.msra.mxu0 %v3108
  %3137 = vmatpush.msra.mxu0 %v3107
  %3138 = vmatpush.msra.mxu0 %v3106
  %3139 = vmatpush.msra.mxu0 %v3105
  %3140 = vmatpush.msra.mxu0 %v3104
  %3141 = vmatpush.msra.mxu0 %v3103
  %3142 = vmatpush.msra.mxu0 %v3102
  %3143 = vmatpush.msra.mxu0 %v3101
  %3144 = vmatmul.f32.gmra.mxu0 %v3066
  %v3145 = vpop.f32.mrf.mxu0
  %v3146 = vadd.f32 0.0, %v3145
  %3147 = vmatmul.f32.gmra.mxu0 %v3069
  %v3148 = vpop.f32.mrf.mxu0
  %v3149 = vadd.f32 0.0, %v3148
  %3150 = vmatmul.f32.gmra.mxu0 %v3072
  %v3151 = vpop.f32.mrf.mxu0
  %v3152 = vadd.f32 0.0, %v3151
  %3153 = vdwg.mxu0
  %3154 = vmatpush.msra.mxu0 0.0
  %3155 = vmatpush.msra.mxu0 0.0
  %3156 = vmatpush.msra.mxu0 0.0
  %3157 = vmatpush.msra.mxu0 0.0
  %3158 = vmatpush.msra.mxu0 0.0
  %3159 = vmatpush.msra.mxu0 0.0
  %3160 = vmatpush.msra.mxu0 0.0
  %3161 = vmatpush.msra.mxu0 0.0
  %3162 = vmatpush.msra.mxu0 0.0
  %3163 = vmatpush.msra.mxu0 0.0
  %3164 = vmatpush.msra.mxu0 0.0
  %3165 = vmatpush.msra.mxu0 0.0
  %3166 = vmatpush.msra.mxu0 0.0
  %3167 = vmatpush.msra.mxu0 0.0
  %3168 = vmatpush.msra.mxu0 %v3118
  %3169 = vmatpush.msra.mxu0 %v3117
  %3170 = vmatmul.f32.gmra.mxu0 %v3120
  %v3171 = vpop.f32.mrf.mxu0
  %v3172 = vadd.f32 %v3146, %v3171
  %3173 = vmatmul.f32.gmra.mxu0 %v3123
  %v3174 = vpop.f32.mrf.mxu0
  %v3175 = vadd.f32 %v3149, %v3174
  %3176 = vmatmul.f32.gmra.mxu0 %v3126
  %v3177 = vpop.f32.mrf.mxu0
  %v3178 = vadd.f32 %v3152, %v3177
  %3179 = vdwg.mxu0
  %v3180 = vadd.f32 %v3027, %v3172
  %v3181 = vadd.f32 %v3030, %v3175
  %v3182 = vadd.f32 %v3033, %v3178
  %v3183 = vld [vmem:[%s61] sm:$0x1]
  %v3185 = vperm.slane %v3183, 0
  %v3187 = vadd.f32 %v3180, %v3185
  %v3188 = vadd.f32 %v3181, %v3185
  %v3189 = vadd.f32 %v3182, %v3185
  %vm3190 = vcmask 72704
  %3191 = vst.msk [vmem:[%s63] sm:$0xff] %vm3190, %v3187
  %3192 = vst.msk [vmem:[%s63 + $0x8] sm:$0xff] %vm3190, %v3188
  %vm3193 = vcmask 66560
  %3194 = vst.msk [vmem:[%s63 + $0x10] sm:$0x3] %vm3193, %v3189
  // Predicated region
  $region126: #{relightnet_forward.1} parent=0 // pred_check
    _
  $region127: #{relightnet_forward.1} parent=0 // pred_check_branch
    %3196 = sbr.rel (0) target = $region129
  $region128: #{relightnet_forward.1} parent=0 // pred_region
    _
  $region129: #{relightnet_forward.1} parent=0 // pred_fallthru
    _
  // Predicated region
  $region130: #{relightnet_forward.1} parent=0 // pred_check
    _
  $region131: #{relightnet_forward.1} parent=0 // pred_check_branch
    %3198 = sbr.rel (0) target = $region133
  $region132: #{relightnet_forward.1} parent=0 // pred_region
    _
  $region133: #{relightnet_forward.1} parent=0 // pred_fallthru
    _

</llo_original>
